<compile_context>
chip_gen: v5e
topology: v5e:2x2
jax: 0.10.0
libtpu: 0.0.40
codegen_flags: <defaults>
</compile_context>

<pallas_src>
import jax
import jax.numpy as jnp
from jax.experimental import pallas as pl
from jax.experimental.pallas import tpu as pltpu


def ffn_kernel(x_ref, wih_ref, bgx_ref, whh_ref, bhhn_f_ref, bhhn_b_ref,
               wlin_ref, blin_ref,
               out_ref,
               gx_ref, h_ref):
    T, Bp, Dp = x_ref.shape
    Hp = bhhn_f_ref.shape[1]        # lane-padded hidden size per direction
    GHp = 3 * Hp                    # lane-padded gates (r, z, n) per direction

    # ---- Phase 1: fused input-gate projection, both directions, one dot ----
    # gx[..., :GHp]  = x @ W_ih_fwd^T + (b_ih + [b_hh_r, b_hh_z, 0])_fwd
    # gx[..., GHp:]  = same for the backward direction
    x2d = x_ref[...].reshape(T * Bp, Dp)
    gx_ref[...] = (
        jnp.dot(x2d, wih_ref[...], preferred_element_type=jnp.float32)
        + bgx_ref[...]
    ).reshape(T, Bp, 2 * GHp)

    whh = whh_ref[...]              # (2*Hp, 6*Hp) block-diagonal, host-built
    bhhn_f = bhhn_f_ref[...]        # (1, Hp) — n-gate hh bias (stays under r*)
    bhhn_b = bhhn_b_ref[...]

    def gru_gates(gx, gh, bhh_n, h):
        # All slices are at 128-lane-aligned boundaries (whole-vreg slabs).
        r = jax.nn.sigmoid(gx[:, :Hp] + gh[:, :Hp])
        z = jax.nn.sigmoid(gx[:, Hp:2 * Hp] + gh[:, Hp:2 * Hp])
        n = jnp.tanh(gx[:, 2 * Hp:] + r * (gh[:, 2 * Hp:] + bhh_n))
        return (1.0 - z) * n + z * h

    # ---- Phase 2: fused fwd+bwd recurrence, ONE MXU dot per step ------------
    h_cat = jnp.zeros((Bp, 2 * Hp), jnp.float32)   # [ h_fwd | h_bwd ]
    for i in range(T):              # static full unroll; T is small & static
        tb = T - 1 - i
        # single block-diagonal dot produces both directions' hh gates
        gh = jnp.dot(h_cat, whh, preferred_element_type=jnp.float32)  # (Bp,6Hp)
        gx_f = gx_ref[i, :, :GHp]   # dense aligned (Bp, 3Hp) slab
        gx_b = gx_ref[tb, :, GHp:]  # dense aligned (Bp, 3Hp) slab
        h_f = gru_gates(gx_f, gh[:, :GHp], bhhn_f, h_cat[:, :Hp])
        h_b = gru_gates(gx_b, gh[:, GHp:], bhhn_b, h_cat[:, Hp:])
        h_ref[i, :, :Hp] = h_f
        h_ref[tb, :, Hp:] = h_b
        h_cat = jnp.concatenate([h_f, h_b], axis=1)   # lane-aligned concat

    # ---- Phase 3: leaky_relu + (dropout p=0 is identity) + output Linear ---
    y = h_ref[...].reshape(T * Bp, 2 * Hp)
    y = jnp.maximum(y, 0.01 * y)                      # leaky_relu, slope 0.01
    out_ref[...] = (
        jnp.dot(y, wlin_ref[...], preferred_element_type=jnp.float32)
        + blin_ref[...]
    ).reshape(T, Bp, Dp)                              # lane-dense (Dp=128) store


def ffn_forward(x, p):
    T, B, D = x.shape
    H = 2 * D
    LANE = 128
    SUB = 8
    Hp = ((H + LANE - 1) // LANE) * LANE
    Dp = ((D + LANE - 1) // LANE) * LANE
    Bp = ((B + SUB - 1) // SUB) * SUB

    f32 = jnp.float32

    def pad_gate_cols(w_t):
        # (K, 3H) -> (K, 3Hp): each gate's H columns start a 128-lane slab.
        K = w_t.shape[0]
        out = jnp.zeros((K, 3 * Hp), f32)
        for g in range(3):
            out = out.at[:, g * Hp:g * Hp + H].set(w_t[:, g * H:(g + 1) * H])
        return out

    def pad_gate_bias(b):
        # (3H,) -> (3Hp,) with the same slab placement.
        out = jnp.zeros((3 * Hp,), f32)
        for g in range(3):
            out = out.at[g * Hp:g * Hp + H].set(b[g * H:(g + 1) * H])
        return out

    def pad_rows(w, k_pad):
        return jnp.zeros((k_pad, w.shape[1]), f32).at[:w.shape[0], :].set(w)

    def fold_bias(b_ih, b_hh):
        # Fold r/z components of b_hh into the batched input projection; the
        # n component stays inside the recurrence (multiplied by r).
        return b_ih + jnp.concatenate(
            [b_hh[:2 * H], jnp.zeros((H,), b_hh.dtype)])

    # ---- One-time host-side weight prep: transpose, pad, fuse -------------
    wih_all = jnp.concatenate(
        [pad_rows(pad_gate_cols(p['w_ih_f'].T), Dp),
         pad_rows(pad_gate_cols(p['w_ih_b'].T), Dp)], axis=1)      # (Dp, 6Hp)
    bgx_all = jnp.concatenate(
        [pad_gate_bias(fold_bias(p['b_ih_f'], p['b_hh_f'])),
         pad_gate_bias(fold_bias(p['b_ih_b'], p['b_hh_b']))]
    ).reshape(1, 6 * Hp)

    # Block-diagonal hh weight: one MXU dot per timestep covers both directions.
    whh_cat = jnp.zeros((2 * Hp, 6 * Hp), f32)
    whh_cat = whh_cat.at[:H, :3 * Hp].set(pad_gate_cols(p['w_hh_f'].T))
    whh_cat = whh_cat.at[Hp:Hp + H, 3 * Hp:].set(pad_gate_cols(p['w_hh_b'].T))

    bhhn_f = jnp.zeros((1, Hp), f32).at[0, :H].set(p['b_hh_f'][2 * H:])
    bhhn_b = jnp.zeros((1, Hp), f32).at[0, :H].set(p['b_hh_b'][2 * H:])

    wlin_t = p['w_lin'].T                                          # (2H, D)
    wlin_pad = jnp.zeros((2 * Hp, Dp), f32)
    wlin_pad = wlin_pad.at[:H, :D].set(wlin_t[:H])                 # fwd half
    wlin_pad = wlin_pad.at[Hp:Hp + H, :D].set(wlin_t[H:])          # bwd half
    blin_pad = jnp.zeros((1, Dp), f32).at[0, :D].set(p['b_lin'])

    x_pad = jnp.zeros((T, Bp, Dp), f32).at[:, :B, :D].set(x)

    args = (x_pad, wih_all, bgx_all, whh_cat, bhhn_f, bhhn_b,
            wlin_pad, blin_pad)

    # Explicit VMEM budget from actual padded residency; 48 MiB cap keeps
    # headroom on v7x's 64 MiB while trivially fitting v5e/v6e.
    arg_bytes = sum(int(a.size) * a.dtype.itemsize for a in args)
    scratch_bytes = 4 * T * Bp * (6 * Hp + 2 * Hp)
    out_bytes = 4 * T * Bp * Dp
    vmem_limit = int(min(48 << 20,
                         max(16 << 20,
                             2 * (arg_bytes + scratch_bytes + out_bytes))))

    out_pad = pl.pallas_call(
        ffn_kernel,
        out_shape=jax.ShapeDtypeStruct((T, Bp, Dp), jnp.float32),
        in_specs=[pl.BlockSpec(memory_space=pltpu.MemorySpace.VMEM)] * len(args),
        out_specs=pl.BlockSpec(memory_space=pltpu.MemorySpace.VMEM),
        scratch_shapes=[
            pltpu.VMEM((T, Bp, 6 * Hp), jnp.float32),  # input gates (fwd|bwd)
            pltpu.VMEM((T, Bp, 2 * Hp), jnp.float32),  # hidden states (fwd|bwd)
        ],
        compiler_params=pltpu.CompilerParams(vmem_limit_bytes=vmem_limit),
    )(*args)

    return out_pad[:, :B, :D]


def ffn_reference(x, p):
    """Pure-JAX reference mirroring torch.nn.GRU (gate order r, z, n)."""
    T, B, D = x.shape
    H = 2 * D

    def run_dir(w_ih, w_hh, b_ih, b_hh, reverse):
        xs = x[::-1] if reverse else x

        def step(h, xt):
            gx = xt @ w_ih.T + b_ih
            gh = h @ w_hh.T + b_hh
            r = jax.nn.sigmoid(gx[:, :H] + gh[:, :H])
            z = jax.nn.sigmoid(gx[:, H:2 * H] + gh[:, H:2 * H])
            n = jnp.tanh(gx[:, 2 * H:] + r * gh[:, 2 * H:])
            h_new = (1.0 - z) * n + z * h
            return h_new, h_new

        _, hs = jax.lax.scan(step, jnp.zeros((B, H), jnp.float32), xs)
        return hs[::-1] if reverse else hs

    hf = run_dir(p['w_ih_f'], p['w_hh_f'], p['b_ih_f'], p['b_hh_f'], False)
    hb = run_dir(p['w_ih_b'], p['w_hh_b'], p['b_ih_b'], p['b_hh_b'], True)
    y = jnp.concatenate([hf, hb], axis=-1)
    y = jnp.where(y > 0, y, 0.01 * y)
    return y @ p['w_lin'].T + p['b_lin']


def init_params(key, d_model):
    H = 2 * d_model
    k = 1.0 / jnp.sqrt(jnp.float32(H))
    ks = jax.random.split(key, 10)
    u = lambda kk, shape: jax.random.uniform(kk, shape, jnp.float32, -k, k)
    return {
        'w_ih_f': u(ks[0], (3 * H, d_model)),
        'w_hh_f': u(ks[1], (3 * H, H)),
        'b_ih_f': u(ks[2], (3 * H,)),
        'b_hh_f': u(ks[3], (3 * H,)),
        'w_ih_b': u(ks[4], (3 * H, d_model)),
        'w_hh_b': u(ks[5], (3 * H, H)),
        'b_ih_b': u(ks[6], (3 * H,)),
        'b_hh_b': u(ks[7], (3 * H,)),
        'w_lin': u(ks[8], (d_model, 2 * H)),
        'b_lin': u(ks[9], (d_model,)),
    }


if __name__ == "__main__":
    T, B, d_model = 8, 2, 16          # seq=8, batch=2, d_model=16 (H=32)
    key = jax.random.PRNGKey(0)
    kx, kp = jax.random.split(key)
    x = jax.random.normal(kx, (T, B, d_model), jnp.float32)
    params = init_params(kp, d_model)

    out = ffn_forward(x, params)
    out = jax.block_until_ready(out)

    ref = ffn_reference(x, params)
    assert out.shape == (T, B, d_model)
    assert jnp.allclose(out, ref, atol=1e-4, rtol=1e-4), (
        float(jnp.max(jnp.abs(out - ref))))

    print("KERNEL_OK")
</pallas_src>

<mosaic_0001>
module attributes {stable_mosaic.version = 11 : i64} {
  func.func @ffn_kernel(%arg0: memref<8x8x128xf32, #tpu.memory_space<vmem>>, %arg1: memref<128x768xf32, #tpu.memory_space<vmem>>, %arg2: memref<1x768xf32, #tpu.memory_space<vmem>>, %arg3: memref<256x768xf32, #tpu.memory_space<vmem>>, %arg4: memref<1x128xf32, #tpu.memory_space<vmem>>, %arg5: memref<1x128xf32, #tpu.memory_space<vmem>>, %arg6: memref<256x128xf32, #tpu.memory_space<vmem>>, %arg7: memref<1x128xf32, #tpu.memory_space<vmem>>, %arg8: memref<8x8x128xf32, #tpu.memory_space<vmem>>, %arg9: memref<8x8x768xf32, #tpu.memory_space<vmem>>, %arg10: memref<8x8x256xf32, #tpu.memory_space<vmem>>) attributes {dimension_semantics = [], scalar_prefetch = 0 : i64, scratch_operands = 2 : i64, tpu.core_type = #tpu.core_type<tc>} {
    %c0 = arith.constant 0 : index
    %c0_0 = arith.constant 0 : index
    %c0_1 = arith.constant 0 : index
    %0 = vector.load %arg0[%c0, %c0_0, %c0_1] : memref<8x8x128xf32, #tpu.memory_space<vmem>>, vector<8x8x128xf32>
    %1 = vector.shape_cast %0 : vector<8x8x128xf32> to vector<64x128xf32>
    %c0_2 = arith.constant 0 : index
    %c0_3 = arith.constant 0 : index
    %2 = vector.load %arg1[%c0_2, %c0_3] : memref<128x768xf32, #tpu.memory_space<vmem>>, vector<128x768xf32>
    %cst = arith.constant dense<0.000000e+00> : vector<64x768xf32>
    %3 = tpu.matmul %1, %2, %cst {dimension_numbers = #tpu.dot_dimension_numbers<[1], [0], [0], [1], [0, 0, 1, 1], [], []>} : vector<64x128xf32>, vector<128x768xf32>, vector<64x768xf32> -> vector<64x768xf32>
    %c0_4 = arith.constant 0 : index
    %c0_5 = arith.constant 0 : index
    %4 = vector.load %arg2[%c0_4, %c0_5] : memref<1x768xf32, #tpu.memory_space<vmem>>, vector<1x768xf32>
    %5 = vector.broadcast %4 : vector<1x768xf32> to vector<64x768xf32>
    %6 = arith.addf %3, %5 : vector<64x768xf32>
    %7 = vector.shape_cast %6 : vector<64x768xf32> to vector<8x8x768xf32>
    %c0_6 = arith.constant 0 : index
    %c0_7 = arith.constant 0 : index
    %c0_8 = arith.constant 0 : index
    %8 = vector.load %arg9[%c0_6, %c0_7, %c0_8] : memref<8x8x768xf32, #tpu.memory_space<vmem>>, vector<8x8x768xf32>
    tpu.vector_store %arg9[%c0_6, %c0_7, %c0_8], %7 {strides = array<i32>} : memref<8x8x768xf32, #tpu.memory_space<vmem>>, vector<8x8x768xf32>,
    %c0_9 = arith.constant 0 : index
    %c0_10 = arith.constant 0 : index
    %9 = vector.load %arg3[%c0_9, %c0_10] : memref<256x768xf32, #tpu.memory_space<vmem>>, vector<256x768xf32>
    %c0_11 = arith.constant 0 : index
    %c0_12 = arith.constant 0 : index
    %10 = vector.load %arg4[%c0_11, %c0_12] : memref<1x128xf32, #tpu.memory_space<vmem>>, vector<1x128xf32>
    %c0_13 = arith.constant 0 : index
    %c0_14 = arith.constant 0 : index
    %11 = vector.load %arg5[%c0_13, %c0_14] : memref<1x128xf32, #tpu.memory_space<vmem>>, vector<1x128xf32>
    %cst_15 = arith.constant 0.000000e+00 : f32
    %12 = vector.broadcast %cst_15 : f32 to vector<8x256xf32>
    %cst_16 = arith.constant dense<0.000000e+00> : vector<8x768xf32>
    %13 = tpu.matmul %12, %9, %cst_16 {dimension_numbers = #tpu.dot_dimension_numbers<[1], [0], [0], [1], [0, 0, 1, 1], [], []>} : vector<8x256xf32>, vector<256x768xf32>, vector<8x768xf32> -> vector<8x768xf32>
    %c0_17 = arith.constant 0 : index
    %c0_18 = arith.constant 0 : index
    %c0_19 = arith.constant 0 : index
    %14 = vector.load %arg9[%c0_17, %c0_18, %c0_19] : memref<8x8x768xf32, #tpu.memory_space<vmem>>, vector<1x8x384xf32>
    %15 = vector.shape_cast %14 : vector<1x8x384xf32> to vector<8x384xf32>
    %c7 = arith.constant 7 : index
    %c0_20 = arith.constant 0 : index
    %c384 = arith.constant 384 : index
    %16 = vector.load %arg9[%c7, %c0_20, %c384] : memref<8x8x768xf32, #tpu.memory_space<vmem>>, vector<1x8x384xf32>
    %17 = vector.shape_cast %16 : vector<1x8x384xf32> to vector<8x384xf32>
    %18 = vector.extract_strided_slice %13 {offsets = [0, 0], sizes = [8, 384], strides = [1, 1]} : vector<8x768xf32> to vector<8x384xf32>
    %19 = vector.extract_strided_slice %12 {offsets = [0, 0], sizes = [8, 128], strides = [1, 1]} : vector<8x256xf32> to vector<8x128xf32>
    %20 = vector.extract_strided_slice %15 {offsets = [0, 0], sizes = [8, 128], strides = [1, 1]} : vector<8x384xf32> to vector<8x128xf32>
    %21 = vector.extract_strided_slice %18 {offsets = [0, 0], sizes = [8, 128], strides = [1, 1]} : vector<8x384xf32> to vector<8x128xf32>
    %22 = arith.addf %20, %21 : vector<8x128xf32>
    %23 = arith.negf %22 : vector<8x128xf32>
    %24 = math.exp %23 : vector<8x128xf32>
    %cst_21 = arith.constant 1.000000e+00 : f32
    %25 = vector.broadcast %cst_21 : f32 to vector<8x128xf32>
    %26 = arith.addf %25, %24 : vector<8x128xf32>
    %27 = arith.divf %25, %26 : vector<8x128xf32>
    %28 = vector.extract_strided_slice %15 {offsets = [0, 128], sizes = [8, 128], strides = [1, 1]} : vector<8x384xf32> to vector<8x128xf32>
    %29 = vector.extract_strided_slice %18 {offsets = [0, 128], sizes = [8, 128], strides = [1, 1]} : vector<8x384xf32> to vector<8x128xf32>
    %30 = arith.addf %28, %29 : vector<8x128xf32>
    %31 = arith.negf %30 : vector<8x128xf32>
    %32 = math.exp %31 : vector<8x128xf32>
    %cst_22 = arith.constant 1.000000e+00 : f32
    %33 = vector.broadcast %cst_22 : f32 to vector<8x128xf32>
    %34 = arith.addf %33, %32 : vector<8x128xf32>
    %35 = arith.divf %33, %34 : vector<8x128xf32>
    %36 = vector.extract_strided_slice %15 {offsets = [0, 256], sizes = [8, 128], strides = [1, 1]} : vector<8x384xf32> to vector<8x128xf32>
    %37 = vector.extract_strided_slice %18 {offsets = [0, 256], sizes = [8, 128], strides = [1, 1]} : vector<8x384xf32> to vector<8x128xf32>
    %38 = vector.broadcast %10 : vector<1x128xf32> to vector<8x128xf32>
    %39 = arith.addf %37, %38 : vector<8x128xf32>
    %40 = arith.mulf %27, %39 : vector<8x128xf32>
    %41 = arith.addf %36, %40 : vector<8x128xf32>
    %42 = math.tanh %41 : vector<8x128xf32>
    %cst_23 = arith.constant 1.000000e+00 : f32
    %43 = vector.broadcast %cst_23 : f32 to vector<8x128xf32>
    %44 = arith.subf %43, %35 : vector<8x128xf32>
    %45 = arith.mulf %44, %42 : vector<8x128xf32>
    %46 = arith.mulf %35, %19 : vector<8x128xf32>
    %47 = arith.addf %45, %46 : vector<8x128xf32>
    %48 = vector.extract_strided_slice %13 {offsets = [0, 384], sizes = [8, 384], strides = [1, 1]} : vector<8x768xf32> to vector<8x384xf32>
    %49 = vector.extract_strided_slice %12 {offsets = [0, 128], sizes = [8, 128], strides = [1, 1]} : vector<8x256xf32> to vector<8x128xf32>
    %50 = vector.extract_strided_slice %17 {offsets = [0, 0], sizes = [8, 128], strides = [1, 1]} : vector<8x384xf32> to vector<8x128xf32>
    %51 = vector.extract_strided_slice %48 {offsets = [0, 0], sizes = [8, 128], strides = [1, 1]} : vector<8x384xf32> to vector<8x128xf32>
    %52 = arith.addf %50, %51 : vector<8x128xf32>
    %53 = arith.negf %52 : vector<8x128xf32>
    %54 = math.exp %53 : vector<8x128xf32>
    %cst_24 = arith.constant 1.000000e+00 : f32
    %55 = vector.broadcast %cst_24 : f32 to vector<8x128xf32>
    %56 = arith.addf %55, %54 : vector<8x128xf32>
    %57 = arith.divf %55, %56 : vector<8x128xf32>
    %58 = vector.extract_strided_slice %17 {offsets = [0, 128], sizes = [8, 128], strides = [1, 1]} : vector<8x384xf32> to vector<8x128xf32>
    %59 = vector.extract_strided_slice %48 {offsets = [0, 128], sizes = [8, 128], strides = [1, 1]} : vector<8x384xf32> to vector<8x128xf32>
    %60 = arith.addf %58, %59 : vector<8x128xf32>
    %61 = arith.negf %60 : vector<8x128xf32>
    %62 = math.exp %61 : vector<8x128xf32>
    %cst_25 = arith.constant 1.000000e+00 : f32
    %63 = vector.broadcast %cst_25 : f32 to vector<8x128xf32>
    %64 = arith.addf %63, %62 : vector<8x128xf32>
    %65 = arith.divf %63, %64 : vector<8x128xf32>
    %66 = vector.extract_strided_slice %17 {offsets = [0, 256], sizes = [8, 128], strides = [1, 1]} : vector<8x384xf32> to vector<8x128xf32>
    %67 = vector.extract_strided_slice %48 {offsets = [0, 256], sizes = [8, 128], strides = [1, 1]} : vector<8x384xf32> to vector<8x128xf32>
    %68 = vector.broadcast %11 : vector<1x128xf32> to vector<8x128xf32>
    %69 = arith.addf %67, %68 : vector<8x128xf32>
    %70 = arith.mulf %57, %69 : vector<8x128xf32>
    %71 = arith.addf %66, %70 : vector<8x128xf32>
    %72 = math.tanh %71 : vector<8x128xf32>
    %cst_26 = arith.constant 1.000000e+00 : f32
    %73 = vector.broadcast %cst_26 : f32 to vector<8x128xf32>
    %74 = arith.subf %73, %65 : vector<8x128xf32>
    %75 = arith.mulf %74, %72 : vector<8x128xf32>
    %76 = arith.mulf %65, %49 : vector<8x128xf32>
    %77 = arith.addf %75, %76 : vector<8x128xf32>
    %c0_27 = arith.constant 0 : index
    %c0_28 = arith.constant 0 : index
    %c0_29 = arith.constant 0 : index
    %78 = vector.load %arg10[%c0_27, %c0_28, %c0_29] : memref<8x8x256xf32, #tpu.memory_space<vmem>>, vector<1x8x128xf32>
    %79 = vector.shape_cast %78 : vector<1x8x128xf32> to vector<8x128xf32>
    %80 = vector.shape_cast %47 : vector<8x128xf32> to vector<1x8x128xf32>
    tpu.vector_store %arg10[%c0_27, %c0_28, %c0_29], %80 {strides = array<i32>} : memref<8x8x256xf32, #tpu.memory_space<vmem>>, vector<1x8x128xf32>,
    %c7_30 = arith.constant 7 : index
    %c0_31 = arith.constant 0 : index
    %c128 = arith.constant 128 : index
    %81 = vector.load %arg10[%c7_30, %c0_31, %c128] : memref<8x8x256xf32, #tpu.memory_space<vmem>>, vector<1x8x128xf32>
    %82 = vector.shape_cast %81 : vector<1x8x128xf32> to vector<8x128xf32>
    %83 = vector.shape_cast %77 : vector<8x128xf32> to vector<1x8x128xf32>
    tpu.vector_store %arg10[%c7_30, %c0_31, %c128], %83 {strides = array<i32>} : memref<8x8x256xf32, #tpu.memory_space<vmem>>, vector<1x8x128xf32>,
    %84 = tpu.concatenate %47, %77 in 1 : vector<8x128xf32>, vector<8x128xf32> -> vector<8x256xf32>
    %cst_32 = arith.constant dense<0.000000e+00> : vector<8x768xf32>
    %85 = tpu.matmul %84, %9, %cst_32 {dimension_numbers = #tpu.dot_dimension_numbers<[1], [0], [0], [1], [0, 0, 1, 1], [], []>} : vector<8x256xf32>, vector<256x768xf32>, vector<8x768xf32> -> vector<8x768xf32>
    %c1 = arith.constant 1 : index
    %c0_33 = arith.constant 0 : index
    %c0_34 = arith.constant 0 : index
    %86 = vector.load %arg9[%c1, %c0_33, %c0_34] : memref<8x8x768xf32, #tpu.memory_space<vmem>>, vector<1x8x384xf32>
    %87 = vector.shape_cast %86 : vector<1x8x384xf32> to vector<8x384xf32>
    %c6 = arith.constant 6 : index
    %c0_35 = arith.constant 0 : index
    %c384_36 = arith.constant 384 : index
    %88 = vector.load %arg9[%c6, %c0_35, %c384_36] : memref<8x8x768xf32, #tpu.memory_space<vmem>>, vector<1x8x384xf32>
    %89 = vector.shape_cast %88 : vector<1x8x384xf32> to vector<8x384xf32>
    %90 = vector.extract_strided_slice %85 {offsets = [0, 0], sizes = [8, 384], strides = [1, 1]} : vector<8x768xf32> to vector<8x384xf32>
    %91 = vector.extract_strided_slice %84 {offsets = [0, 0], sizes = [8, 128], strides = [1, 1]} : vector<8x256xf32> to vector<8x128xf32>
    %92 = vector.extract_strided_slice %87 {offsets = [0, 0], sizes = [8, 128], strides = [1, 1]} : vector<8x384xf32> to vector<8x128xf32>
    %93 = vector.extract_strided_slice %90 {offsets = [0, 0], sizes = [8, 128], strides = [1, 1]} : vector<8x384xf32> to vector<8x128xf32>
    %94 = arith.addf %92, %93 : vector<8x128xf32>
    %95 = arith.negf %94 : vector<8x128xf32>
    %96 = math.exp %95 : vector<8x128xf32>
    %cst_37 = arith.constant 1.000000e+00 : f32
    %97 = vector.broadcast %cst_37 : f32 to vector<8x128xf32>
    %98 = arith.addf %97, %96 : vector<8x128xf32>
    %99 = arith.divf %97, %98 : vector<8x128xf32>
    %100 = vector.extract_strided_slice %87 {offsets = [0, 128], sizes = [8, 128], strides = [1, 1]} : vector<8x384xf32> to vector<8x128xf32>
    %101 = vector.extract_strided_slice %90 {offsets = [0, 128], sizes = [8, 128], strides = [1, 1]} : vector<8x384xf32> to vector<8x128xf32>
    %102 = arith.addf %100, %101 : vector<8x128xf32>
    %103 = arith.negf %102 : vector<8x128xf32>
    %104 = math.exp %103 : vector<8x128xf32>
    %cst_38 = arith.constant 1.000000e+00 : f32
    %105 = vector.broadcast %cst_38 : f32 to vector<8x128xf32>
    %106 = arith.addf %105, %104 : vector<8x128xf32>
    %107 = arith.divf %105, %106 : vector<8x128xf32>
    %108 = vector.extract_strided_slice %87 {offsets = [0, 256], sizes = [8, 128], strides = [1, 1]} : vector<8x384xf32> to vector<8x128xf32>
    %109 = vector.extract_strided_slice %90 {offsets = [0, 256], sizes = [8, 128], strides = [1, 1]} : vector<8x384xf32> to vector<8x128xf32>
    %110 = vector.broadcast %10 : vector<1x128xf32> to vector<8x128xf32>
    %111 = arith.addf %109, %110 : vector<8x128xf32>
    %112 = arith.mulf %99, %111 : vector<8x128xf32>
    %113 = arith.addf %108, %112 : vector<8x128xf32>
    %114 = math.tanh %113 : vector<8x128xf32>
    %cst_39 = arith.constant 1.000000e+00 : f32
    %115 = vector.broadcast %cst_39 : f32 to vector<8x128xf32>
    %116 = arith.subf %115, %107 : vector<8x128xf32>
    %117 = arith.mulf %116, %114 : vector<8x128xf32>
    %118 = arith.mulf %107, %91 : vector<8x128xf32>
    %119 = arith.addf %117, %118 : vector<8x128xf32>
    %120 = vector.extract_strided_slice %85 {offsets = [0, 384], sizes = [8, 384], strides = [1, 1]} : vector<8x768xf32> to vector<8x384xf32>
    %121 = vector.extract_strided_slice %84 {offsets = [0, 128], sizes = [8, 128], strides = [1, 1]} : vector<8x256xf32> to vector<8x128xf32>
    %122 = vector.extract_strided_slice %89 {offsets = [0, 0], sizes = [8, 128], strides = [1, 1]} : vector<8x384xf32> to vector<8x128xf32>
    %123 = vector.extract_strided_slice %120 {offsets = [0, 0], sizes = [8, 128], strides = [1, 1]} : vector<8x384xf32> to vector<8x128xf32>
    %124 = arith.addf %122, %123 : vector<8x128xf32>
    %125 = arith.negf %124 : vector<8x128xf32>
    %126 = math.exp %125 : vector<8x128xf32>
    %cst_40 = arith.constant 1.000000e+00 : f32
    %127 = vector.broadcast %cst_40 : f32 to vector<8x128xf32>
    %128 = arith.addf %127, %126 : vector<8x128xf32>
    %129 = arith.divf %127, %128 : vector<8x128xf32>
    %130 = vector.extract_strided_slice %89 {offsets = [0, 128], sizes = [8, 128], strides = [1, 1]} : vector<8x384xf32> to vector<8x128xf32>
    %131 = vector.extract_strided_slice %120 {offsets = [0, 128], sizes = [8, 128], strides = [1, 1]} : vector<8x384xf32> to vector<8x128xf32>
    %132 = arith.addf %130, %131 : vector<8x128xf32>
    %133 = arith.negf %132 : vector<8x128xf32>
    %134 = math.exp %133 : vector<8x128xf32>
    %cst_41 = arith.constant 1.000000e+00 : f32
    %135 = vector.broadcast %cst_41 : f32 to vector<8x128xf32>
    %136 = arith.addf %135, %134 : vector<8x128xf32>
    %137 = arith.divf %135, %136 : vector<8x128xf32>
    %138 = vector.extract_strided_slice %89 {offsets = [0, 256], sizes = [8, 128], strides = [1, 1]} : vector<8x384xf32> to vector<8x128xf32>
    %139 = vector.extract_strided_slice %120 {offsets = [0, 256], sizes = [8, 128], strides = [1, 1]} : vector<8x384xf32> to vector<8x128xf32>
    %140 = vector.broadcast %11 : vector<1x128xf32> to vector<8x128xf32>
    %141 = arith.addf %139, %140 : vector<8x128xf32>
    %142 = arith.mulf %129, %141 : vector<8x128xf32>
    %143 = arith.addf %138, %142 : vector<8x128xf32>
    %144 = math.tanh %143 : vector<8x128xf32>
    %cst_42 = arith.constant 1.000000e+00 : f32
    %145 = vector.broadcast %cst_42 : f32 to vector<8x128xf32>
    %146 = arith.subf %145, %137 : vector<8x128xf32>
    %147 = arith.mulf %146, %144 : vector<8x128xf32>
    %148 = arith.mulf %137, %121 : vector<8x128xf32>
    %149 = arith.addf %147, %148 : vector<8x128xf32>
    %c1_43 = arith.constant 1 : index
    %c0_44 = arith.constant 0 : index
    %c0_45 = arith.constant 0 : index
    %150 = vector.load %arg10[%c1_43, %c0_44, %c0_45] : memref<8x8x256xf32, #tpu.memory_space<vmem>>, vector<1x8x128xf32>
    %151 = vector.shape_cast %150 : vector<1x8x128xf32> to vector<8x128xf32>
    %152 = vector.shape_cast %119 : vector<8x128xf32> to vector<1x8x128xf32>
    tpu.vector_store %arg10[%c1_43, %c0_44, %c0_45], %152 {strides = array<i32>} : memref<8x8x256xf32, #tpu.memory_space<vmem>>, vector<1x8x128xf32>,
    %c6_46 = arith.constant 6 : index
    %c0_47 = arith.constant 0 : index
    %c128_48 = arith.constant 128 : index
    %153 = vector.load %arg10[%c6_46, %c0_47, %c128_48] : memref<8x8x256xf32, #tpu.memory_space<vmem>>, vector<1x8x128xf32>
    %154 = vector.shape_cast %153 : vector<1x8x128xf32> to vector<8x128xf32>
    %155 = vector.shape_cast %149 : vector<8x128xf32> to vector<1x8x128xf32>
    tpu.vector_store %arg10[%c6_46, %c0_47, %c128_48], %155 {strides = array<i32>} : memref<8x8x256xf32, #tpu.memory_space<vmem>>, vector<1x8x128xf32>,
    %156 = tpu.concatenate %119, %149 in 1 : vector<8x128xf32>, vector<8x128xf32> -> vector<8x256xf32>
    %cst_49 = arith.constant dense<0.000000e+00> : vector<8x768xf32>
    %157 = tpu.matmul %156, %9, %cst_49 {dimension_numbers = #tpu.dot_dimension_numbers<[1], [0], [0], [1], [0, 0, 1, 1], [], []>} : vector<8x256xf32>, vector<256x768xf32>, vector<8x768xf32> -> vector<8x768xf32>
    %c2 = arith.constant 2 : index
    %c0_50 = arith.constant 0 : index
    %c0_51 = arith.constant 0 : index
    %158 = vector.load %arg9[%c2, %c0_50, %c0_51] : memref<8x8x768xf32, #tpu.memory_space<vmem>>, vector<1x8x384xf32>
    %159 = vector.shape_cast %158 : vector<1x8x384xf32> to vector<8x384xf32>
    %c5 = arith.constant 5 : index
    %c0_52 = arith.constant 0 : index
    %c384_53 = arith.constant 384 : index
    %160 = vector.load %arg9[%c5, %c0_52, %c384_53] : memref<8x8x768xf32, #tpu.memory_space<vmem>>, vector<1x8x384xf32>
    %161 = vector.shape_cast %160 : vector<1x8x384xf32> to vector<8x384xf32>
    %162 = vector.extract_strided_slice %157 {offsets = [0, 0], sizes = [8, 384], strides = [1, 1]} : vector<8x768xf32> to vector<8x384xf32>
    %163 = vector.extract_strided_slice %156 {offsets = [0, 0], sizes = [8, 128], strides = [1, 1]} : vector<8x256xf32> to vector<8x128xf32>
    %164 = vector.extract_strided_slice %159 {offsets = [0, 0], sizes = [8, 128], strides = [1, 1]} : vector<8x384xf32> to vector<8x128xf32>
    %165 = vector.extract_strided_slice %162 {offsets = [0, 0], sizes = [8, 128], strides = [1, 1]} : vector<8x384xf32> to vector<8x128xf32>
    %166 = arith.addf %164, %165 : vector<8x128xf32>
    %167 = arith.negf %166 : vector<8x128xf32>
    %168 = math.exp %167 : vector<8x128xf32>
    %cst_54 = arith.constant 1.000000e+00 : f32
    %169 = vector.broadcast %cst_54 : f32 to vector<8x128xf32>
    %170 = arith.addf %169, %168 : vector<8x128xf32>
    %171 = arith.divf %169, %170 : vector<8x128xf32>
    %172 = vector.extract_strided_slice %159 {offsets = [0, 128], sizes = [8, 128], strides = [1, 1]} : vector<8x384xf32> to vector<8x128xf32>
    %173 = vector.extract_strided_slice %162 {offsets = [0, 128], sizes = [8, 128], strides = [1, 1]} : vector<8x384xf32> to vector<8x128xf32>
    %174 = arith.addf %172, %173 : vector<8x128xf32>
    %175 = arith.negf %174 : vector<8x128xf32>
    %176 = math.exp %175 : vector<8x128xf32>
    %cst_55 = arith.constant 1.000000e+00 : f32
    %177 = vector.broadcast %cst_55 : f32 to vector<8x128xf32>
    %178 = arith.addf %177, %176 : vector<8x128xf32>
    %179 = arith.divf %177, %178 : vector<8x128xf32>
    %180 = vector.extract_strided_slice %159 {offsets = [0, 256], sizes = [8, 128], strides = [1, 1]} : vector<8x384xf32> to vector<8x128xf32>
    %181 = vector.extract_strided_slice %162 {offsets = [0, 256], sizes = [8, 128], strides = [1, 1]} : vector<8x384xf32> to vector<8x128xf32>
    %182 = vector.broadcast %10 : vector<1x128xf32> to vector<8x128xf32>
    %183 = arith.addf %181, %182 : vector<8x128xf32>
    %184 = arith.mulf %171, %183 : vector<8x128xf32>
    %185 = arith.addf %180, %184 : vector<8x128xf32>
    %186 = math.tanh %185 : vector<8x128xf32>
    %cst_56 = arith.constant 1.000000e+00 : f32
    %187 = vector.broadcast %cst_56 : f32 to vector<8x128xf32>
    %188 = arith.subf %187, %179 : vector<8x128xf32>
    %189 = arith.mulf %188, %186 : vector<8x128xf32>
    %190 = arith.mulf %179, %163 : vector<8x128xf32>
    %191 = arith.addf %189, %190 : vector<8x128xf32>
    %192 = vector.extract_strided_slice %157 {offsets = [0, 384], sizes = [8, 384], strides = [1, 1]} : vector<8x768xf32> to vector<8x384xf32>
    %193 = vector.extract_strided_slice %156 {offsets = [0, 128], sizes = [8, 128], strides = [1, 1]} : vector<8x256xf32> to vector<8x128xf32>
    %194 = vector.extract_strided_slice %161 {offsets = [0, 0], sizes = [8, 128], strides = [1, 1]} : vector<8x384xf32> to vector<8x128xf32>
    %195 = vector.extract_strided_slice %192 {offsets = [0, 0], sizes = [8, 128], strides = [1, 1]} : vector<8x384xf32> to vector<8x128xf32>
    %196 = arith.addf %194, %195 : vector<8x128xf32>
    %197 = arith.negf %196 : vector<8x128xf32>
    %198 = math.exp %197 : vector<8x128xf32>
    %cst_57 = arith.constant 1.000000e+00 : f32
    %199 = vector.broadcast %cst_57 : f32 to vector<8x128xf32>
    %200 = arith.addf %199, %198 : vector<8x128xf32>
    %201 = arith.divf %199, %200 : vector<8x128xf32>
    %202 = vector.extract_strided_slice %161 {offsets = [0, 128], sizes = [8, 128], strides = [1, 1]} : vector<8x384xf32> to vector<8x128xf32>
    %203 = vector.extract_strided_slice %192 {offsets = [0, 128], sizes = [8, 128], strides = [1, 1]} : vector<8x384xf32> to vector<8x128xf32>
    %204 = arith.addf %202, %203 : vector<8x128xf32>
    %205 = arith.negf %204 : vector<8x128xf32>
    %206 = math.exp %205 : vector<8x128xf32>
    %cst_58 = arith.constant 1.000000e+00 : f32
    %207 = vector.broadcast %cst_58 : f32 to vector<8x128xf32>
    %208 = arith.addf %207, %206 : vector<8x128xf32>
    %209 = arith.divf %207, %208 : vector<8x128xf32>
    %210 = vector.extract_strided_slice %161 {offsets = [0, 256], sizes = [8, 128], strides = [1, 1]} : vector<8x384xf32> to vector<8x128xf32>
    %211 = vector.extract_strided_slice %192 {offsets = [0, 256], sizes = [8, 128], strides = [1, 1]} : vector<8x384xf32> to vector<8x128xf32>
    %212 = vector.broadcast %11 : vector<1x128xf32> to vector<8x128xf32>
    %213 = arith.addf %211, %212 : vector<8x128xf32>
    %214 = arith.mulf %201, %213 : vector<8x128xf32>
    %215 = arith.addf %210, %214 : vector<8x128xf32>
    %216 = math.tanh %215 : vector<8x128xf32>
    %cst_59 = arith.constant 1.000000e+00 : f32
    %217 = vector.broadcast %cst_59 : f32 to vector<8x128xf32>
    %218 = arith.subf %217, %209 : vector<8x128xf32>
    %219 = arith.mulf %218, %216 : vector<8x128xf32>
    %220 = arith.mulf %209, %193 : vector<8x128xf32>
    %221 = arith.addf %219, %220 : vector<8x128xf32>
    %c2_60 = arith.constant 2 : index
    %c0_61 = arith.constant 0 : index
    %c0_62 = arith.constant 0 : index
    %222 = vector.load %arg10[%c2_60, %c0_61, %c0_62] : memref<8x8x256xf32, #tpu.memory_space<vmem>>, vector<1x8x128xf32>
    %223 = vector.shape_cast %222 : vector<1x8x128xf32> to vector<8x128xf32>
    %224 = vector.shape_cast %191 : vector<8x128xf32> to vector<1x8x128xf32>
    tpu.vector_store %arg10[%c2_60, %c0_61, %c0_62], %224 {strides = array<i32>} : memref<8x8x256xf32, #tpu.memory_space<vmem>>, vector<1x8x128xf32>,
    %c5_63 = arith.constant 5 : index
    %c0_64 = arith.constant 0 : index
    %c128_65 = arith.constant 128 : index
    %225 = vector.load %arg10[%c5_63, %c0_64, %c128_65] : memref<8x8x256xf32, #tpu.memory_space<vmem>>, vector<1x8x128xf32>
    %226 = vector.shape_cast %225 : vector<1x8x128xf32> to vector<8x128xf32>
    %227 = vector.shape_cast %221 : vector<8x128xf32> to vector<1x8x128xf32>
    tpu.vector_store %arg10[%c5_63, %c0_64, %c128_65], %227 {strides = array<i32>} : memref<8x8x256xf32, #tpu.memory_space<vmem>>, vector<1x8x128xf32>,
    %228 = tpu.concatenate %191, %221 in 1 : vector<8x128xf32>, vector<8x128xf32> -> vector<8x256xf32>
    %cst_66 = arith.constant dense<0.000000e+00> : vector<8x768xf32>
    %229 = tpu.matmul %228, %9, %cst_66 {dimension_numbers = #tpu.dot_dimension_numbers<[1], [0], [0], [1], [0, 0, 1, 1], [], []>} : vector<8x256xf32>, vector<256x768xf32>, vector<8x768xf32> -> vector<8x768xf32>
    %c3 = arith.constant 3 : index
    %c0_67 = arith.constant 0 : index
    %c0_68 = arith.constant 0 : index
    %230 = vector.load %arg9[%c3, %c0_67, %c0_68] : memref<8x8x768xf32, #tpu.memory_space<vmem>>, vector<1x8x384xf32>
    %231 = vector.shape_cast %230 : vector<1x8x384xf32> to vector<8x384xf32>
    %c4 = arith.constant 4 : index
    %c0_69 = arith.constant 0 : index
    %c384_70 = arith.constant 384 : index
    %232 = vector.load %arg9[%c4, %c0_69, %c384_70] : memref<8x8x768xf32, #tpu.memory_space<vmem>>, vector<1x8x384xf32>
    %233 = vector.shape_cast %232 : vector<1x8x384xf32> to vector<8x384xf32>
    %234 = vector.extract_strided_slice %229 {offsets = [0, 0], sizes = [8, 384], strides = [1, 1]} : vector<8x768xf32> to vector<8x384xf32>
    %235 = vector.extract_strided_slice %228 {offsets = [0, 0], sizes = [8, 128], strides = [1, 1]} : vector<8x256xf32> to vector<8x128xf32>
    %236 = vector.extract_strided_slice %231 {offsets = [0, 0], sizes = [8, 128], strides = [1, 1]} : vector<8x384xf32> to vector<8x128xf32>
    %237 = vector.extract_strided_slice %234 {offsets = [0, 0], sizes = [8, 128], strides = [1, 1]} : vector<8x384xf32> to vector<8x128xf32>
    %238 = arith.addf %236, %237 : vector<8x128xf32>
    %239 = arith.negf %238 : vector<8x128xf32>
    %240 = math.exp %239 : vector<8x128xf32>
    %cst_71 = arith.constant 1.000000e+00 : f32
    %241 = vector.broadcast %cst_71 : f32 to vector<8x128xf32>
    %242 = arith.addf %241, %240 : vector<8x128xf32>
    %243 = arith.divf %241, %242 : vector<8x128xf32>
    %244 = vector.extract_strided_slice %231 {offsets = [0, 128], sizes = [8, 128], strides = [1, 1]} : vector<8x384xf32> to vector<8x128xf32>
    %245 = vector.extract_strided_slice %234 {offsets = [0, 128], sizes = [8, 128], strides = [1, 1]} : vector<8x384xf32> to vector<8x128xf32>
    %246 = arith.addf %244, %245 : vector<8x128xf32>
    %247 = arith.negf %246 : vector<8x128xf32>
    %248 = math.exp %247 : vector<8x128xf32>
    %cst_72 = arith.constant 1.000000e+00 : f32
    %249 = vector.broadcast %cst_72 : f32 to vector<8x128xf32>
    %250 = arith.addf %249, %248 : vector<8x128xf32>
    %251 = arith.divf %249, %250 : vector<8x128xf32>
    %252 = vector.extract_strided_slice %231 {offsets = [0, 256], sizes = [8, 128], strides = [1, 1]} : vector<8x384xf32> to vector<8x128xf32>
    %253 = vector.extract_strided_slice %234 {offsets = [0, 256], sizes = [8, 128], strides = [1, 1]} : vector<8x384xf32> to vector<8x128xf32>
    %254 = vector.broadcast %10 : vector<1x128xf32> to vector<8x128xf32>
    %255 = arith.addf %253, %254 : vector<8x128xf32>
    %256 = arith.mulf %243, %255 : vector<8x128xf32>
    %257 = arith.addf %252, %256 : vector<8x128xf32>
    %258 = math.tanh %257 : vector<8x128xf32>
    %cst_73 = arith.constant 1.000000e+00 : f32
    %259 = vector.broadcast %cst_73 : f32 to vector<8x128xf32>
    %260 = arith.subf %259, %251 : vector<8x128xf32>
    %261 = arith.mulf %260, %258 : vector<8x128xf32>
    %262 = arith.mulf %251, %235 : vector<8x128xf32>
    %263 = arith.addf %261, %262 : vector<8x128xf32>
    %264 = vector.extract_strided_slice %229 {offsets = [0, 384], sizes = [8, 384], strides = [1, 1]} : vector<8x768xf32> to vector<8x384xf32>
    %265 = vector.extract_strided_slice %228 {offsets = [0, 128], sizes = [8, 128], strides = [1, 1]} : vector<8x256xf32> to vector<8x128xf32>
    %266 = vector.extract_strided_slice %233 {offsets = [0, 0], sizes = [8, 128], strides = [1, 1]} : vector<8x384xf32> to vector<8x128xf32>
    %267 = vector.extract_strided_slice %264 {offsets = [0, 0], sizes = [8, 128], strides = [1, 1]} : vector<8x384xf32> to vector<8x128xf32>
    %268 = arith.addf %266, %267 : vector<8x128xf32>
    %269 = arith.negf %268 : vector<8x128xf32>
    %270 = math.exp %269 : vector<8x128xf32>
    %cst_74 = arith.constant 1.000000e+00 : f32
    %271 = vector.broadcast %cst_74 : f32 to vector<8x128xf32>
    %272 = arith.addf %271, %270 : vector<8x128xf32>
    %273 = arith.divf %271, %272 : vector<8x128xf32>
    %274 = vector.extract_strided_slice %233 {offsets = [0, 128], sizes = [8, 128], strides = [1, 1]} : vector<8x384xf32> to vector<8x128xf32>
    %275 = vector.extract_strided_slice %264 {offsets = [0, 128], sizes = [8, 128], strides = [1, 1]} : vector<8x384xf32> to vector<8x128xf32>
    %276 = arith.addf %274, %275 : vector<8x128xf32>
    %277 = arith.negf %276 : vector<8x128xf32>
    %278 = math.exp %277 : vector<8x128xf32>
    %cst_75 = arith.constant 1.000000e+00 : f32
    %279 = vector.broadcast %cst_75 : f32 to vector<8x128xf32>
    %280 = arith.addf %279, %278 : vector<8x128xf32>
    %281 = arith.divf %279, %280 : vector<8x128xf32>
    %282 = vector.extract_strided_slice %233 {offsets = [0, 256], sizes = [8, 128], strides = [1, 1]} : vector<8x384xf32> to vector<8x128xf32>
    %283 = vector.extract_strided_slice %264 {offsets = [0, 256], sizes = [8, 128], strides = [1, 1]} : vector<8x384xf32> to vector<8x128xf32>
    %284 = vector.broadcast %11 : vector<1x128xf32> to vector<8x128xf32>
    %285 = arith.addf %283, %284 : vector<8x128xf32>
    %286 = arith.mulf %273, %285 : vector<8x128xf32>
    %287 = arith.addf %282, %286 : vector<8x128xf32>
    %288 = math.tanh %287 : vector<8x128xf32>
    %cst_76 = arith.constant 1.000000e+00 : f32
    %289 = vector.broadcast %cst_76 : f32 to vector<8x128xf32>
    %290 = arith.subf %289, %281 : vector<8x128xf32>
    %291 = arith.mulf %290, %288 : vector<8x128xf32>
    %292 = arith.mulf %281, %265 : vector<8x128xf32>
    %293 = arith.addf %291, %292 : vector<8x128xf32>
    %c3_77 = arith.constant 3 : index
    %c0_78 = arith.constant 0 : index
    %c0_79 = arith.constant 0 : index
    %294 = vector.load %arg10[%c3_77, %c0_78, %c0_79] : memref<8x8x256xf32, #tpu.memory_space<vmem>>, vector<1x8x128xf32>
    %295 = vector.shape_cast %294 : vector<1x8x128xf32> to vector<8x128xf32>
    %296 = vector.shape_cast %263 : vector<8x128xf32> to vector<1x8x128xf32>
    tpu.vector_store %arg10[%c3_77, %c0_78, %c0_79], %296 {strides = array<i32>} : memref<8x8x256xf32, #tpu.memory_space<vmem>>, vector<1x8x128xf32>,
    %c4_80 = arith.constant 4 : index
    %c0_81 = arith.constant 0 : index
    %c128_82 = arith.constant 128 : index
    %297 = vector.load %arg10[%c4_80, %c0_81, %c128_82] : memref<8x8x256xf32, #tpu.memory_space<vmem>>, vector<1x8x128xf32>
    %298 = vector.shape_cast %297 : vector<1x8x128xf32> to vector<8x128xf32>
    %299 = vector.shape_cast %293 : vector<8x128xf32> to vector<1x8x128xf32>
    tpu.vector_store %arg10[%c4_80, %c0_81, %c128_82], %299 {strides = array<i32>} : memref<8x8x256xf32, #tpu.memory_space<vmem>>, vector<1x8x128xf32>,
    %300 = tpu.concatenate %263, %293 in 1 : vector<8x128xf32>, vector<8x128xf32> -> vector<8x256xf32>
    %cst_83 = arith.constant dense<0.000000e+00> : vector<8x768xf32>
    %301 = tpu.matmul %300, %9, %cst_83 {dimension_numbers = #tpu.dot_dimension_numbers<[1], [0], [0], [1], [0, 0, 1, 1], [], []>} : vector<8x256xf32>, vector<256x768xf32>, vector<8x768xf32> -> vector<8x768xf32>
    %c4_84 = arith.constant 4 : index
    %c0_85 = arith.constant 0 : index
    %c0_86 = arith.constant 0 : index
    %302 = vector.load %arg9[%c4_84, %c0_85, %c0_86] : memref<8x8x768xf32, #tpu.memory_space<vmem>>, vector<1x8x384xf32>
    %303 = vector.shape_cast %302 : vector<1x8x384xf32> to vector<8x384xf32>
    %c3_87 = arith.constant 3 : index
    %c0_88 = arith.constant 0 : index
    %c384_89 = arith.constant 384 : index
    %304 = vector.load %arg9[%c3_87, %c0_88, %c384_89] : memref<8x8x768xf32, #tpu.memory_space<vmem>>, vector<1x8x384xf32>
    %305 = vector.shape_cast %304 : vector<1x8x384xf32> to vector<8x384xf32>
    %306 = vector.extract_strided_slice %301 {offsets = [0, 0], sizes = [8, 384], strides = [1, 1]} : vector<8x768xf32> to vector<8x384xf32>
    %307 = vector.extract_strided_slice %300 {offsets = [0, 0], sizes = [8, 128], strides = [1, 1]} : vector<8x256xf32> to vector<8x128xf32>
    %308 = vector.extract_strided_slice %303 {offsets = [0, 0], sizes = [8, 128], strides = [1, 1]} : vector<8x384xf32> to vector<8x128xf32>
    %309 = vector.extract_strided_slice %306 {offsets = [0, 0], sizes = [8, 128], strides = [1, 1]} : vector<8x384xf32> to vector<8x128xf32>
    %310 = arith.addf %308, %309 : vector<8x128xf32>
    %311 = arith.negf %310 : vector<8x128xf32>
    %312 = math.exp %311 : vector<8x128xf32>
    %cst_90 = arith.constant 1.000000e+00 : f32
    %313 = vector.broadcast %cst_90 : f32 to vector<8x128xf32>
    %314 = arith.addf %313, %312 : vector<8x128xf32>
    %315 = arith.divf %313, %314 : vector<8x128xf32>
    %316 = vector.extract_strided_slice %303 {offsets = [0, 128], sizes = [8, 128], strides = [1, 1]} : vector<8x384xf32> to vector<8x128xf32>
    %317 = vector.extract_strided_slice %306 {offsets = [0, 128], sizes = [8, 128], strides = [1, 1]} : vector<8x384xf32> to vector<8x128xf32>
    %318 = arith.addf %316, %317 : vector<8x128xf32>
    %319 = arith.negf %318 : vector<8x128xf32>
    %320 = math.exp %319 : vector<8x128xf32>
    %cst_91 = arith.constant 1.000000e+00 : f32
    %321 = vector.broadcast %cst_91 : f32 to vector<8x128xf32>
    %322 = arith.addf %321, %320 : vector<8x128xf32>
    %323 = arith.divf %321, %322 : vector<8x128xf32>
    %324 = vector.extract_strided_slice %303 {offsets = [0, 256], sizes = [8, 128], strides = [1, 1]} : vector<8x384xf32> to vector<8x128xf32>
    %325 = vector.extract_strided_slice %306 {offsets = [0, 256], sizes = [8, 128], strides = [1, 1]} : vector<8x384xf32> to vector<8x128xf32>
    %326 = vector.broadcast %10 : vector<1x128xf32> to vector<8x128xf32>
    %327 = arith.addf %325, %326 : vector<8x128xf32>
    %328 = arith.mulf %315, %327 : vector<8x128xf32>
    %329 = arith.addf %324, %328 : vector<8x128xf32>
    %330 = math.tanh %329 : vector<8x128xf32>
    %cst_92 = arith.constant 1.000000e+00 : f32
    %331 = vector.broadcast %cst_92 : f32 to vector<8x128xf32>
    %332 = arith.subf %331, %323 : vector<8x128xf32>
    %333 = arith.mulf %332, %330 : vector<8x128xf32>
    %334 = arith.mulf %323, %307 : vector<8x128xf32>
    %335 = arith.addf %333, %334 : vector<8x128xf32>
    %336 = vector.extract_strided_slice %301 {offsets = [0, 384], sizes = [8, 384], strides = [1, 1]} : vector<8x768xf32> to vector<8x384xf32>
    %337 = vector.extract_strided_slice %300 {offsets = [0, 128], sizes = [8, 128], strides = [1, 1]} : vector<8x256xf32> to vector<8x128xf32>
    %338 = vector.extract_strided_slice %305 {offsets = [0, 0], sizes = [8, 128], strides = [1, 1]} : vector<8x384xf32> to vector<8x128xf32>
    %339 = vector.extract_strided_slice %336 {offsets = [0, 0], sizes = [8, 128], strides = [1, 1]} : vector<8x384xf32> to vector<8x128xf32>
    %340 = arith.addf %338, %339 : vector<8x128xf32>
    %341 = arith.negf %340 : vector<8x128xf32>
    %342 = math.exp %341 : vector<8x128xf32>
    %cst_93 = arith.constant 1.000000e+00 : f32
    %343 = vector.broadcast %cst_93 : f32 to vector<8x128xf32>
    %344 = arith.addf %343, %342 : vector<8x128xf32>
    %345 = arith.divf %343, %344 : vector<8x128xf32>
    %346 = vector.extract_strided_slice %305 {offsets = [0, 128], sizes = [8, 128], strides = [1, 1]} : vector<8x384xf32> to vector<8x128xf32>
    %347 = vector.extract_strided_slice %336 {offsets = [0, 128], sizes = [8, 128], strides = [1, 1]} : vector<8x384xf32> to vector<8x128xf32>
    %348 = arith.addf %346, %347 : vector<8x128xf32>
    %349 = arith.negf %348 : vector<8x128xf32>
    %350 = math.exp %349 : vector<8x128xf32>
    %cst_94 = arith.constant 1.000000e+00 : f32
    %351 = vector.broadcast %cst_94 : f32 to vector<8x128xf32>
    %352 = arith.addf %351, %350 : vector<8x128xf32>
    %353 = arith.divf %351, %352 : vector<8x128xf32>
    %354 = vector.extract_strided_slice %305 {offsets = [0, 256], sizes = [8, 128], strides = [1, 1]} : vector<8x384xf32> to vector<8x128xf32>
    %355 = vector.extract_strided_slice %336 {offsets = [0, 256], sizes = [8, 128], strides = [1, 1]} : vector<8x384xf32> to vector<8x128xf32>
    %356 = vector.broadcast %11 : vector<1x128xf32> to vector<8x128xf32>
    %357 = arith.addf %355, %356 : vector<8x128xf32>
    %358 = arith.mulf %345, %357 : vector<8x128xf32>
    %359 = arith.addf %354, %358 : vector<8x128xf32>
    %360 = math.tanh %359 : vector<8x128xf32>
    %cst_95 = arith.constant 1.000000e+00 : f32
    %361 = vector.broadcast %cst_95 : f32 to vector<8x128xf32>
    %362 = arith.subf %361, %353 : vector<8x128xf32>
    %363 = arith.mulf %362, %360 : vector<8x128xf32>
    %364 = arith.mulf %353, %337 : vector<8x128xf32>
    %365 = arith.addf %363, %364 : vector<8x128xf32>
    %c4_96 = arith.constant 4 : index
    %c0_97 = arith.constant 0 : index
    %c0_98 = arith.constant 0 : index
    %366 = vector.load %arg10[%c4_96, %c0_97, %c0_98] : memref<8x8x256xf32, #tpu.memory_space<vmem>>, vector<1x8x128xf32>
    %367 = vector.shape_cast %366 : vector<1x8x128xf32> to vector<8x128xf32>
    %368 = vector.shape_cast %335 : vector<8x128xf32> to vector<1x8x128xf32>
    tpu.vector_store %arg10[%c4_96, %c0_97, %c0_98], %368 {strides = array<i32>} : memref<8x8x256xf32, #tpu.memory_space<vmem>>, vector<1x8x128xf32>,
    %c3_99 = arith.constant 3 : index
    %c0_100 = arith.constant 0 : index
    %c128_101 = arith.constant 128 : index
    %369 = vector.load %arg10[%c3_99, %c0_100, %c128_101] : memref<8x8x256xf32, #tpu.memory_space<vmem>>, vector<1x8x128xf32>
    %370 = vector.shape_cast %369 : vector<1x8x128xf32> to vector<8x128xf32>
    %371 = vector.shape_cast %365 : vector<8x128xf32> to vector<1x8x128xf32>
    tpu.vector_store %arg10[%c3_99, %c0_100, %c128_101], %371 {strides = array<i32>} : memref<8x8x256xf32, #tpu.memory_space<vmem>>, vector<1x8x128xf32>,
    %372 = tpu.concatenate %335, %365 in 1 : vector<8x128xf32>, vector<8x128xf32> -> vector<8x256xf32>
    %cst_102 = arith.constant dense<0.000000e+00> : vector<8x768xf32>
    %373 = tpu.matmul %372, %9, %cst_102 {dimension_numbers = #tpu.dot_dimension_numbers<[1], [0], [0], [1], [0, 0, 1, 1], [], []>} : vector<8x256xf32>, vector<256x768xf32>, vector<8x768xf32> -> vector<8x768xf32>
    %c5_103 = arith.constant 5 : index
    %c0_104 = arith.constant 0 : index
    %c0_105 = arith.constant 0 : index
    %374 = vector.load %arg9[%c5_103, %c0_104, %c0_105] : memref<8x8x768xf32, #tpu.memory_space<vmem>>, vector<1x8x384xf32>
    %375 = vector.shape_cast %374 : vector<1x8x384xf32> to vector<8x384xf32>
    %c2_106 = arith.constant 2 : index
    %c0_107 = arith.constant 0 : index
    %c384_108 = arith.constant 384 : index
    %376 = vector.load %arg9[%c2_106, %c0_107, %c384_108] : memref<8x8x768xf32, #tpu.memory_space<vmem>>, vector<1x8x384xf32>
    %377 = vector.shape_cast %376 : vector<1x8x384xf32> to vector<8x384xf32>
    %378 = vector.extract_strided_slice %373 {offsets = [0, 0], sizes = [8, 384], strides = [1, 1]} : vector<8x768xf32> to vector<8x384xf32>
    %379 = vector.extract_strided_slice %372 {offsets = [0, 0], sizes = [8, 128], strides = [1, 1]} : vector<8x256xf32> to vector<8x128xf32>
    %380 = vector.extract_strided_slice %375 {offsets = [0, 0], sizes = [8, 128], strides = [1, 1]} : vector<8x384xf32> to vector<8x128xf32>
    %381 = vector.extract_strided_slice %378 {offsets = [0, 0], sizes = [8, 128], strides = [1, 1]} : vector<8x384xf32> to vector<8x128xf32>
    %382 = arith.addf %380, %381 : vector<8x128xf32>
    %383 = arith.negf %382 : vector<8x128xf32>
    %384 = math.exp %383 : vector<8x128xf32>
    %cst_109 = arith.constant 1.000000e+00 : f32
    %385 = vector.broadcast %cst_109 : f32 to vector<8x128xf32>
    %386 = arith.addf %385, %384 : vector<8x128xf32>
    %387 = arith.divf %385, %386 : vector<8x128xf32>
    %388 = vector.extract_strided_slice %375 {offsets = [0, 128], sizes = [8, 128], strides = [1, 1]} : vector<8x384xf32> to vector<8x128xf32>
    %389 = vector.extract_strided_slice %378 {offsets = [0, 128], sizes = [8, 128], strides = [1, 1]} : vector<8x384xf32> to vector<8x128xf32>
    %390 = arith.addf %388, %389 : vector<8x128xf32>
    %391 = arith.negf %390 : vector<8x128xf32>
    %392 = math.exp %391 : vector<8x128xf32>
    %cst_110 = arith.constant 1.000000e+00 : f32
    %393 = vector.broadcast %cst_110 : f32 to vector<8x128xf32>
    %394 = arith.addf %393, %392 : vector<8x128xf32>
    %395 = arith.divf %393, %394 : vector<8x128xf32>
    %396 = vector.extract_strided_slice %375 {offsets = [0, 256], sizes = [8, 128], strides = [1, 1]} : vector<8x384xf32> to vector<8x128xf32>
    %397 = vector.extract_strided_slice %378 {offsets = [0, 256], sizes = [8, 128], strides = [1, 1]} : vector<8x384xf32> to vector<8x128xf32>
    %398 = vector.broadcast %10 : vector<1x128xf32> to vector<8x128xf32>
    %399 = arith.addf %397, %398 : vector<8x128xf32>
    %400 = arith.mulf %387, %399 : vector<8x128xf32>
    %401 = arith.addf %396, %400 : vector<8x128xf32>
    %402 = math.tanh %401 : vector<8x128xf32>
    %cst_111 = arith.constant 1.000000e+00 : f32
    %403 = vector.broadcast %cst_111 : f32 to vector<8x128xf32>
    %404 = arith.subf %403, %395 : vector<8x128xf32>
    %405 = arith.mulf %404, %402 : vector<8x128xf32>
    %406 = arith.mulf %395, %379 : vector<8x128xf32>
    %407 = arith.addf %405, %406 : vector<8x128xf32>
    %408 = vector.extract_strided_slice %373 {offsets = [0, 384], sizes = [8, 384], strides = [1, 1]} : vector<8x768xf32> to vector<8x384xf32>
    %409 = vector.extract_strided_slice %372 {offsets = [0, 128], sizes = [8, 128], strides = [1, 1]} : vector<8x256xf32> to vector<8x128xf32>
    %410 = vector.extract_strided_slice %377 {offsets = [0, 0], sizes = [8, 128], strides = [1, 1]} : vector<8x384xf32> to vector<8x128xf32>
    %411 = vector.extract_strided_slice %408 {offsets = [0, 0], sizes = [8, 128], strides = [1, 1]} : vector<8x384xf32> to vector<8x128xf32>
    %412 = arith.addf %410, %411 : vector<8x128xf32>
    %413 = arith.negf %412 : vector<8x128xf32>
    %414 = math.exp %413 : vector<8x128xf32>
    %cst_112 = arith.constant 1.000000e+00 : f32
    %415 = vector.broadcast %cst_112 : f32 to vector<8x128xf32>
    %416 = arith.addf %415, %414 : vector<8x128xf32>
    %417 = arith.divf %415, %416 : vector<8x128xf32>
    %418 = vector.extract_strided_slice %377 {offsets = [0, 128], sizes = [8, 128], strides = [1, 1]} : vector<8x384xf32> to vector<8x128xf32>
    %419 = vector.extract_strided_slice %408 {offsets = [0, 128], sizes = [8, 128], strides = [1, 1]} : vector<8x384xf32> to vector<8x128xf32>
    %420 = arith.addf %418, %419 : vector<8x128xf32>
    %421 = arith.negf %420 : vector<8x128xf32>
    %422 = math.exp %421 : vector<8x128xf32>
    %cst_113 = arith.constant 1.000000e+00 : f32
    %423 = vector.broadcast %cst_113 : f32 to vector<8x128xf32>
    %424 = arith.addf %423, %422 : vector<8x128xf32>
    %425 = arith.divf %423, %424 : vector<8x128xf32>
    %426 = vector.extract_strided_slice %377 {offsets = [0, 256], sizes = [8, 128], strides = [1, 1]} : vector<8x384xf32> to vector<8x128xf32>
    %427 = vector.extract_strided_slice %408 {offsets = [0, 256], sizes = [8, 128], strides = [1, 1]} : vector<8x384xf32> to vector<8x128xf32>
    %428 = vector.broadcast %11 : vector<1x128xf32> to vector<8x128xf32>
    %429 = arith.addf %427, %428 : vector<8x128xf32>
    %430 = arith.mulf %417, %429 : vector<8x128xf32>
    %431 = arith.addf %426, %430 : vector<8x128xf32>
    %432 = math.tanh %431 : vector<8x128xf32>
    %cst_114 = arith.constant 1.000000e+00 : f32
    %433 = vector.broadcast %cst_114 : f32 to vector<8x128xf32>
    %434 = arith.subf %433, %425 : vector<8x128xf32>
    %435 = arith.mulf %434, %432 : vector<8x128xf32>
    %436 = arith.mulf %425, %409 : vector<8x128xf32>
    %437 = arith.addf %435, %436 : vector<8x128xf32>
    %c5_115 = arith.constant 5 : index
    %c0_116 = arith.constant 0 : index
    %c0_117 = arith.constant 0 : index
    %438 = vector.load %arg10[%c5_115, %c0_116, %c0_117] : memref<8x8x256xf32, #tpu.memory_space<vmem>>, vector<1x8x128xf32>
    %439 = vector.shape_cast %438 : vector<1x8x128xf32> to vector<8x128xf32>
    %440 = vector.shape_cast %407 : vector<8x128xf32> to vector<1x8x128xf32>
    tpu.vector_store %arg10[%c5_115, %c0_116, %c0_117], %440 {strides = array<i32>} : memref<8x8x256xf32, #tpu.memory_space<vmem>>, vector<1x8x128xf32>,
    %c2_118 = arith.constant 2 : index
    %c0_119 = arith.constant 0 : index
    %c128_120 = arith.constant 128 : index
    %441 = vector.load %arg10[%c2_118, %c0_119, %c128_120] : memref<8x8x256xf32, #tpu.memory_space<vmem>>, vector<1x8x128xf32>
    %442 = vector.shape_cast %441 : vector<1x8x128xf32> to vector<8x128xf32>
    %443 = vector.shape_cast %437 : vector<8x128xf32> to vector<1x8x128xf32>
    tpu.vector_store %arg10[%c2_118, %c0_119, %c128_120], %443 {strides = array<i32>} : memref<8x8x256xf32, #tpu.memory_space<vmem>>, vector<1x8x128xf32>,
    %444 = tpu.concatenate %407, %437 in 1 : vector<8x128xf32>, vector<8x128xf32> -> vector<8x256xf32>
    %cst_121 = arith.constant dense<0.000000e+00> : vector<8x768xf32>
    %445 = tpu.matmul %444, %9, %cst_121 {dimension_numbers = #tpu.dot_dimension_numbers<[1], [0], [0], [1], [0, 0, 1, 1], [], []>} : vector<8x256xf32>, vector<256x768xf32>, vector<8x768xf32> -> vector<8x768xf32>
    %c6_122 = arith.constant 6 : index
    %c0_123 = arith.constant 0 : index
    %c0_124 = arith.constant 0 : index
    %446 = vector.load %arg9[%c6_122, %c0_123, %c0_124] : memref<8x8x768xf32, #tpu.memory_space<vmem>>, vector<1x8x384xf32>
    %447 = vector.shape_cast %446 : vector<1x8x384xf32> to vector<8x384xf32>
    %c1_125 = arith.constant 1 : index
    %c0_126 = arith.constant 0 : index
    %c384_127 = arith.constant 384 : index
    %448 = vector.load %arg9[%c1_125, %c0_126, %c384_127] : memref<8x8x768xf32, #tpu.memory_space<vmem>>, vector<1x8x384xf32>
    %449 = vector.shape_cast %448 : vector<1x8x384xf32> to vector<8x384xf32>
    %450 = vector.extract_strided_slice %445 {offsets = [0, 0], sizes = [8, 384], strides = [1, 1]} : vector<8x768xf32> to vector<8x384xf32>
    %451 = vector.extract_strided_slice %444 {offsets = [0, 0], sizes = [8, 128], strides = [1, 1]} : vector<8x256xf32> to vector<8x128xf32>
    %452 = vector.extract_strided_slice %447 {offsets = [0, 0], sizes = [8, 128], strides = [1, 1]} : vector<8x384xf32> to vector<8x128xf32>
    %453 = vector.extract_strided_slice %450 {offsets = [0, 0], sizes = [8, 128], strides = [1, 1]} : vector<8x384xf32> to vector<8x128xf32>
    %454 = arith.addf %452, %453 : vector<8x128xf32>
    %455 = arith.negf %454 : vector<8x128xf32>
    %456 = math.exp %455 : vector<8x128xf32>
    %cst_128 = arith.constant 1.000000e+00 : f32
    %457 = vector.broadcast %cst_128 : f32 to vector<8x128xf32>
    %458 = arith.addf %457, %456 : vector<8x128xf32>
    %459 = arith.divf %457, %458 : vector<8x128xf32>
    %460 = vector.extract_strided_slice %447 {offsets = [0, 128], sizes = [8, 128], strides = [1, 1]} : vector<8x384xf32> to vector<8x128xf32>
    %461 = vector.extract_strided_slice %450 {offsets = [0, 128], sizes = [8, 128], strides = [1, 1]} : vector<8x384xf32> to vector<8x128xf32>
    %462 = arith.addf %460, %461 : vector<8x128xf32>
    %463 = arith.negf %462 : vector<8x128xf32>
    %464 = math.exp %463 : vector<8x128xf32>
    %cst_129 = arith.constant 1.000000e+00 : f32
    %465 = vector.broadcast %cst_129 : f32 to vector<8x128xf32>
    %466 = arith.addf %465, %464 : vector<8x128xf32>
    %467 = arith.divf %465, %466 : vector<8x128xf32>
    %468 = vector.extract_strided_slice %447 {offsets = [0, 256], sizes = [8, 128], strides = [1, 1]} : vector<8x384xf32> to vector<8x128xf32>
    %469 = vector.extract_strided_slice %450 {offsets = [0, 256], sizes = [8, 128], strides = [1, 1]} : vector<8x384xf32> to vector<8x128xf32>
    %470 = vector.broadcast %10 : vector<1x128xf32> to vector<8x128xf32>
    %471 = arith.addf %469, %470 : vector<8x128xf32>
    %472 = arith.mulf %459, %471 : vector<8x128xf32>
    %473 = arith.addf %468, %472 : vector<8x128xf32>
    %474 = math.tanh %473 : vector<8x128xf32>
    %cst_130 = arith.constant 1.000000e+00 : f32
    %475 = vector.broadcast %cst_130 : f32 to vector<8x128xf32>
    %476 = arith.subf %475, %467 : vector<8x128xf32>
    %477 = arith.mulf %476, %474 : vector<8x128xf32>
    %478 = arith.mulf %467, %451 : vector<8x128xf32>
    %479 = arith.addf %477, %478 : vector<8x128xf32>
    %480 = vector.extract_strided_slice %445 {offsets = [0, 384], sizes = [8, 384], strides = [1, 1]} : vector<8x768xf32> to vector<8x384xf32>
    %481 = vector.extract_strided_slice %444 {offsets = [0, 128], sizes = [8, 128], strides = [1, 1]} : vector<8x256xf32> to vector<8x128xf32>
    %482 = vector.extract_strided_slice %449 {offsets = [0, 0], sizes = [8, 128], strides = [1, 1]} : vector<8x384xf32> to vector<8x128xf32>
    %483 = vector.extract_strided_slice %480 {offsets = [0, 0], sizes = [8, 128], strides = [1, 1]} : vector<8x384xf32> to vector<8x128xf32>
    %484 = arith.addf %482, %483 : vector<8x128xf32>
    %485 = arith.negf %484 : vector<8x128xf32>
    %486 = math.exp %485 : vector<8x128xf32>
    %cst_131 = arith.constant 1.000000e+00 : f32
    %487 = vector.broadcast %cst_131 : f32 to vector<8x128xf32>
    %488 = arith.addf %487, %486 : vector<8x128xf32>
    %489 = arith.divf %487, %488 : vector<8x128xf32>
    %490 = vector.extract_strided_slice %449 {offsets = [0, 128], sizes = [8, 128], strides = [1, 1]} : vector<8x384xf32> to vector<8x128xf32>
    %491 = vector.extract_strided_slice %480 {offsets = [0, 128], sizes = [8, 128], strides = [1, 1]} : vector<8x384xf32> to vector<8x128xf32>
    %492 = arith.addf %490, %491 : vector<8x128xf32>
    %493 = arith.negf %492 : vector<8x128xf32>
    %494 = math.exp %493 : vector<8x128xf32>
    %cst_132 = arith.constant 1.000000e+00 : f32
    %495 = vector.broadcast %cst_132 : f32 to vector<8x128xf32>
    %496 = arith.addf %495, %494 : vector<8x128xf32>
    %497 = arith.divf %495, %496 : vector<8x128xf32>
    %498 = vector.extract_strided_slice %449 {offsets = [0, 256], sizes = [8, 128], strides = [1, 1]} : vector<8x384xf32> to vector<8x128xf32>
    %499 = vector.extract_strided_slice %480 {offsets = [0, 256], sizes = [8, 128], strides = [1, 1]} : vector<8x384xf32> to vector<8x128xf32>
    %500 = vector.broadcast %11 : vector<1x128xf32> to vector<8x128xf32>
    %501 = arith.addf %499, %500 : vector<8x128xf32>
    %502 = arith.mulf %489, %501 : vector<8x128xf32>
    %503 = arith.addf %498, %502 : vector<8x128xf32>
    %504 = math.tanh %503 : vector<8x128xf32>
    %cst_133 = arith.constant 1.000000e+00 : f32
    %505 = vector.broadcast %cst_133 : f32 to vector<8x128xf32>
    %506 = arith.subf %505, %497 : vector<8x128xf32>
    %507 = arith.mulf %506, %504 : vector<8x128xf32>
    %508 = arith.mulf %497, %481 : vector<8x128xf32>
    %509 = arith.addf %507, %508 : vector<8x128xf32>
    %c6_134 = arith.constant 6 : index
    %c0_135 = arith.constant 0 : index
    %c0_136 = arith.constant 0 : index
    %510 = vector.load %arg10[%c6_134, %c0_135, %c0_136] : memref<8x8x256xf32, #tpu.memory_space<vmem>>, vector<1x8x128xf32>
    %511 = vector.shape_cast %510 : vector<1x8x128xf32> to vector<8x128xf32>
    %512 = vector.shape_cast %479 : vector<8x128xf32> to vector<1x8x128xf32>
    tpu.vector_store %arg10[%c6_134, %c0_135, %c0_136], %512 {strides = array<i32>} : memref<8x8x256xf32, #tpu.memory_space<vmem>>, vector<1x8x128xf32>,
    %c1_137 = arith.constant 1 : index
    %c0_138 = arith.constant 0 : index
    %c128_139 = arith.constant 128 : index
    %513 = vector.load %arg10[%c1_137, %c0_138, %c128_139] : memref<8x8x256xf32, #tpu.memory_space<vmem>>, vector<1x8x128xf32>
    %514 = vector.shape_cast %513 : vector<1x8x128xf32> to vector<8x128xf32>
    %515 = vector.shape_cast %509 : vector<8x128xf32> to vector<1x8x128xf32>
    tpu.vector_store %arg10[%c1_137, %c0_138, %c128_139], %515 {strides = array<i32>} : memref<8x8x256xf32, #tpu.memory_space<vmem>>, vector<1x8x128xf32>,
    %516 = tpu.concatenate %479, %509 in 1 : vector<8x128xf32>, vector<8x128xf32> -> vector<8x256xf32>
    %cst_140 = arith.constant dense<0.000000e+00> : vector<8x768xf32>
    %517 = tpu.matmul %516, %9, %cst_140 {dimension_numbers = #tpu.dot_dimension_numbers<[1], [0], [0], [1], [0, 0, 1, 1], [], []>} : vector<8x256xf32>, vector<256x768xf32>, vector<8x768xf32> -> vector<8x768xf32>
    %c7_141 = arith.constant 7 : index
    %c0_142 = arith.constant 0 : index
    %c0_143 = arith.constant 0 : index
    %518 = vector.load %arg9[%c7_141, %c0_142, %c0_143] : memref<8x8x768xf32, #tpu.memory_space<vmem>>, vector<1x8x384xf32>
    %519 = vector.shape_cast %518 : vector<1x8x384xf32> to vector<8x384xf32>
    %c0_144 = arith.constant 0 : index
    %c0_145 = arith.constant 0 : index
    %c384_146 = arith.constant 384 : index
    %520 = vector.load %arg9[%c0_144, %c0_145, %c384_146] : memref<8x8x768xf32, #tpu.memory_space<vmem>>, vector<1x8x384xf32>
    %521 = vector.shape_cast %520 : vector<1x8x384xf32> to vector<8x384xf32>
    %522 = vector.extract_strided_slice %517 {offsets = [0, 0], sizes = [8, 384], strides = [1, 1]} : vector<8x768xf32> to vector<8x384xf32>
    %523 = vector.extract_strided_slice %516 {offsets = [0, 0], sizes = [8, 128], strides = [1, 1]} : vector<8x256xf32> to vector<8x128xf32>
    %524 = vector.extract_strided_slice %519 {offsets = [0, 0], sizes = [8, 128], strides = [1, 1]} : vector<8x384xf32> to vector<8x128xf32>
    %525 = vector.extract_strided_slice %522 {offsets = [0, 0], sizes = [8, 128], strides = [1, 1]} : vector<8x384xf32> to vector<8x128xf32>
    %526 = arith.addf %524, %525 : vector<8x128xf32>
    %527 = arith.negf %526 : vector<8x128xf32>
    %528 = math.exp %527 : vector<8x128xf32>
    %cst_147 = arith.constant 1.000000e+00 : f32
    %529 = vector.broadcast %cst_147 : f32 to vector<8x128xf32>
    %530 = arith.addf %529, %528 : vector<8x128xf32>
    %531 = arith.divf %529, %530 : vector<8x128xf32>
    %532 = vector.extract_strided_slice %519 {offsets = [0, 128], sizes = [8, 128], strides = [1, 1]} : vector<8x384xf32> to vector<8x128xf32>
    %533 = vector.extract_strided_slice %522 {offsets = [0, 128], sizes = [8, 128], strides = [1, 1]} : vector<8x384xf32> to vector<8x128xf32>
    %534 = arith.addf %532, %533 : vector<8x128xf32>
    %535 = arith.negf %534 : vector<8x128xf32>
    %536 = math.exp %535 : vector<8x128xf32>
    %cst_148 = arith.constant 1.000000e+00 : f32
    %537 = vector.broadcast %cst_148 : f32 to vector<8x128xf32>
    %538 = arith.addf %537, %536 : vector<8x128xf32>
    %539 = arith.divf %537, %538 : vector<8x128xf32>
    %540 = vector.extract_strided_slice %519 {offsets = [0, 256], sizes = [8, 128], strides = [1, 1]} : vector<8x384xf32> to vector<8x128xf32>
    %541 = vector.extract_strided_slice %522 {offsets = [0, 256], sizes = [8, 128], strides = [1, 1]} : vector<8x384xf32> to vector<8x128xf32>
    %542 = vector.broadcast %10 : vector<1x128xf32> to vector<8x128xf32>
    %543 = arith.addf %541, %542 : vector<8x128xf32>
    %544 = arith.mulf %531, %543 : vector<8x128xf32>
    %545 = arith.addf %540, %544 : vector<8x128xf32>
    %546 = math.tanh %545 : vector<8x128xf32>
    %cst_149 = arith.constant 1.000000e+00 : f32
    %547 = vector.broadcast %cst_149 : f32 to vector<8x128xf32>
    %548 = arith.subf %547, %539 : vector<8x128xf32>
    %549 = arith.mulf %548, %546 : vector<8x128xf32>
    %550 = arith.mulf %539, %523 : vector<8x128xf32>
    %551 = arith.addf %549, %550 : vector<8x128xf32>
    %552 = vector.extract_strided_slice %517 {offsets = [0, 384], sizes = [8, 384], strides = [1, 1]} : vector<8x768xf32> to vector<8x384xf32>
    %553 = vector.extract_strided_slice %516 {offsets = [0, 128], sizes = [8, 128], strides = [1, 1]} : vector<8x256xf32> to vector<8x128xf32>
    %554 = vector.extract_strided_slice %521 {offsets = [0, 0], sizes = [8, 128], strides = [1, 1]} : vector<8x384xf32> to vector<8x128xf32>
    %555 = vector.extract_strided_slice %552 {offsets = [0, 0], sizes = [8, 128], strides = [1, 1]} : vector<8x384xf32> to vector<8x128xf32>
    %556 = arith.addf %554, %555 : vector<8x128xf32>
    %557 = arith.negf %556 : vector<8x128xf32>
    %558 = math.exp %557 : vector<8x128xf32>
    %cst_150 = arith.constant 1.000000e+00 : f32
    %559 = vector.broadcast %cst_150 : f32 to vector<8x128xf32>
    %560 = arith.addf %559, %558 : vector<8x128xf32>
    %561 = arith.divf %559, %560 : vector<8x128xf32>
    %562 = vector.extract_strided_slice %521 {offsets = [0, 128], sizes = [8, 128], strides = [1, 1]} : vector<8x384xf32> to vector<8x128xf32>
    %563 = vector.extract_strided_slice %552 {offsets = [0, 128], sizes = [8, 128], strides = [1, 1]} : vector<8x384xf32> to vector<8x128xf32>
    %564 = arith.addf %562, %563 : vector<8x128xf32>
    %565 = arith.negf %564 : vector<8x128xf32>
    %566 = math.exp %565 : vector<8x128xf32>
    %cst_151 = arith.constant 1.000000e+00 : f32
    %567 = vector.broadcast %cst_151 : f32 to vector<8x128xf32>
    %568 = arith.addf %567, %566 : vector<8x128xf32>
    %569 = arith.divf %567, %568 : vector<8x128xf32>
    %570 = vector.extract_strided_slice %521 {offsets = [0, 256], sizes = [8, 128], strides = [1, 1]} : vector<8x384xf32> to vector<8x128xf32>
    %571 = vector.extract_strided_slice %552 {offsets = [0, 256], sizes = [8, 128], strides = [1, 1]} : vector<8x384xf32> to vector<8x128xf32>
    %572 = vector.broadcast %11 : vector<1x128xf32> to vector<8x128xf32>
    %573 = arith.addf %571, %572 : vector<8x128xf32>
    %574 = arith.mulf %561, %573 : vector<8x128xf32>
    %575 = arith.addf %570, %574 : vector<8x128xf32>
    %576 = math.tanh %575 : vector<8x128xf32>
    %cst_152 = arith.constant 1.000000e+00 : f32
    %577 = vector.broadcast %cst_152 : f32 to vector<8x128xf32>
    %578 = arith.subf %577, %569 : vector<8x128xf32>
    %579 = arith.mulf %578, %576 : vector<8x128xf32>
    %580 = arith.mulf %569, %553 : vector<8x128xf32>
    %581 = arith.addf %579, %580 : vector<8x128xf32>
    %c7_153 = arith.constant 7 : index
    %c0_154 = arith.constant 0 : index
    %c0_155 = arith.constant 0 : index
    %582 = vector.load %arg10[%c7_153, %c0_154, %c0_155] : memref<8x8x256xf32, #tpu.memory_space<vmem>>, vector<1x8x128xf32>
    %583 = vector.shape_cast %582 : vector<1x8x128xf32> to vector<8x128xf32>
    %584 = vector.shape_cast %551 : vector<8x128xf32> to vector<1x8x128xf32>
    tpu.vector_store %arg10[%c7_153, %c0_154, %c0_155], %584 {strides = array<i32>} : memref<8x8x256xf32, #tpu.memory_space<vmem>>, vector<1x8x128xf32>,
    %c0_156 = arith.constant 0 : index
    %c0_157 = arith.constant 0 : index
    %c128_158 = arith.constant 128 : index
    %585 = vector.load %arg10[%c0_156, %c0_157, %c128_158] : memref<8x8x256xf32, #tpu.memory_space<vmem>>, vector<1x8x128xf32>
    %586 = vector.shape_cast %585 : vector<1x8x128xf32> to vector<8x128xf32>
    %587 = vector.shape_cast %581 : vector<8x128xf32> to vector<1x8x128xf32>
    tpu.vector_store %arg10[%c0_156, %c0_157, %c128_158], %587 {strides = array<i32>} : memref<8x8x256xf32, #tpu.memory_space<vmem>>, vector<1x8x128xf32>,
    %c0_159 = arith.constant 0 : index
    %c0_160 = arith.constant 0 : index
    %c0_161 = arith.constant 0 : index
    %588 = vector.load %arg10[%c0_159, %c0_160, %c0_161] : memref<8x8x256xf32, #tpu.memory_space<vmem>>, vector<8x8x256xf32>
    %589 = vector.shape_cast %588 : vector<8x8x256xf32> to vector<64x256xf32>
    %cst_162 = arith.constant 0.00999999977 : f32
    %590 = vector.broadcast %cst_162 : f32 to vector<64x256xf32>
    %591 = arith.mulf %590, %589 : vector<64x256xf32>
    %592 = arith.maximumf %589, %591 : vector<64x256xf32>
    %c0_163 = arith.constant 0 : index
    %c0_164 = arith.constant 0 : index
    %593 = vector.load %arg6[%c0_163, %c0_164] : memref<256x128xf32, #tpu.memory_space<vmem>>, vector<256x128xf32>
    %cst_165 = arith.constant dense<0.000000e+00> : vector<64x128xf32>
    %594 = tpu.matmul %592, %593, %cst_165 {dimension_numbers = #tpu.dot_dimension_numbers<[1], [0], [0], [1], [0, 0, 1, 1], [], []>} : vector<64x256xf32>, vector<256x128xf32>, vector<64x128xf32> -> vector<64x128xf32>
    %c0_166 = arith.constant 0 : index
    %c0_167 = arith.constant 0 : index
    %595 = vector.load %arg7[%c0_166, %c0_167] : memref<1x128xf32, #tpu.memory_space<vmem>>, vector<1x128xf32>
    %596 = vector.broadcast %595 : vector<1x128xf32> to vector<64x128xf32>
    %597 = arith.addf %594, %596 : vector<64x128xf32>
    %598 = vector.shape_cast %597 : vector<64x128xf32> to vector<8x8x128xf32>
    %c0_168 = arith.constant 0 : index
    %c0_169 = arith.constant 0 : index
    %c0_170 = arith.constant 0 : index
    %599 = vector.load %arg8[%c0_168, %c0_169, %c0_170] : memref<8x8x128xf32, #tpu.memory_space<vmem>>, vector<8x8x128xf32>
    tpu.vector_store %arg8[%c0_168, %c0_169, %c0_170], %598 {strides = array<i32>} : memref<8x8x128xf32, #tpu.memory_space<vmem>>, vector<8x8x128xf32>,
    return
  }
}

</mosaic_0001>

<llo_original>
// kernel: tpu_custom_call.1
$region0: #{tpu_custom_call.1}
  #allocation0 [shape = 'u32[]', space=smem, size = 0x4, offset = 0x4, fixed_abs, tag = 'smem constant byte address 0x4 - core index']
  #allocation1 [shape = 'u32[72,128]{1,0:T(1,128)}', space=vmem, size = 0x9000, scoped, tag = 'internal scratch']
  #allocation2 [shape = 'f32[8,8,768]{2,1,0:T(8,128)}', space=vmem, size = 0x30000, scoped, tag = 'scratch operand']
  #allocation3 [shape = 'f32[8,8,256]{2,1,0:T(8,128)}', space=vmem, size = 0x10000, scoped, tag = 'scratch operand']
  %s0 = inlined_call_operand.hbm [shape: f32[8,8,128], index: 0, kind: input, shape index: {}]
  %s1 = inlined_call_operand.hbm [shape: f32[128,768], index: 1, kind: input, shape index: {}]
  %s2 = inlined_call_operand.hbm [shape: f32[1,768], index: 2, kind: input, shape index: {}]
  %s3 = inlined_call_operand.hbm [shape: f32[256,768], index: 3, kind: input, shape index: {}]
  %s4 = inlined_call_operand.vmem [shape: f32[1,128], index: 4, kind: input, shape index: {}]
  %s5 = inlined_call_operand.vmem [shape: f32[1,128], index: 5, kind: input, shape index: {}]
  %s6 = inlined_call_operand.hbm [shape: f32[256,128], index: 6, kind: input, shape index: {}]
  %s7 = inlined_call_operand.vmem [shape: f32[1,128], index: 7, kind: input, shape index: {}]
  %s8 = inlined_call_operand.hbm [shape: f32[8,8,128], index: 8, kind: output, shape index: {}]
  %s9 = sld [smem:[#allocation0]]
  $region62: #{tpu_custom_call.1} parent=0
    _
  %s11 = ssub.s32 1, %s9
  %s12 = scalar_select 0, %s11, %s9
  $region1: #{tpu_custom_call.1} parent=0
    #allocation4 [shape = 'u8[32768]{0}', space=vmem, size = 0x8000, scoped, tag = 'input window, operand 0, single buffered']
    #allocation5 [shape = 's32[1]{0}', space=sflag, size = 0x4, scoped, tag = 'scoped memory for tpu_custom_call.1']
    #allocation6 [shape = 's32[1]{0}', space=sflag, size = 0x4, scoped, tag = 'scoped memory for tpu_custom_call.1']
    #allocation7 [shape = 'u8[393216]{0}', space=vmem, size = 0x60000, scoped, tag = 'input window, operand 1, single buffered']
    #allocation8 [shape = 's32[1]{0}', space=sflag, size = 0x4, scoped, tag = 'scoped memory for tpu_custom_call.1']
    #allocation9 [shape = 'u8[3072]{0}', space=vmem, size = 0xc00, scoped, tag = 'input window, operand 2, single buffered']
    #allocation10 [shape = 'u8[786432]{0}', space=vmem, size = 0xc0000, scoped, tag = 'input window, operand 3, single buffered']
    #allocation11 [shape = 's32[1]{0}', space=sflag, size = 0x4, scoped, tag = 'scoped memory for tpu_custom_call.1']
    #allocation12 [shape = 'u8[131072]{0}', space=vmem, size = 0x20000, scoped, tag = 'input window, operand 6, single buffered']
    #allocation13 [shape = 'u8[32768]{0}', space=vmem, size = 0x8000, scoped, tag = 'output window, operand 0, single buffered']
    %13 = vsyncpa [#allocation5], 0
    %14 = vsyncpa [#allocation8], 0
    %15 = vsyncpa [#allocation11], 0
    %16 = vsyncpa [#allocation6], 0
    // Predicated region
    $region2: #{tpu_custom_call.1} parent=1 // pred_check
      _
    $region3: #{tpu_custom_call.1} parent=1 // pred_check_branch
      %18 = sbr.rel (0) target = $region5
    $region4: #{tpu_custom_call.1} parent=1 // pred_region
      %20 = vsyncadd [#allocation5], 0
      %s21 = sshll.u32 %s0, 4
      %s22 = int_to_ptr.hbm [resolvable:$true] %s21
      %s23 = sshll.u32 [#allocation4], 4
      %s24 = int_to_ptr.vmem [resolvable:$true] %s23
      %29 = dma.hbm_to_vmem [thread:$0]  %s22, 1024, %s24, [#allocation5], 128, 128, 8
    $region5: #{tpu_custom_call.1} parent=1 // pred_fallthru
      _
    // Predicated region
    $region6: #{tpu_custom_call.1} parent=1 // pred_check
      _
    $region7: #{tpu_custom_call.1} parent=1 // pred_check_branch
      %31 = sbr.rel (0) target = $region9
    $region8: #{tpu_custom_call.1} parent=1 // pred_region
      %33 = vsyncadd [#allocation8], 0
      %s34 = sshll.u32 %s1, 4
      %s35 = int_to_ptr.hbm [resolvable:$true] %s34
      %s36 = sshll.u32 [#allocation7], 4
      %s37 = int_to_ptr.vmem [resolvable:$true] %s36
      %42 = dma.hbm_to_vmem [thread:$0]  %s35, 12288, %s37, [#allocation8], 768, 768, 48
    $region9: #{tpu_custom_call.1} parent=1 // pred_fallthru
      _
    // Predicated region
    $region10: #{tpu_custom_call.1} parent=1 // pred_check
      _
    $region11: #{tpu_custom_call.1} parent=1 // pred_check_branch
      %44 = sbr.rel (0) target = $region13
    $region12: #{tpu_custom_call.1} parent=1 // pred_region
      %46 = vsyncadd [#allocation8], 0
      %s48 = sshll.u32 %s2, 4
      %s49 = int_to_ptr.hbm [resolvable:$true] %s48
      %s50 = sshll.u32 [#allocation9], 4
      %s51 = int_to_ptr.vmem [resolvable:$true] %s50
      %53 = dma.hbm_to_vmem [thread:$0]  %s49, 96, %s51, [#allocation8]
    $region13: #{tpu_custom_call.1} parent=1 // pred_fallthru
      _
    // Predicated region
    $region14: #{tpu_custom_call.1} parent=1 // pred_check
      _
    $region15: #{tpu_custom_call.1} parent=1 // pred_check_branch
      %55 = sbr.rel (0) target = $region17
    $region16: #{tpu_custom_call.1} parent=1 // pred_region
      %57 = vsyncadd [#allocation11], 0
      %s58 = sshll.u32 %s3, 4
      %s59 = int_to_ptr.hbm [resolvable:$true] %s58
      %s60 = sshll.u32 [#allocation10], 4
      %s61 = int_to_ptr.vmem [resolvable:$true] %s60
      %66 = dma.hbm_to_vmem [thread:$0]  %s59, 24576, %s61, [#allocation11], 768, 768, 48
    $region17: #{tpu_custom_call.1} parent=1 // pred_fallthru
      _
    // Predicated region
    $region18: #{tpu_custom_call.1} parent=1 // pred_check
      _
    $region19: #{tpu_custom_call.1} parent=1 // pred_check_branch
      %68 = sbr.rel (0) target = $region21
    $region20: #{tpu_custom_call.1} parent=1 // pred_region
      _
    $region21: #{tpu_custom_call.1} parent=1 // pred_fallthru
      _
    // Predicated region
    $region22: #{tpu_custom_call.1} parent=1 // pred_check
      _
    $region23: #{tpu_custom_call.1} parent=1 // pred_check_branch
      %70 = sbr.rel (0) target = $region25
    $region24: #{tpu_custom_call.1} parent=1 // pred_region
      _
    $region25: #{tpu_custom_call.1} parent=1 // pred_fallthru
      _
    // Predicated region
    $region26: #{tpu_custom_call.1} parent=1 // pred_check
      _
    $region27: #{tpu_custom_call.1} parent=1 // pred_check_branch
      %72 = sbr.rel (0) target = $region29
    $region28: #{tpu_custom_call.1} parent=1 // pred_region
      %74 = vsyncadd [#allocation11], 0
      %s75 = sshll.u32 %s6, 4
      %s76 = int_to_ptr.hbm [resolvable:$true] %s75
      %s77 = sshll.u32 [#allocation12], 4
      %s78 = int_to_ptr.vmem [resolvable:$true] %s77
      %83 = dma.hbm_to_vmem [thread:$0]  %s76, 4096, %s78, [#allocation11], 128, 128, 8
    $region29: #{tpu_custom_call.1} parent=1 // pred_fallthru
      _
    // Predicated region
    $region30: #{tpu_custom_call.1} parent=1 // pred_check
      _
    $region31: #{tpu_custom_call.1} parent=1 // pred_check_branch
      %85 = sbr.rel (0) target = $region33
    $region32: #{tpu_custom_call.1} parent=1 // pred_region
      _
    $region33: #{tpu_custom_call.1} parent=1 // pred_fallthru
      _
    // Predicated region
    $region34: #{tpu_custom_call.1} parent=1 // pred_check
      _
    $region35: #{tpu_custom_call.1} parent=1 // pred_check_branch
      %87 = sbr.rel (0) target = $region37
    $region36: #{tpu_custom_call.1} parent=1 // pred_region
      %89 = dma.done [#allocation5], 1024
    $region37: #{tpu_custom_call.1} parent=1 // pred_fallthru
      _
    // Predicated region
    $region38: #{tpu_custom_call.1} parent=1 // pred_check
      _
    $region39: #{tpu_custom_call.1} parent=1 // pred_check_branch
      %91 = sbr.rel (0) target = $region41
    $region40: #{tpu_custom_call.1} parent=1 // pred_region
      %93 = dma.done [#allocation8], 12288
    $region41: #{tpu_custom_call.1} parent=1 // pred_fallthru
      _
    // Predicated region
    $region42: #{tpu_custom_call.1} parent=1 // pred_check
      _
    $region43: #{tpu_custom_call.1} parent=1 // pred_check_branch
      %95 = sbr.rel (0) target = $region45
    $region44: #{tpu_custom_call.1} parent=1 // pred_region
      %97 = dma.done [#allocation8], 96
    $region45: #{tpu_custom_call.1} parent=1 // pred_fallthru
      _
    // Predicated region
    $region46: #{tpu_custom_call.1} parent=1 // pred_check
      _
    $region47: #{tpu_custom_call.1} parent=1 // pred_check_branch
      %99 = sbr.rel (0) target = $region49
    $region48: #{tpu_custom_call.1} parent=1 // pred_region
      %101 = dma.done [#allocation11], 24576
    $region49: #{tpu_custom_call.1} parent=1 // pred_fallthru
      _
    // Predicated region
    $region50: #{tpu_custom_call.1} parent=1 // pred_check
      _
    $region51: #{tpu_custom_call.1} parent=1 // pred_check_branch
      %103 = sbr.rel (0) target = $region53
    $region52: #{tpu_custom_call.1} parent=1 // pred_region
      %105 = dma.done [#allocation11], 4096
    $region53: #{tpu_custom_call.1} parent=1 // pred_fallthru
      _
    %v106 = vld [vmem:[#allocation4] sm:$0xff]
    %v107 = vld [vmem:[#allocation4 + $0x8] sm:$0xff]
    %v108 = vld [vmem:[#allocation4 + $0x10] sm:$0xff]
    %v109 = vld [vmem:[#allocation4 + $0x18] sm:$0xff]
    %v110 = vld [vmem:[#allocation4 + $0x20] sm:$0xff]
    %v111 = vld [vmem:[#allocation4 + $0x28] sm:$0xff]
    %v112 = vld [vmem:[#allocation4 + $0x30] sm:$0xff]
    %v113 = vld [vmem:[#allocation4 + $0x38] sm:$0xff]
    %v114 = vld [vmem:[#allocation7] sm:$0xff]
    %v115 = vld [vmem:[#allocation7 + $0x8] sm:$0xff]
    %v116 = vld [vmem:[#allocation7 + $0x10] sm:$0xff]
    %v117 = vld [vmem:[#allocation7 + $0x18] sm:$0xff]
    %v118 = vld [vmem:[#allocation7 + $0x20] sm:$0xff]
    %v119 = vld [vmem:[#allocation7 + $0x28] sm:$0xff]
    %v120 = vld [vmem:[#allocation7 + $0x30] sm:$0xff]
    %v121 = vld [vmem:[#allocation7 + $0x38] sm:$0xff]
    %v122 = vld [vmem:[#allocation7 + $0x40] sm:$0xff]
    %v123 = vld [vmem:[#allocation7 + $0x48] sm:$0xff]
    %v124 = vld [vmem:[#allocation7 + $0x50] sm:$0xff]
    %v125 = vld [vmem:[#allocation7 + $0x58] sm:$0xff]
    %v126 = vld [vmem:[#allocation7 + $0x60] sm:$0xff]
    %v127 = vld [vmem:[#allocation7 + $0x68] sm:$0xff]
    %v128 = vld [vmem:[#allocation7 + $0x70] sm:$0xff]
    %v129 = vld [vmem:[#allocation7 + $0x78] sm:$0xff]
    %v130 = vld [vmem:[#allocation7 + $0x80] sm:$0xff]
    %v131 = vld [vmem:[#allocation7 + $0x88] sm:$0xff]
    %v132 = vld [vmem:[#allocation7 + $0x90] sm:$0xff]
    %v133 = vld [vmem:[#allocation7 + $0x98] sm:$0xff]
    %v134 = vld [vmem:[#allocation7 + $0xa0] sm:$0xff]
    %v135 = vld [vmem:[#allocation7 + $0xa8] sm:$0xff]
    %v136 = vld [vmem:[#allocation7 + $0xb0] sm:$0xff]
    %v137 = vld [vmem:[#allocation7 + $0xb8] sm:$0xff]
    %v138 = vld [vmem:[#allocation7 + $0xc0] sm:$0xff]
    %v139 = vld [vmem:[#allocation7 + $0xc8] sm:$0xff]
    %v140 = vld [vmem:[#allocation7 + $0xd0] sm:$0xff]
    %v141 = vld [vmem:[#allocation7 + $0xd8] sm:$0xff]
    %v142 = vld [vmem:[#allocation7 + $0xe0] sm:$0xff]
    %v143 = vld [vmem:[#allocation7 + $0xe8] sm:$0xff]
    %v144 = vld [vmem:[#allocation7 + $0xf0] sm:$0xff]
    %v145 = vld [vmem:[#allocation7 + $0xf8] sm:$0xff]
    %v146 = vld [vmem:[#allocation7 + $0x100] sm:$0xff]
    %v147 = vld [vmem:[#allocation7 + $0x108] sm:$0xff]
    %v148 = vld [vmem:[#allocation7 + $0x110] sm:$0xff]
    %v149 = vld [vmem:[#allocation7 + $0x118] sm:$0xff]
    %v150 = vld [vmem:[#allocation7 + $0x120] sm:$0xff]
    %v151 = vld [vmem:[#allocation7 + $0x128] sm:$0xff]
    %v152 = vld [vmem:[#allocation7 + $0x130] sm:$0xff]
    %v153 = vld [vmem:[#allocation7 + $0x138] sm:$0xff]
    %v154 = vld [vmem:[#allocation7 + $0x140] sm:$0xff]
    %v155 = vld [vmem:[#allocation7 + $0x148] sm:$0xff]
    %v156 = vld [vmem:[#allocation7 + $0x150] sm:$0xff]
    %v157 = vld [vmem:[#allocation7 + $0x158] sm:$0xff]
    %v158 = vld [vmem:[#allocation7 + $0x160] sm:$0xff]
    %v159 = vld [vmem:[#allocation7 + $0x168] sm:$0xff]
    %v160 = vld [vmem:[#allocation7 + $0x170] sm:$0xff]
    %v161 = vld [vmem:[#allocation7 + $0x178] sm:$0xff]
    %v162 = vld [vmem:[#allocation7 + $0x180] sm:$0xff]
    %v163 = vld [vmem:[#allocation7 + $0x188] sm:$0xff]
    %v164 = vld [vmem:[#allocation7 + $0x190] sm:$0xff]
    %v165 = vld [vmem:[#allocation7 + $0x198] sm:$0xff]
    %v166 = vld [vmem:[#allocation7 + $0x1a0] sm:$0xff]
    %v167 = vld [vmem:[#allocation7 + $0x1a8] sm:$0xff]
    %v168 = vld [vmem:[#allocation7 + $0x1b0] sm:$0xff]
    %v169 = vld [vmem:[#allocation7 + $0x1b8] sm:$0xff]
    %v170 = vld [vmem:[#allocation7 + $0x1c0] sm:$0xff]
    %v171 = vld [vmem:[#allocation7 + $0x1c8] sm:$0xff]
    %v172 = vld [vmem:[#allocation7 + $0x1d0] sm:$0xff]
    %v173 = vld [vmem:[#allocation7 + $0x1d8] sm:$0xff]
    %v174 = vld [vmem:[#allocation7 + $0x1e0] sm:$0xff]
    %v175 = vld [vmem:[#allocation7 + $0x1e8] sm:$0xff]
    %v176 = vld [vmem:[#allocation7 + $0x1f0] sm:$0xff]
    %v177 = vld [vmem:[#allocation7 + $0x1f8] sm:$0xff]
    %v178 = vld [vmem:[#allocation7 + $0x200] sm:$0xff]
    %v179 = vld [vmem:[#allocation7 + $0x208] sm:$0xff]
    %v180 = vld [vmem:[#allocation7 + $0x210] sm:$0xff]
    %v181 = vld [vmem:[#allocation7 + $0x218] sm:$0xff]
    %v182 = vld [vmem:[#allocation7 + $0x220] sm:$0xff]
    %v183 = vld [vmem:[#allocation7 + $0x228] sm:$0xff]
    %v184 = vld [vmem:[#allocation7 + $0x230] sm:$0xff]
    %v185 = vld [vmem:[#allocation7 + $0x238] sm:$0xff]
    %v186 = vld [vmem:[#allocation7 + $0x240] sm:$0xff]
    %v187 = vld [vmem:[#allocation7 + $0x248] sm:$0xff]
    %v188 = vld [vmem:[#allocation7 + $0x250] sm:$0xff]
    %v189 = vld [vmem:[#allocation7 + $0x258] sm:$0xff]
    %v190 = vld [vmem:[#allocation7 + $0x260] sm:$0xff]
    %v191 = vld [vmem:[#allocation7 + $0x268] sm:$0xff]
    %v192 = vld [vmem:[#allocation7 + $0x270] sm:$0xff]
    %v193 = vld [vmem:[#allocation7 + $0x278] sm:$0xff]
    %v194 = vld [vmem:[#allocation7 + $0x280] sm:$0xff]
    %v195 = vld [vmem:[#allocation7 + $0x288] sm:$0xff]
    %v196 = vld [vmem:[#allocation7 + $0x290] sm:$0xff]
    %v197 = vld [vmem:[#allocation7 + $0x298] sm:$0xff]
    %v198 = vld [vmem:[#allocation7 + $0x2a0] sm:$0xff]
    %v199 = vld [vmem:[#allocation7 + $0x2a8] sm:$0xff]
    %v200 = vld [vmem:[#allocation7 + $0x2b0] sm:$0xff]
    %v201 = vld [vmem:[#allocation7 + $0x2b8] sm:$0xff]
    %v202 = vld [vmem:[#allocation7 + $0x2c0] sm:$0xff]
    %v203 = vld [vmem:[#allocation7 + $0x2c8] sm:$0xff]
    %v204 = vld [vmem:[#allocation7 + $0x2d0] sm:$0xff]
    %v205 = vld [vmem:[#allocation7 + $0x2d8] sm:$0xff]
    %v206 = vld [vmem:[#allocation7 + $0x2e0] sm:$0xff]
    %v207 = vld [vmem:[#allocation7 + $0x2e8] sm:$0xff]
    %v208 = vld [vmem:[#allocation7 + $0x2f0] sm:$0xff]
    %v209 = vld [vmem:[#allocation7 + $0x2f8] sm:$0xff]
    %v210 = vld [vmem:[#allocation9] sm:$0x3f]
    %v212 = vperm.slane %v210, 0
    %v213 = vperm.slane %v210, 1
    %v214 = vperm.slane %v210, 2
    %v215 = vperm.slane %v210, 3
    %v216 = vperm.slane %v210, 4
    %v217 = vperm.slane %v210, 5
    %224 = vmatpush.msra.mxu0 %v204
    %225 = vmatpush.msra.mxu0 %v198
    %226 = vmatpush.msra.mxu0 %v192
    %227 = vmatpush.msra.mxu0 %v186
    %228 = vmatpush.msra.mxu0 %v180
    %229 = vmatpush.msra.mxu0 %v174
    %230 = vmatpush.msra.mxu0 %v168
    %231 = vmatpush.msra.mxu0 %v162
    %232 = vmatpush.msra.mxu0 %v156
    %233 = vmatpush.msra.mxu0 %v150
    %234 = vmatpush.msra.mxu0 %v144
    %235 = vmatpush.msra.mxu0 %v138
    %236 = vmatpush.msra.mxu0 %v132
    %237 = vmatpush.msra.mxu0 %v126
    %238 = vmatpush.msra.mxu0 %v120
    %239 = vmatpush.msra.mxu0 %v114
    %240 = vmatmul.f32.gmra.mxu0 %v106
    %v241 = vpop.f32.mrf.mxu0
    %v242 = vadd.f32 %v212, %v241
    %243 = vmatmul.f32.gmra.mxu0 %v107
    %v244 = vpop.f32.mrf.mxu0
    %v245 = vadd.f32 %v212, %v244
    %246 = vmatmul.f32.gmra.mxu0 %v108
    %v247 = vpop.f32.mrf.mxu0
    %v248 = vadd.f32 %v212, %v247
    %249 = vmatmul.f32.gmra.mxu0 %v109
    %v250 = vpop.f32.mrf.mxu0
    %v251 = vadd.f32 %v212, %v250
    %252 = vmatmul.f32.gmra.mxu0 %v110
    %v253 = vpop.f32.mrf.mxu0
    %v254 = vadd.f32 %v212, %v253
    %255 = vmatmul.f32.gmra.mxu0 %v111
    %v256 = vpop.f32.mrf.mxu0
    %v257 = vadd.f32 %v212, %v256
    %258 = vmatmul.f32.gmra.mxu0 %v112
    %v259 = vpop.f32.mrf.mxu0
    %v260 = vadd.f32 %v212, %v259
    %261 = vmatmul.f32.gmra.mxu0 %v113
    %v262 = vpop.f32.mrf.mxu0
    %v263 = vadd.f32 %v212, %v262
    %264 = vdwg.mxu0
    %265 = vmatpush.msra.mxu0 %v205
    %266 = vmatpush.msra.mxu0 %v199
    %267 = vmatpush.msra.mxu0 %v193
    %268 = vmatpush.msra.mxu0 %v187
    %269 = vmatpush.msra.mxu0 %v181
    %270 = vmatpush.msra.mxu0 %v175
    %271 = vmatpush.msra.mxu0 %v169
    %272 = vmatpush.msra.mxu0 %v163
    %273 = vmatpush.msra.mxu0 %v157
    %274 = vmatpush.msra.mxu0 %v151
    %275 = vmatpush.msra.mxu0 %v145
    %276 = vmatpush.msra.mxu0 %v139
    %277 = vmatpush.msra.mxu0 %v133
    %278 = vmatpush.msra.mxu0 %v127
    %279 = vmatpush.msra.mxu0 %v121
    %280 = vmatpush.msra.mxu0 %v115
    %281 = vmatmul.f32.gmra.mxu0 %v106
    %v282 = vpop.f32.mrf.mxu0
    %v283 = vadd.f32 %v213, %v282
    %284 = vmatmul.f32.gmra.mxu0 %v107
    %v285 = vpop.f32.mrf.mxu0
    %v286 = vadd.f32 %v213, %v285
    %287 = vmatmul.f32.gmra.mxu0 %v108
    %v288 = vpop.f32.mrf.mxu0
    %v289 = vadd.f32 %v213, %v288
    %290 = vmatmul.f32.gmra.mxu0 %v109
    %v291 = vpop.f32.mrf.mxu0
    %v292 = vadd.f32 %v213, %v291
    %293 = vmatmul.f32.gmra.mxu0 %v110
    %v294 = vpop.f32.mrf.mxu0
    %v295 = vadd.f32 %v213, %v294
    %296 = vmatmul.f32.gmra.mxu0 %v111
    %v297 = vpop.f32.mrf.mxu0
    %v298 = vadd.f32 %v213, %v297
    %299 = vmatmul.f32.gmra.mxu0 %v112
    %v300 = vpop.f32.mrf.mxu0
    %v301 = vadd.f32 %v213, %v300
    %302 = vmatmul.f32.gmra.mxu0 %v113
    %v303 = vpop.f32.mrf.mxu0
    %v304 = vadd.f32 %v213, %v303
    %305 = vdwg.mxu0
    %306 = vmatpush.msra.mxu0 %v206
    %307 = vmatpush.msra.mxu0 %v200
    %308 = vmatpush.msra.mxu0 %v194
    %309 = vmatpush.msra.mxu0 %v188
    %310 = vmatpush.msra.mxu0 %v182
    %311 = vmatpush.msra.mxu0 %v176
    %312 = vmatpush.msra.mxu0 %v170
    %313 = vmatpush.msra.mxu0 %v164
    %314 = vmatpush.msra.mxu0 %v158
    %315 = vmatpush.msra.mxu0 %v152
    %316 = vmatpush.msra.mxu0 %v146
    %317 = vmatpush.msra.mxu0 %v140
    %318 = vmatpush.msra.mxu0 %v134
    %319 = vmatpush.msra.mxu0 %v128
    %320 = vmatpush.msra.mxu0 %v122
    %321 = vmatpush.msra.mxu0 %v116
    %322 = vmatmul.f32.gmra.mxu0 %v106
    %v323 = vpop.f32.mrf.mxu0
    %v324 = vadd.f32 %v214, %v323
    %325 = vmatmul.f32.gmra.mxu0 %v107
    %v326 = vpop.f32.mrf.mxu0
    %v327 = vadd.f32 %v214, %v326
    %328 = vmatmul.f32.gmra.mxu0 %v108
    %v329 = vpop.f32.mrf.mxu0
    %v330 = vadd.f32 %v214, %v329
    %331 = vmatmul.f32.gmra.mxu0 %v109
    %v332 = vpop.f32.mrf.mxu0
    %v333 = vadd.f32 %v214, %v332
    %334 = vmatmul.f32.gmra.mxu0 %v110
    %v335 = vpop.f32.mrf.mxu0
    %v336 = vadd.f32 %v214, %v335
    %337 = vmatmul.f32.gmra.mxu0 %v111
    %v338 = vpop.f32.mrf.mxu0
    %v339 = vadd.f32 %v214, %v338
    %340 = vmatmul.f32.gmra.mxu0 %v112
    %v341 = vpop.f32.mrf.mxu0
    %v342 = vadd.f32 %v214, %v341
    %343 = vmatmul.f32.gmra.mxu0 %v113
    %v344 = vpop.f32.mrf.mxu0
    %v345 = vadd.f32 %v214, %v344
    %346 = vdwg.mxu0
    %347 = vmatpush.msra.mxu0 %v207
    %348 = vmatpush.msra.mxu0 %v201
    %349 = vmatpush.msra.mxu0 %v195
    %350 = vmatpush.msra.mxu0 %v189
    %351 = vmatpush.msra.mxu0 %v183
    %352 = vmatpush.msra.mxu0 %v177
    %353 = vmatpush.msra.mxu0 %v171
    %354 = vmatpush.msra.mxu0 %v165
    %355 = vmatpush.msra.mxu0 %v159
    %356 = vmatpush.msra.mxu0 %v153
    %357 = vmatpush.msra.mxu0 %v147
    %358 = vmatpush.msra.mxu0 %v141
    %359 = vmatpush.msra.mxu0 %v135
    %360 = vmatpush.msra.mxu0 %v129
    %361 = vmatpush.msra.mxu0 %v123
    %362 = vmatpush.msra.mxu0 %v117
    %363 = vmatmul.f32.gmra.mxu0 %v106
    %v364 = vpop.f32.mrf.mxu0
    %v365 = vadd.f32 %v215, %v364
    %366 = vmatmul.f32.gmra.mxu0 %v107
    %v367 = vpop.f32.mrf.mxu0
    %v368 = vadd.f32 %v215, %v367
    %369 = vmatmul.f32.gmra.mxu0 %v108
    %v370 = vpop.f32.mrf.mxu0
    %v371 = vadd.f32 %v215, %v370
    %372 = vmatmul.f32.gmra.mxu0 %v109
    %v373 = vpop.f32.mrf.mxu0
    %v374 = vadd.f32 %v215, %v373
    %375 = vmatmul.f32.gmra.mxu0 %v110
    %v376 = vpop.f32.mrf.mxu0
    %v377 = vadd.f32 %v215, %v376
    %378 = vmatmul.f32.gmra.mxu0 %v111
    %v379 = vpop.f32.mrf.mxu0
    %v380 = vadd.f32 %v215, %v379
    %381 = vmatmul.f32.gmra.mxu0 %v112
    %v382 = vpop.f32.mrf.mxu0
    %v383 = vadd.f32 %v215, %v382
    %384 = vmatmul.f32.gmra.mxu0 %v113
    %v385 = vpop.f32.mrf.mxu0
    %v386 = vadd.f32 %v215, %v385
    %387 = vdwg.mxu0
    %388 = vmatpush.msra.mxu0 %v208
    %389 = vmatpush.msra.mxu0 %v202
    %390 = vmatpush.msra.mxu0 %v196
    %391 = vmatpush.msra.mxu0 %v190
    %392 = vmatpush.msra.mxu0 %v184
    %393 = vmatpush.msra.mxu0 %v178
    %394 = vmatpush.msra.mxu0 %v172
    %395 = vmatpush.msra.mxu0 %v166
    %396 = vmatpush.msra.mxu0 %v160
    %397 = vmatpush.msra.mxu0 %v154
    %398 = vmatpush.msra.mxu0 %v148
    %399 = vmatpush.msra.mxu0 %v142
    %400 = vmatpush.msra.mxu0 %v136
    %401 = vmatpush.msra.mxu0 %v130
    %402 = vmatpush.msra.mxu0 %v124
    %403 = vmatpush.msra.mxu0 %v118
    %404 = vmatmul.f32.gmra.mxu0 %v106
    %v405 = vpop.f32.mrf.mxu0
    %v406 = vadd.f32 %v216, %v405
    %407 = vmatmul.f32.gmra.mxu0 %v107
    %v408 = vpop.f32.mrf.mxu0
    %v409 = vadd.f32 %v216, %v408
    %410 = vmatmul.f32.gmra.mxu0 %v108
    %v411 = vpop.f32.mrf.mxu0
    %v412 = vadd.f32 %v216, %v411
    %413 = vmatmul.f32.gmra.mxu0 %v109
    %v414 = vpop.f32.mrf.mxu0
    %v415 = vadd.f32 %v216, %v414
    %416 = vmatmul.f32.gmra.mxu0 %v110
    %v417 = vpop.f32.mrf.mxu0
    %v418 = vadd.f32 %v216, %v417
    %419 = vmatmul.f32.gmra.mxu0 %v111
    %v420 = vpop.f32.mrf.mxu0
    %v421 = vadd.f32 %v216, %v420
    %422 = vmatmul.f32.gmra.mxu0 %v112
    %v423 = vpop.f32.mrf.mxu0
    %v424 = vadd.f32 %v216, %v423
    %425 = vmatmul.f32.gmra.mxu0 %v113
    %v426 = vpop.f32.mrf.mxu0
    %v427 = vadd.f32 %v216, %v426
    %428 = vdwg.mxu0
    %429 = vmatpush.msra.mxu0 %v209
    %430 = vmatpush.msra.mxu0 %v203
    %431 = vmatpush.msra.mxu0 %v197
    %432 = vmatpush.msra.mxu0 %v191
    %433 = vmatpush.msra.mxu0 %v185
    %434 = vmatpush.msra.mxu0 %v179
    %435 = vmatpush.msra.mxu0 %v173
    %436 = vmatpush.msra.mxu0 %v167
    %437 = vmatpush.msra.mxu0 %v161
    %438 = vmatpush.msra.mxu0 %v155
    %439 = vmatpush.msra.mxu0 %v149
    %440 = vmatpush.msra.mxu0 %v143
    %441 = vmatpush.msra.mxu0 %v137
    %442 = vmatpush.msra.mxu0 %v131
    %443 = vmatpush.msra.mxu0 %v125
    %444 = vmatpush.msra.mxu0 %v119
    %445 = vmatmul.f32.gmra.mxu0 %v106
    %v446 = vpop.f32.mrf.mxu0
    %v447 = vadd.f32 %v217, %v446
    %448 = vmatmul.f32.gmra.mxu0 %v107
    %v449 = vpop.f32.mrf.mxu0
    %v450 = vadd.f32 %v217, %v449
    %451 = vmatmul.f32.gmra.mxu0 %v108
    %v452 = vpop.f32.mrf.mxu0
    %v453 = vadd.f32 %v217, %v452
    %454 = vmatmul.f32.gmra.mxu0 %v109
    %v455 = vpop.f32.mrf.mxu0
    %v456 = vadd.f32 %v217, %v455
    %457 = vmatmul.f32.gmra.mxu0 %v110
    %v458 = vpop.f32.mrf.mxu0
    %v459 = vadd.f32 %v217, %v458
    %460 = vmatmul.f32.gmra.mxu0 %v111
    %v461 = vpop.f32.mrf.mxu0
    %v462 = vadd.f32 %v217, %v461
    %463 = vmatmul.f32.gmra.mxu0 %v112
    %v464 = vpop.f32.mrf.mxu0
    %v465 = vadd.f32 %v217, %v464
    %466 = vmatmul.f32.gmra.mxu0 %v113
    %v467 = vpop.f32.mrf.mxu0
    %v468 = vadd.f32 %v217, %v467
    %469 = vdwg.mxu0
    %470 = vst [vmem:[#allocation2] sm:$0xff] %v242
    %471 = vst [vmem:[#allocation2 + $0x8] sm:$0xff] %v283
    %472 = vst [vmem:[#allocation2 + $0x10] sm:$0xff] %v324
    %473 = vst [vmem:[#allocation2 + $0x18] sm:$0xff] %v365
    %474 = vst [vmem:[#allocation2 + $0x20] sm:$0xff] %v406
    %475 = vst [vmem:[#allocation2 + $0x28] sm:$0xff] %v447
    %476 = vst [vmem:[#allocation2 + $0x30] sm:$0xff] %v245
    %477 = vst [vmem:[#allocation2 + $0x38] sm:$0xff] %v286
    %478 = vst [vmem:[#allocation2 + $0x40] sm:$0xff] %v327
    %479 = vst [vmem:[#allocation2 + $0x48] sm:$0xff] %v368
    %480 = vst [vmem:[#allocation2 + $0x50] sm:$0xff] %v409
    %481 = vst [vmem:[#allocation2 + $0x58] sm:$0xff] %v450
    %482 = vst [vmem:[#allocation2 + $0x60] sm:$0xff] %v248
    %483 = vst [vmem:[#allocation2 + $0x68] sm:$0xff] %v289
    %484 = vst [vmem:[#allocation2 + $0x70] sm:$0xff] %v330
    %485 = vst [vmem:[#allocation2 + $0x78] sm:$0xff] %v371
    %486 = vst [vmem:[#allocation2 + $0x80] sm:$0xff] %v412
    %487 = vst [vmem:[#allocation2 + $0x88] sm:$0xff] %v453
    %488 = vst [vmem:[#allocation2 + $0x90] sm:$0xff] %v251
    %489 = vst [vmem:[#allocation2 + $0x98] sm:$0xff] %v292
    %490 = vst [vmem:[#allocation2 + $0xa0] sm:$0xff] %v333
    %491 = vst [vmem:[#allocation2 + $0xa8] sm:$0xff] %v374
    %492 = vst [vmem:[#allocation2 + $0xb0] sm:$0xff] %v415
    %493 = vst [vmem:[#allocation2 + $0xb8] sm:$0xff] %v456
    %494 = vst [vmem:[#allocation2 + $0xc0] sm:$0xff] %v254
    %495 = vst [vmem:[#allocation2 + $0xc8] sm:$0xff] %v295
    %496 = vst [vmem:[#allocation2 + $0xd0] sm:$0xff] %v336
    %497 = vst [vmem:[#allocation2 + $0xd8] sm:$0xff] %v377
    %498 = vst [vmem:[#allocation2 + $0xe0] sm:$0xff] %v418
    %499 = vst [vmem:[#allocation2 + $0xe8] sm:$0xff] %v459
    %500 = vst [vmem:[#allocation2 + $0xf0] sm:$0xff] %v257
    %501 = vst [vmem:[#allocation2 + $0xf8] sm:$0xff] %v298
    %502 = vst [vmem:[#allocation2 + $0x100] sm:$0xff] %v339
    %503 = vst [vmem:[#allocation2 + $0x108] sm:$0xff] %v380
    %504 = vst [vmem:[#allocation2 + $0x110] sm:$0xff] %v421
    %505 = vst [vmem:[#allocation2 + $0x118] sm:$0xff] %v462
    %506 = vst [vmem:[#allocation2 + $0x120] sm:$0xff] %v260
    %507 = vst [vmem:[#allocation2 + $0x128] sm:$0xff] %v301
    %508 = vst [vmem:[#allocation2 + $0x130] sm:$0xff] %v342
    %509 = vst [vmem:[#allocation2 + $0x138] sm:$0xff] %v383
    %510 = vst [vmem:[#allocation2 + $0x140] sm:$0xff] %v424
    %511 = vst [vmem:[#allocation2 + $0x148] sm:$0xff] %v465
    %512 = vst [vmem:[#allocation2 + $0x150] sm:$0xff] %v263
    %513 = vst [vmem:[#allocation2 + $0x158] sm:$0xff] %v304
    %514 = vst [vmem:[#allocation2 + $0x160] sm:$0xff] %v345
    %515 = vst [vmem:[#allocation2 + $0x168] sm:$0xff] %v386
    %516 = vst [vmem:[#allocation2 + $0x170] sm:$0xff] %v427
    %517 = vst [vmem:[#allocation2 + $0x178] sm:$0xff] %v468
    %v518 = vld [vmem:[#allocation10] sm:$0xff]
    %v519 = vld [vmem:[#allocation10 + $0x8] sm:$0xff]
    %v520 = vld [vmem:[#allocation10 + $0x10] sm:$0xff]
    %v521 = vld [vmem:[#allocation10 + $0x18] sm:$0xff]
    %v522 = vld [vmem:[#allocation10 + $0x20] sm:$0xff]
    %v523 = vld [vmem:[#allocation10 + $0x28] sm:$0xff]
    %v524 = vld [vmem:[#allocation10 + $0x30] sm:$0xff]
    %v525 = vld [vmem:[#allocation10 + $0x38] sm:$0xff]
    %v526 = vld [vmem:[#allocation10 + $0x40] sm:$0xff]
    %v527 = vld [vmem:[#allocation10 + $0x48] sm:$0xff]
    %v528 = vld [vmem:[#allocation10 + $0x50] sm:$0xff]
    %v529 = vld [vmem:[#allocation10 + $0x58] sm:$0xff]
    %v530 = vld [vmem:[#allocation10 + $0x60] sm:$0xff]
    %v531 = vld [vmem:[#allocation10 + $0x68] sm:$0xff]
    %v532 = vld [vmem:[#allocation10 + $0x70] sm:$0xff]
    %v533 = vld [vmem:[#allocation10 + $0x78] sm:$0xff]
    %v534 = vld [vmem:[#allocation10 + $0x80] sm:$0xff]
    %v535 = vld [vmem:[#allocation10 + $0x88] sm:$0xff]
    %v536 = vld [vmem:[#allocation10 + $0x90] sm:$0xff]
    %v537 = vld [vmem:[#allocation10 + $0x98] sm:$0xff]
    %v538 = vld [vmem:[#allocation10 + $0xa0] sm:$0xff]
    %v539 = vld [vmem:[#allocation10 + $0xa8] sm:$0xff]
    %v540 = vld [vmem:[#allocation10 + $0xb0] sm:$0xff]
    %v541 = vld [vmem:[#allocation10 + $0xb8] sm:$0xff]
    %v542 = vld [vmem:[#allocation10 + $0xc0] sm:$0xff]
    %v543 = vld [vmem:[#allocation10 + $0xc8] sm:$0xff]
    %v544 = vld [vmem:[#allocation10 + $0xd0] sm:$0xff]
    %v545 = vld [vmem:[#allocation10 + $0xd8] sm:$0xff]
    %v546 = vld [vmem:[#allocation10 + $0xe0] sm:$0xff]
    %v547 = vld [vmem:[#allocation10 + $0xe8] sm:$0xff]
    %v548 = vld [vmem:[#allocation10 + $0xf0] sm:$0xff]
    %v549 = vld [vmem:[#allocation10 + $0xf8] sm:$0xff]
    %v550 = vld [vmem:[#allocation10 + $0x100] sm:$0xff]
    %v551 = vld [vmem:[#allocation10 + $0x108] sm:$0xff]
    %v552 = vld [vmem:[#allocation10 + $0x110] sm:$0xff]
    %v553 = vld [vmem:[#allocation10 + $0x118] sm:$0xff]
    %v554 = vld [vmem:[#allocation10 + $0x120] sm:$0xff]
    %v555 = vld [vmem:[#allocation10 + $0x128] sm:$0xff]
    %v556 = vld [vmem:[#allocation10 + $0x130] sm:$0xff]
    %v557 = vld [vmem:[#allocation10 + $0x138] sm:$0xff]
    %v558 = vld [vmem:[#allocation10 + $0x140] sm:$0xff]
    %v559 = vld [vmem:[#allocation10 + $0x148] sm:$0xff]
    %v560 = vld [vmem:[#allocation10 + $0x150] sm:$0xff]
    %v561 = vld [vmem:[#allocation10 + $0x158] sm:$0xff]
    %v562 = vld [vmem:[#allocation10 + $0x160] sm:$0xff]
    %v563 = vld [vmem:[#allocation10 + $0x168] sm:$0xff]
    %v564 = vld [vmem:[#allocation10 + $0x170] sm:$0xff]
    %v565 = vld [vmem:[#allocation10 + $0x178] sm:$0xff]
    %v566 = vld [vmem:[#allocation10 + $0x180] sm:$0xff]
    %v567 = vld [vmem:[#allocation10 + $0x188] sm:$0xff]
    %v568 = vld [vmem:[#allocation10 + $0x190] sm:$0xff]
    %v569 = vld [vmem:[#allocation10 + $0x198] sm:$0xff]
    %v570 = vld [vmem:[#allocation10 + $0x1a0] sm:$0xff]
    %v571 = vld [vmem:[#allocation10 + $0x1a8] sm:$0xff]
    %v572 = vld [vmem:[#allocation10 + $0x1b0] sm:$0xff]
    %v573 = vld [vmem:[#allocation10 + $0x1b8] sm:$0xff]
    %v574 = vld [vmem:[#allocation10 + $0x1c0] sm:$0xff]
    %v575 = vld [vmem:[#allocation10 + $0x1c8] sm:$0xff]
    %v576 = vld [vmem:[#allocation10 + $0x1d0] sm:$0xff]
    %v577 = vld [vmem:[#allocation10 + $0x1d8] sm:$0xff]
    %v578 = vld [vmem:[#allocation10 + $0x1e0] sm:$0xff]
    %v579 = vld [vmem:[#allocation10 + $0x1e8] sm:$0xff]
    %v580 = vld [vmem:[#allocation10 + $0x1f0] sm:$0xff]
    %v581 = vld [vmem:[#allocation10 + $0x1f8] sm:$0xff]
    %v582 = vld [vmem:[#allocation10 + $0x200] sm:$0xff]
    %v583 = vld [vmem:[#allocation10 + $0x208] sm:$0xff]
    %v584 = vld [vmem:[#allocation10 + $0x210] sm:$0xff]
    %v585 = vld [vmem:[#allocation10 + $0x218] sm:$0xff]
    %v586 = vld [vmem:[#allocation10 + $0x220] sm:$0xff]
    %v587 = vld [vmem:[#allocation10 + $0x228] sm:$0xff]
    %v588 = vld [vmem:[#allocation10 + $0x230] sm:$0xff]
    %v589 = vld [vmem:[#allocation10 + $0x238] sm:$0xff]
    %v590 = vld [vmem:[#allocation10 + $0x240] sm:$0xff]
    %v591 = vld [vmem:[#allocation10 + $0x248] sm:$0xff]
    %v592 = vld [vmem:[#allocation10 + $0x250] sm:$0xff]
    %v593 = vld [vmem:[#allocation10 + $0x258] sm:$0xff]
    %v594 = vld [vmem:[#allocation10 + $0x260] sm:$0xff]
    %v595 = vld [vmem:[#allocation10 + $0x268] sm:$0xff]
    %v596 = vld [vmem:[#allocation10 + $0x270] sm:$0xff]
    %v597 = vld [vmem:[#allocation10 + $0x278] sm:$0xff]
    %v598 = vld [vmem:[#allocation10 + $0x280] sm:$0xff]
    %v599 = vld [vmem:[#allocation10 + $0x288] sm:$0xff]
    %v600 = vld [vmem:[#allocation10 + $0x290] sm:$0xff]
    %v601 = vld [vmem:[#allocation10 + $0x298] sm:$0xff]
    %v602 = vld [vmem:[#allocation10 + $0x2a0] sm:$0xff]
    %v603 = vld [vmem:[#allocation10 + $0x2a8] sm:$0xff]
    %v604 = vld [vmem:[#allocation10 + $0x2b0] sm:$0xff]
    %v605 = vld [vmem:[#allocation10 + $0x2b8] sm:$0xff]
    %v606 = vld [vmem:[#allocation10 + $0x2c0] sm:$0xff]
    %v607 = vld [vmem:[#allocation10 + $0x2c8] sm:$0xff]
    %v608 = vld [vmem:[#allocation10 + $0x2d0] sm:$0xff]
    %v609 = vld [vmem:[#allocation10 + $0x2d8] sm:$0xff]
    %v610 = vld [vmem:[#allocation10 + $0x2e0] sm:$0xff]
    %v611 = vld [vmem:[#allocation10 + $0x2e8] sm:$0xff]
    %v612 = vld [vmem:[#allocation10 + $0x2f0] sm:$0xff]
    %v613 = vld [vmem:[#allocation10 + $0x2f8] sm:$0xff]
    %v614 = vld [vmem:[#allocation10 + $0x300] sm:$0xff]
    %v615 = vld [vmem:[#allocation10 + $0x308] sm:$0xff]
    %v616 = vld [vmem:[#allocation10 + $0x310] sm:$0xff]
    %v617 = vld [vmem:[#allocation10 + $0x318] sm:$0xff]
    %v618 = vld [vmem:[#allocation10 + $0x320] sm:$0xff]
    %v619 = vld [vmem:[#allocation10 + $0x328] sm:$0xff]
    %v620 = vld [vmem:[#allocation10 + $0x330] sm:$0xff]
    %v621 = vld [vmem:[#allocation10 + $0x338] sm:$0xff]
    %v622 = vld [vmem:[#allocation10 + $0x340] sm:$0xff]
    %v623 = vld [vmem:[#allocation10 + $0x348] sm:$0xff]
    %v624 = vld [vmem:[#allocation10 + $0x350] sm:$0xff]
    %v625 = vld [vmem:[#allocation10 + $0x358] sm:$0xff]
    %v626 = vld [vmem:[#allocation10 + $0x360] sm:$0xff]
    %v627 = vld [vmem:[#allocation10 + $0x368] sm:$0xff]
    %v628 = vld [vmem:[#allocation10 + $0x370] sm:$0xff]
    %v629 = vld [vmem:[#allocation10 + $0x378] sm:$0xff]
    %v630 = vld [vmem:[#allocation10 + $0x380] sm:$0xff]
    %v631 = vld [vmem:[#allocation10 + $0x388] sm:$0xff]
    %v632 = vld [vmem:[#allocation10 + $0x390] sm:$0xff]
    %v633 = vld [vmem:[#allocation10 + $0x398] sm:$0xff]
    %v634 = vld [vmem:[#allocation10 + $0x3a0] sm:$0xff]
    %v635 = vld [vmem:[#allocation10 + $0x3a8] sm:$0xff]
    %v636 = vld [vmem:[#allocation10 + $0x3b0] sm:$0xff]
    %v637 = vld [vmem:[#allocation10 + $0x3b8] sm:$0xff]
    %v638 = vld [vmem:[#allocation10 + $0x3c0] sm:$0xff]
    %v639 = vld [vmem:[#allocation10 + $0x3c8] sm:$0xff]
    %v640 = vld [vmem:[#allocation10 + $0x3d0] sm:$0xff]
    %v641 = vld [vmem:[#allocation10 + $0x3d8] sm:$0xff]
    %v642 = vld [vmem:[#allocation10 + $0x3e0] sm:$0xff]
    %v643 = vld [vmem:[#allocation10 + $0x3e8] sm:$0xff]
    %v644 = vld [vmem:[#allocation10 + $0x3f0] sm:$0xff]
    %v645 = vld [vmem:[#allocation10 + $0x3f8] sm:$0xff]
    %v646 = vld [vmem:[#allocation10 + $0x400] sm:$0xff]
    %v647 = vld [vmem:[#allocation10 + $0x408] sm:$0xff]
    %v648 = vld [vmem:[#allocation10 + $0x410] sm:$0xff]
    %v649 = vld [vmem:[#allocation10 + $0x418] sm:$0xff]
    %v650 = vld [vmem:[#allocation10 + $0x420] sm:$0xff]
    %v651 = vld [vmem:[#allocation10 + $0x428] sm:$0xff]
    %v652 = vld [vmem:[#allocation10 + $0x430] sm:$0xff]
    %v653 = vld [vmem:[#allocation10 + $0x438] sm:$0xff]
    %v654 = vld [vmem:[#allocation10 + $0x440] sm:$0xff]
    %v655 = vld [vmem:[#allocation10 + $0x448] sm:$0xff]
    %v656 = vld [vmem:[#allocation10 + $0x450] sm:$0xff]
    %v657 = vld [vmem:[#allocation10 + $0x458] sm:$0xff]
    %v658 = vld [vmem:[#allocation10 + $0x460] sm:$0xff]
    %v659 = vld [vmem:[#allocation10 + $0x468] sm:$0xff]
    %v660 = vld [vmem:[#allocation10 + $0x470] sm:$0xff]
    %v661 = vld [vmem:[#allocation10 + $0x478] sm:$0xff]
    %v662 = vld [vmem:[#allocation10 + $0x480] sm:$0xff]
    %v663 = vld [vmem:[#allocation10 + $0x488] sm:$0xff]
    %v664 = vld [vmem:[#allocation10 + $0x490] sm:$0xff]
    %v665 = vld [vmem:[#allocation10 + $0x498] sm:$0xff]
    %v666 = vld [vmem:[#allocation10 + $0x4a0] sm:$0xff]
    %v667 = vld [vmem:[#allocation10 + $0x4a8] sm:$0xff]
    %v668 = vld [vmem:[#allocation10 + $0x4b0] sm:$0xff]
    %v669 = vld [vmem:[#allocation10 + $0x4b8] sm:$0xff]
    %v670 = vld [vmem:[#allocation10 + $0x4c0] sm:$0xff]
    %v671 = vld [vmem:[#allocation10 + $0x4c8] sm:$0xff]
    %v672 = vld [vmem:[#allocation10 + $0x4d0] sm:$0xff]
    %v673 = vld [vmem:[#allocation10 + $0x4d8] sm:$0xff]
    %v674 = vld [vmem:[#allocation10 + $0x4e0] sm:$0xff]
    %v675 = vld [vmem:[#allocation10 + $0x4e8] sm:$0xff]
    %v676 = vld [vmem:[#allocation10 + $0x4f0] sm:$0xff]
    %v677 = vld [vmem:[#allocation10 + $0x4f8] sm:$0xff]
    %v678 = vld [vmem:[#allocation10 + $0x500] sm:$0xff]
    %v679 = vld [vmem:[#allocation10 + $0x508] sm:$0xff]
    %v680 = vld [vmem:[#allocation10 + $0x510] sm:$0xff]
    %v681 = vld [vmem:[#allocation10 + $0x518] sm:$0xff]
    %v682 = vld [vmem:[#allocation10 + $0x520] sm:$0xff]
    %v683 = vld [vmem:[#allocation10 + $0x528] sm:$0xff]
    %v684 = vld [vmem:[#allocation10 + $0x530] sm:$0xff]
    %v685 = vld [vmem:[#allocation10 + $0x538] sm:$0xff]
    %v686 = vld [vmem:[#allocation10 + $0x540] sm:$0xff]
    %v687 = vld [vmem:[#allocation10 + $0x548] sm:$0xff]
    %v688 = vld [vmem:[#allocation10 + $0x550] sm:$0xff]
    %v689 = vld [vmem:[#allocation10 + $0x558] sm:$0xff]
    %v690 = vld [vmem:[#allocation10 + $0x560] sm:$0xff]
    %v691 = vld [vmem:[#allocation10 + $0x568] sm:$0xff]
    %v692 = vld [vmem:[#allocation10 + $0x570] sm:$0xff]
    %v693 = vld [vmem:[#allocation10 + $0x578] sm:$0xff]
    %v694 = vld [vmem:[#allocation10 + $0x580] sm:$0xff]
    %v695 = vld [vmem:[#allocation10 + $0x588] sm:$0xff]
    %v696 = vld [vmem:[#allocation10 + $0x590] sm:$0xff]
    %v697 = vld [vmem:[#allocation10 + $0x598] sm:$0xff]
    %v698 = vld [vmem:[#allocation10 + $0x5a0] sm:$0xff]
    %v699 = vld [vmem:[#allocation10 + $0x5a8] sm:$0xff]
    %v700 = vld [vmem:[#allocation10 + $0x5b0] sm:$0xff]
    %v701 = vld [vmem:[#allocation10 + $0x5b8] sm:$0xff]
    %v702 = vld [vmem:[#allocation10 + $0x5c0] sm:$0xff]
    %v703 = vld [vmem:[#allocation10 + $0x5c8] sm:$0xff]
    %v704 = vld [vmem:[#allocation10 + $0x5d0] sm:$0xff]
    %v705 = vld [vmem:[#allocation10 + $0x5d8] sm:$0xff]
    %v706 = vld [vmem:[#allocation10 + $0x5e0] sm:$0xff]
    %v707 = vld [vmem:[#allocation10 + $0x5e8] sm:$0xff]
    %v708 = vld [vmem:[#allocation10 + $0x5f0] sm:$0xff]
    %v709 = vld [vmem:[#allocation10 + $0x5f8] sm:$0xff]
    %v710 = vld [vmem:[%s4] sm:$0x1]
    %v711 = vld [vmem:[%s5] sm:$0x1]
    %712 = vmatpush.msra.mxu0 %v608
    %713 = vmatpush.msra.mxu0 %v602
    %714 = vmatpush.msra.mxu0 %v596
    %715 = vmatpush.msra.mxu0 %v590
    %716 = vmatpush.msra.mxu0 %v584
    %717 = vmatpush.msra.mxu0 %v578
    %718 = vmatpush.msra.mxu0 %v572
    %719 = vmatpush.msra.mxu0 %v566
    %720 = vmatpush.msra.mxu0 %v560
    %721 = vmatpush.msra.mxu0 %v554
    %722 = vmatpush.msra.mxu0 %v548
    %723 = vmatpush.msra.mxu0 %v542
    %724 = vmatpush.msra.mxu0 %v536
    %725 = vmatpush.msra.mxu0 %v530
    %726 = vmatpush.msra.mxu0 %v524
    %727 = vmatpush.msra.mxu0 %v518
    %728 = vmatmul.f32.gmra.mxu0 0.0
    %v729 = vpop.f32.mrf.mxu0
    %v730 = vadd.f32 0.0, %v729
    %731 = vdwg.mxu0
    %732 = vmatpush.msra.mxu0 %v704
    %733 = vmatpush.msra.mxu0 %v698
    %734 = vmatpush.msra.mxu0 %v692
    %735 = vmatpush.msra.mxu0 %v686
    %736 = vmatpush.msra.mxu0 %v680
    %737 = vmatpush.msra.mxu0 %v674
    %738 = vmatpush.msra.mxu0 %v668
    %739 = vmatpush.msra.mxu0 %v662
    %740 = vmatpush.msra.mxu0 %v656
    %741 = vmatpush.msra.mxu0 %v650
    %742 = vmatpush.msra.mxu0 %v644
    %743 = vmatpush.msra.mxu0 %v638
    %744 = vmatpush.msra.mxu0 %v632
    %745 = vmatpush.msra.mxu0 %v626
    %746 = vmatpush.msra.mxu0 %v620
    %747 = vmatpush.msra.mxu0 %v614
    %748 = vmatmul.f32.gmra.mxu0 0.0
    %v749 = vpop.f32.mrf.mxu0
    %v750 = vadd.f32 %v730, %v749
    %751 = vdwg.mxu0
    %752 = vmatpush.msra.mxu0 %v609
    %753 = vmatpush.msra.mxu0 %v603
    %754 = vmatpush.msra.mxu0 %v597
    %755 = vmatpush.msra.mxu0 %v591
    %756 = vmatpush.msra.mxu0 %v585
    %757 = vmatpush.msra.mxu0 %v579
    %758 = vmatpush.msra.mxu0 %v573
    %759 = vmatpush.msra.mxu0 %v567
    %760 = vmatpush.msra.mxu0 %v561
    %761 = vmatpush.msra.mxu0 %v555
    %762 = vmatpush.msra.mxu0 %v549
    %763 = vmatpush.msra.mxu0 %v543
    %764 = vmatpush.msra.mxu0 %v537
    %765 = vmatpush.msra.mxu0 %v531
    %766 = vmatpush.msra.mxu0 %v525
    %767 = vmatpush.msra.mxu0 %v519
    %768 = vmatmul.f32.gmra.mxu0 0.0
    %v769 = vpop.f32.mrf.mxu0
    %v770 = vadd.f32 0.0, %v769
    %771 = vdwg.mxu0
    %772 = vmatpush.msra.mxu0 %v705
    %773 = vmatpush.msra.mxu0 %v699
    %774 = vmatpush.msra.mxu0 %v693
    %775 = vmatpush.msra.mxu0 %v687
    %776 = vmatpush.msra.mxu0 %v681
    %777 = vmatpush.msra.mxu0 %v675
    %778 = vmatpush.msra.mxu0 %v669
    %779 = vmatpush.msra.mxu0 %v663
    %780 = vmatpush.msra.mxu0 %v657
    %781 = vmatpush.msra.mxu0 %v651
    %782 = vmatpush.msra.mxu0 %v645
    %783 = vmatpush.msra.mxu0 %v639
    %784 = vmatpush.msra.mxu0 %v633
    %785 = vmatpush.msra.mxu0 %v627
    %786 = vmatpush.msra.mxu0 %v621
    %787 = vmatpush.msra.mxu0 %v615
    %788 = vmatmul.f32.gmra.mxu0 0.0
    %v789 = vpop.f32.mrf.mxu0
    %v790 = vadd.f32 %v770, %v789
    %791 = vdwg.mxu0
    %792 = vmatpush.msra.mxu0 %v610
    %793 = vmatpush.msra.mxu0 %v604
    %794 = vmatpush.msra.mxu0 %v598
    %795 = vmatpush.msra.mxu0 %v592
    %796 = vmatpush.msra.mxu0 %v586
    %797 = vmatpush.msra.mxu0 %v580
    %798 = vmatpush.msra.mxu0 %v574
    %799 = vmatpush.msra.mxu0 %v568
    %800 = vmatpush.msra.mxu0 %v562
    %801 = vmatpush.msra.mxu0 %v556
    %802 = vmatpush.msra.mxu0 %v550
    %803 = vmatpush.msra.mxu0 %v544
    %804 = vmatpush.msra.mxu0 %v538
    %805 = vmatpush.msra.mxu0 %v532
    %806 = vmatpush.msra.mxu0 %v526
    %807 = vmatpush.msra.mxu0 %v520
    %808 = vmatmul.f32.gmra.mxu0 0.0
    %v809 = vpop.f32.mrf.mxu0
    %v810 = vadd.f32 0.0, %v809
    %811 = vdwg.mxu0
    %812 = vmatpush.msra.mxu0 %v706
    %813 = vmatpush.msra.mxu0 %v700
    %814 = vmatpush.msra.mxu0 %v694
    %815 = vmatpush.msra.mxu0 %v688
    %816 = vmatpush.msra.mxu0 %v682
    %817 = vmatpush.msra.mxu0 %v676
    %818 = vmatpush.msra.mxu0 %v670
    %819 = vmatpush.msra.mxu0 %v664
    %820 = vmatpush.msra.mxu0 %v658
    %821 = vmatpush.msra.mxu0 %v652
    %822 = vmatpush.msra.mxu0 %v646
    %823 = vmatpush.msra.mxu0 %v640
    %824 = vmatpush.msra.mxu0 %v634
    %825 = vmatpush.msra.mxu0 %v628
    %826 = vmatpush.msra.mxu0 %v622
    %827 = vmatpush.msra.mxu0 %v616
    %828 = vmatmul.f32.gmra.mxu0 0.0
    %v829 = vpop.f32.mrf.mxu0
    %v830 = vadd.f32 %v810, %v829
    %831 = vdwg.mxu0
    %832 = vmatpush.msra.mxu0 %v611
    %833 = vmatpush.msra.mxu0 %v605
    %834 = vmatpush.msra.mxu0 %v599
    %835 = vmatpush.msra.mxu0 %v593
    %836 = vmatpush.msra.mxu0 %v587
    %837 = vmatpush.msra.mxu0 %v581
    %838 = vmatpush.msra.mxu0 %v575
    %839 = vmatpush.msra.mxu0 %v569
    %840 = vmatpush.msra.mxu0 %v563
    %841 = vmatpush.msra.mxu0 %v557
    %842 = vmatpush.msra.mxu0 %v551
    %843 = vmatpush.msra.mxu0 %v545
    %844 = vmatpush.msra.mxu0 %v539
    %845 = vmatpush.msra.mxu0 %v533
    %846 = vmatpush.msra.mxu0 %v527
    %847 = vmatpush.msra.mxu0 %v521
    %848 = vmatmul.f32.gmra.mxu0 0.0
    %v849 = vpop.f32.mrf.mxu0
    %v850 = vadd.f32 0.0, %v849
    %851 = vdwg.mxu0
    %852 = vmatpush.msra.mxu0 %v707
    %853 = vmatpush.msra.mxu0 %v701
    %854 = vmatpush.msra.mxu0 %v695
    %855 = vmatpush.msra.mxu0 %v689
    %856 = vmatpush.msra.mxu0 %v683
    %857 = vmatpush.msra.mxu0 %v677
    %858 = vmatpush.msra.mxu0 %v671
    %859 = vmatpush.msra.mxu0 %v665
    %860 = vmatpush.msra.mxu0 %v659
    %861 = vmatpush.msra.mxu0 %v653
    %862 = vmatpush.msra.mxu0 %v647
    %863 = vmatpush.msra.mxu0 %v641
    %864 = vmatpush.msra.mxu0 %v635
    %865 = vmatpush.msra.mxu0 %v629
    %866 = vmatpush.msra.mxu0 %v623
    %867 = vmatpush.msra.mxu0 %v617
    %868 = vmatmul.f32.gmra.mxu0 0.0
    %v869 = vpop.f32.mrf.mxu0
    %v870 = vadd.f32 %v850, %v869
    %871 = vdwg.mxu0
    %872 = vmatpush.msra.mxu0 %v612
    %873 = vmatpush.msra.mxu0 %v606
    %874 = vmatpush.msra.mxu0 %v600
    %875 = vmatpush.msra.mxu0 %v594
    %876 = vmatpush.msra.mxu0 %v588
    %877 = vmatpush.msra.mxu0 %v582
    %878 = vmatpush.msra.mxu0 %v576
    %879 = vmatpush.msra.mxu0 %v570
    %880 = vmatpush.msra.mxu0 %v564
    %881 = vmatpush.msra.mxu0 %v558
    %882 = vmatpush.msra.mxu0 %v552
    %883 = vmatpush.msra.mxu0 %v546
    %884 = vmatpush.msra.mxu0 %v540
    %885 = vmatpush.msra.mxu0 %v534
    %886 = vmatpush.msra.mxu0 %v528
    %887 = vmatpush.msra.mxu0 %v522
    %888 = vmatmul.f32.gmra.mxu0 0.0
    %v889 = vpop.f32.mrf.mxu0
    %v890 = vadd.f32 0.0, %v889
    %891 = vdwg.mxu0
    %892 = vmatpush.msra.mxu0 %v708
    %893 = vmatpush.msra.mxu0 %v702
    %894 = vmatpush.msra.mxu0 %v696
    %895 = vmatpush.msra.mxu0 %v690
    %896 = vmatpush.msra.mxu0 %v684
    %897 = vmatpush.msra.mxu0 %v678
    %898 = vmatpush.msra.mxu0 %v672
    %899 = vmatpush.msra.mxu0 %v666
    %900 = vmatpush.msra.mxu0 %v660
    %901 = vmatpush.msra.mxu0 %v654
    %902 = vmatpush.msra.mxu0 %v648
    %903 = vmatpush.msra.mxu0 %v642
    %904 = vmatpush.msra.mxu0 %v636
    %905 = vmatpush.msra.mxu0 %v630
    %906 = vmatpush.msra.mxu0 %v624
    %907 = vmatpush.msra.mxu0 %v618
    %908 = vmatmul.f32.gmra.mxu0 0.0
    %v909 = vpop.f32.mrf.mxu0
    %v910 = vadd.f32 %v890, %v909
    %911 = vdwg.mxu0
    %912 = vmatpush.msra.mxu0 %v613
    %913 = vmatpush.msra.mxu0 %v607
    %914 = vmatpush.msra.mxu0 %v601
    %915 = vmatpush.msra.mxu0 %v595
    %916 = vmatpush.msra.mxu0 %v589
    %917 = vmatpush.msra.mxu0 %v583
    %918 = vmatpush.msra.mxu0 %v577
    %919 = vmatpush.msra.mxu0 %v571
    %920 = vmatpush.msra.mxu0 %v565
    %921 = vmatpush.msra.mxu0 %v559
    %922 = vmatpush.msra.mxu0 %v553
    %923 = vmatpush.msra.mxu0 %v547
    %924 = vmatpush.msra.mxu0 %v541
    %925 = vmatpush.msra.mxu0 %v535
    %926 = vmatpush.msra.mxu0 %v529
    %927 = vmatpush.msra.mxu0 %v523
    %928 = vmatmul.f32.gmra.mxu0 0.0
    %v929 = vpop.f32.mrf.mxu0
    %v930 = vadd.f32 0.0, %v929
    %931 = vdwg.mxu0
    %932 = vmatpush.msra.mxu0 %v709
    %933 = vmatpush.msra.mxu0 %v703
    %934 = vmatpush.msra.mxu0 %v697
    %935 = vmatpush.msra.mxu0 %v691
    %936 = vmatpush.msra.mxu0 %v685
    %937 = vmatpush.msra.mxu0 %v679
    %938 = vmatpush.msra.mxu0 %v673
    %939 = vmatpush.msra.mxu0 %v667
    %940 = vmatpush.msra.mxu0 %v661
    %941 = vmatpush.msra.mxu0 %v655
    %942 = vmatpush.msra.mxu0 %v649
    %943 = vmatpush.msra.mxu0 %v643
    %944 = vmatpush.msra.mxu0 %v637
    %945 = vmatpush.msra.mxu0 %v631
    %946 = vmatpush.msra.mxu0 %v625
    %947 = vmatpush.msra.mxu0 %v619
    %948 = vmatmul.f32.gmra.mxu0 0.0
    %v949 = vpop.f32.mrf.mxu0
    %v950 = vadd.f32 %v930, %v949
    %951 = vdwg.mxu0
    %v952 = vld [vmem:[#allocation2] sm:$0xff]
    %v953 = vld [vmem:[#allocation2 + $0x8] sm:$0xff]
    %v954 = vld [vmem:[#allocation2 + $0x10] sm:$0xff]
    %s955 = scalar_lea.vmem [#allocation2], 336
    %v956 = vld [vmem:[%s955 + $0x18] sm:$0xff]
    %v957 = vld [vmem:[%s955 + $0x20] sm:$0xff]
    %v958 = vld [vmem:[%s955 + $0x28] sm:$0xff]
    %v959 = vadd.f32 %v952, %v750
    %v960 = vxor.u32 %v959, 2147483648
    %v961 = vmul.f32 %v960, 1.442695
    %v962 = vpow.pop %v961
    %v963 = vadd.f32 %v962, 1.0
    %v964 = vrcp.pop %v963
    %v965 = vmul.f32 %v963, %v964
    %v966 = vsub.f32 1.0, %v965
    %v967 = vmul.f32 %v964, %v966
    %v968 = vadd.f32 %v964, %v967
    %vm969 = vweird.f32 %v963
    %vm970 = vweird.f32 %v964
    %vm971 = vmor %vm969, %vm970
    %v972 = vsel %vm971, %v964, %v968
    %v973 = vand.u32 2147483647, %v963
    %vm974 = vcmp.eq.f32.partialorder %v973, 8.507059e+37
    %v975 = vand.u32 %v963, 2147483648
    %v976 = vor.u32 1.1754944e-38, %v975
    %v977 = vsel %vm974, %v976, %v972
    %v978 = vmul.f32 1.0, %v977
    %v979 = vadd.f32 %v953, %v790
    %v980 = vxor.u32 %v979, 2147483648
    %v981 = vmul.f32 %v980, 1.442695
    %v982 = vpow.pop %v981
    %v983 = vadd.f32 %v982, 1.0
    %v984 = vrcp.pop %v983
    %v985 = vmul.f32 %v983, %v984
    %v986 = vsub.f32 1.0, %v985
    %v987 = vmul.f32 %v984, %v986
    %v988 = vadd.f32 %v984, %v987
    %vm989 = vweird.f32 %v983
    %vm990 = vweird.f32 %v984
    %vm991 = vmor %vm989, %vm990
    %v992 = vsel %vm991, %v984, %v988
    %v993 = vand.u32 2147483647, %v983
    %vm994 = vcmp.eq.f32.partialorder %v993, 8.507059e+37
    %v995 = vand.u32 %v983, 2147483648
    %v996 = vor.u32 1.1754944e-38, %v995
    %v997 = vsel %vm994, %v996, %v992
    %v998 = vmul.f32 1.0, %v997
    %v1000 = vperm.slane %v710, 0
    %v1002 = vadd.f32 %v830, %v1000
    %v1003 = vmul.f32 %v978, %v1002
    %v1004 = vadd.f32 %v954, %v1003
    %v1005 = vtanh.pop %v1004
    %v1006 = vsub.f32 1.0, %v998
    %v1007 = vmul.f32 %v1006, %v1005
    %v1008 = vmul.f32 %v998, 0.0
    %v1009 = vadd.f32 %v1007, %v1008
    %v1010 = vadd.f32 %v956, %v870
    %v1011 = vxor.u32 %v1010, 2147483648
    %v1012 = vmul.f32 %v1011, 1.442695
    %v1013 = vpow.pop %v1012
    %v1014 = vadd.f32 %v1013, 1.0
    %v1015 = vrcp.pop %v1014
    %v1016 = vmul.f32 %v1014, %v1015
    %v1017 = vsub.f32 1.0, %v1016
    %v1018 = vmul.f32 %v1015, %v1017
    %v1019 = vadd.f32 %v1015, %v1018
    %vm1020 = vweird.f32 %v1014
    %vm1021 = vweird.f32 %v1015
    %vm1022 = vmor %vm1020, %vm1021
    %v1023 = vsel %vm1022, %v1015, %v1019
    %v1024 = vand.u32 2147483647, %v1014
    %vm1025 = vcmp.eq.f32.partialorder %v1024, 8.507059e+37
    %v1026 = vand.u32 %v1014, 2147483648
    %v1027 = vor.u32 1.1754944e-38, %v1026
    %v1028 = vsel %vm1025, %v1027, %v1023
    %v1029 = vmul.f32 1.0, %v1028
    %v1030 = vadd.f32 %v957, %v910
    %v1031 = vxor.u32 %v1030, 2147483648
    %v1032 = vmul.f32 %v1031, 1.442695
    %v1033 = vpow.pop %v1032
    %v1034 = vadd.f32 %v1033, 1.0
    %v1035 = vrcp.pop %v1034
    %v1036 = vmul.f32 %v1034, %v1035
    %v1037 = vsub.f32 1.0, %v1036
    %v1038 = vmul.f32 %v1035, %v1037
    %v1039 = vadd.f32 %v1035, %v1038
    %vm1040 = vweird.f32 %v1034
    %vm1041 = vweird.f32 %v1035
    %vm1042 = vmor %vm1040, %vm1041
    %v1043 = vsel %vm1042, %v1035, %v1039
    %v1044 = vand.u32 2147483647, %v1034
    %vm1045 = vcmp.eq.f32.partialorder %v1044, 8.507059e+37
    %v1046 = vand.u32 %v1034, 2147483648
    %v1047 = vor.u32 1.1754944e-38, %v1046
    %v1048 = vsel %vm1045, %v1047, %v1043
    %v1049 = vmul.f32 1.0, %v1048
    %v1051 = vperm.slane %v711, 0
    %v1053 = vadd.f32 %v950, %v1051
    %v1054 = vmul.f32 %v1029, %v1053
    %v1055 = vadd.f32 %v958, %v1054
    %v1056 = vtanh.pop %v1055
    %v1057 = vsub.f32 1.0, %v1049
    %v1058 = vmul.f32 %v1057, %v1056
    %v1059 = vmul.f32 %v1049, 0.0
    %v1060 = vadd.f32 %v1058, %v1059
    %1061 = vst [vmem:[#allocation3] sm:$0xff] %v1009
    %s1062 = scalar_lea.vmem [#allocation3], 112
    %1063 = vst [vmem:[%s1062 + $0x8] sm:$0xff] %v1060
    %1064 = vmatpush.msra.mxu0 %v608
    %1065 = vmatpush.msra.mxu0 %v602
    %1066 = vmatpush.msra.mxu0 %v596
    %1067 = vmatpush.msra.mxu0 %v590
    %1068 = vmatpush.msra.mxu0 %v584
    %1069 = vmatpush.msra.mxu0 %v578
    %1070 = vmatpush.msra.mxu0 %v572
    %1071 = vmatpush.msra.mxu0 %v566
    %1072 = vmatpush.msra.mxu0 %v560
    %1073 = vmatpush.msra.mxu0 %v554
    %1074 = vmatpush.msra.mxu0 %v548
    %1075 = vmatpush.msra.mxu0 %v542
    %1076 = vmatpush.msra.mxu0 %v536
    %1077 = vmatpush.msra.mxu0 %v530
    %1078 = vmatpush.msra.mxu0 %v524
    %1079 = vmatpush.msra.mxu0 %v518
    %1080 = vmatmul.f32.gmra.mxu0 %v1009
    %v1081 = vpop.f32.mrf.mxu0
    %v1082 = vadd.f32 0.0, %v1081
    %1083 = vdwg.mxu0
    %1084 = vmatpush.msra.mxu0 %v704
    %1085 = vmatpush.msra.mxu0 %v698
    %1086 = vmatpush.msra.mxu0 %v692
    %1087 = vmatpush.msra.mxu0 %v686
    %1088 = vmatpush.msra.mxu0 %v680
    %1089 = vmatpush.msra.mxu0 %v674
    %1090 = vmatpush.msra.mxu0 %v668
    %1091 = vmatpush.msra.mxu0 %v662
    %1092 = vmatpush.msra.mxu0 %v656
    %1093 = vmatpush.msra.mxu0 %v650
    %1094 = vmatpush.msra.mxu0 %v644
    %1095 = vmatpush.msra.mxu0 %v638
    %1096 = vmatpush.msra.mxu0 %v632
    %1097 = vmatpush.msra.mxu0 %v626
    %1098 = vmatpush.msra.mxu0 %v620
    %1099 = vmatpush.msra.mxu0 %v614
    %1100 = vmatmul.f32.gmra.mxu0 %v1060
    %v1101 = vpop.f32.mrf.mxu0
    %v1102 = vadd.f32 %v1082, %v1101
    %1103 = vdwg.mxu0
    %1104 = vmatpush.msra.mxu0 %v609
    %1105 = vmatpush.msra.mxu0 %v603
    %1106 = vmatpush.msra.mxu0 %v597
    %1107 = vmatpush.msra.mxu0 %v591
    %1108 = vmatpush.msra.mxu0 %v585
    %1109 = vmatpush.msra.mxu0 %v579
    %1110 = vmatpush.msra.mxu0 %v573
    %1111 = vmatpush.msra.mxu0 %v567
    %1112 = vmatpush.msra.mxu0 %v561
    %1113 = vmatpush.msra.mxu0 %v555
    %1114 = vmatpush.msra.mxu0 %v549
    %1115 = vmatpush.msra.mxu0 %v543
    %1116 = vmatpush.msra.mxu0 %v537
    %1117 = vmatpush.msra.mxu0 %v531
    %1118 = vmatpush.msra.mxu0 %v525
    %1119 = vmatpush.msra.mxu0 %v519
    %1120 = vmatmul.f32.gmra.mxu0 %v1009
    %v1121 = vpop.f32.mrf.mxu0
    %v1122 = vadd.f32 0.0, %v1121
    %1123 = vdwg.mxu0
    %1124 = vmatpush.msra.mxu0 %v705
    %1125 = vmatpush.msra.mxu0 %v699
    %1126 = vmatpush.msra.mxu0 %v693
    %1127 = vmatpush.msra.mxu0 %v687
    %1128 = vmatpush.msra.mxu0 %v681
    %1129 = vmatpush.msra.mxu0 %v675
    %1130 = vmatpush.msra.mxu0 %v669
    %1131 = vmatpush.msra.mxu0 %v663
    %1132 = vmatpush.msra.mxu0 %v657
    %1133 = vmatpush.msra.mxu0 %v651
    %1134 = vmatpush.msra.mxu0 %v645
    %1135 = vmatpush.msra.mxu0 %v639
    %1136 = vmatpush.msra.mxu0 %v633
    %1137 = vmatpush.msra.mxu0 %v627
    %1138 = vmatpush.msra.mxu0 %v621
    %1139 = vmatpush.msra.mxu0 %v615
    %1140 = vmatmul.f32.gmra.mxu0 %v1060
    %v1141 = vpop.f32.mrf.mxu0
    %v1142 = vadd.f32 %v1122, %v1141
    %1143 = vdwg.mxu0
    %1144 = vmatpush.msra.mxu0 %v610
    %1145 = vmatpush.msra.mxu0 %v604
    %1146 = vmatpush.msra.mxu0 %v598
    %1147 = vmatpush.msra.mxu0 %v592
    %1148 = vmatpush.msra.mxu0 %v586
    %1149 = vmatpush.msra.mxu0 %v580
    %1150 = vmatpush.msra.mxu0 %v574
    %1151 = vmatpush.msra.mxu0 %v568
    %1152 = vmatpush.msra.mxu0 %v562
    %1153 = vmatpush.msra.mxu0 %v556
    %1154 = vmatpush.msra.mxu0 %v550
    %1155 = vmatpush.msra.mxu0 %v544
    %1156 = vmatpush.msra.mxu0 %v538
    %1157 = vmatpush.msra.mxu0 %v532
    %1158 = vmatpush.msra.mxu0 %v526
    %1159 = vmatpush.msra.mxu0 %v520
    %1160 = vmatmul.f32.gmra.mxu0 %v1009
    %v1161 = vpop.f32.mrf.mxu0
    %v1162 = vadd.f32 0.0, %v1161
    %1163 = vdwg.mxu0
    %1164 = vmatpush.msra.mxu0 %v706
    %1165 = vmatpush.msra.mxu0 %v700
    %1166 = vmatpush.msra.mxu0 %v694
    %1167 = vmatpush.msra.mxu0 %v688
    %1168 = vmatpush.msra.mxu0 %v682
    %1169 = vmatpush.msra.mxu0 %v676
    %1170 = vmatpush.msra.mxu0 %v670
    %1171 = vmatpush.msra.mxu0 %v664
    %1172 = vmatpush.msra.mxu0 %v658
    %1173 = vmatpush.msra.mxu0 %v652
    %1174 = vmatpush.msra.mxu0 %v646
    %1175 = vmatpush.msra.mxu0 %v640
    %1176 = vmatpush.msra.mxu0 %v634
    %1177 = vmatpush.msra.mxu0 %v628
    %1178 = vmatpush.msra.mxu0 %v622
    %1179 = vmatpush.msra.mxu0 %v616
    %1180 = vmatmul.f32.gmra.mxu0 %v1060
    %v1181 = vpop.f32.mrf.mxu0
    %v1182 = vadd.f32 %v1162, %v1181
    %1183 = vdwg.mxu0
    %1184 = vmatpush.msra.mxu0 %v611
    %1185 = vmatpush.msra.mxu0 %v605
    %1186 = vmatpush.msra.mxu0 %v599
    %1187 = vmatpush.msra.mxu0 %v593
    %1188 = vmatpush.msra.mxu0 %v587
    %1189 = vmatpush.msra.mxu0 %v581
    %1190 = vmatpush.msra.mxu0 %v575
    %1191 = vmatpush.msra.mxu0 %v569
    %1192 = vmatpush.msra.mxu0 %v563
    %1193 = vmatpush.msra.mxu0 %v557
    %1194 = vmatpush.msra.mxu0 %v551
    %1195 = vmatpush.msra.mxu0 %v545
    %1196 = vmatpush.msra.mxu0 %v539
    %1197 = vmatpush.msra.mxu0 %v533
    %1198 = vmatpush.msra.mxu0 %v527
    %1199 = vmatpush.msra.mxu0 %v521
    %1200 = vmatmul.f32.gmra.mxu0 %v1009
    %v1201 = vpop.f32.mrf.mxu0
    %v1202 = vadd.f32 0.0, %v1201
    %1203 = vdwg.mxu0
    %1204 = vmatpush.msra.mxu0 %v707
    %1205 = vmatpush.msra.mxu0 %v701
    %1206 = vmatpush.msra.mxu0 %v695
    %1207 = vmatpush.msra.mxu0 %v689
    %1208 = vmatpush.msra.mxu0 %v683
    %1209 = vmatpush.msra.mxu0 %v677
    %1210 = vmatpush.msra.mxu0 %v671
    %1211 = vmatpush.msra.mxu0 %v665
    %1212 = vmatpush.msra.mxu0 %v659
    %1213 = vmatpush.msra.mxu0 %v653
    %1214 = vmatpush.msra.mxu0 %v647
    %1215 = vmatpush.msra.mxu0 %v641
    %1216 = vmatpush.msra.mxu0 %v635
    %1217 = vmatpush.msra.mxu0 %v629
    %1218 = vmatpush.msra.mxu0 %v623
    %1219 = vmatpush.msra.mxu0 %v617
    %1220 = vmatmul.f32.gmra.mxu0 %v1060
    %v1221 = vpop.f32.mrf.mxu0
    %v1222 = vadd.f32 %v1202, %v1221
    %1223 = vdwg.mxu0
    %1224 = vmatpush.msra.mxu0 %v612
    %1225 = vmatpush.msra.mxu0 %v606
    %1226 = vmatpush.msra.mxu0 %v600
    %1227 = vmatpush.msra.mxu0 %v594
    %1228 = vmatpush.msra.mxu0 %v588
    %1229 = vmatpush.msra.mxu0 %v582
    %1230 = vmatpush.msra.mxu0 %v576
    %1231 = vmatpush.msra.mxu0 %v570
    %1232 = vmatpush.msra.mxu0 %v564
    %1233 = vmatpush.msra.mxu0 %v558
    %1234 = vmatpush.msra.mxu0 %v552
    %1235 = vmatpush.msra.mxu0 %v546
    %1236 = vmatpush.msra.mxu0 %v540
    %1237 = vmatpush.msra.mxu0 %v534
    %1238 = vmatpush.msra.mxu0 %v528
    %1239 = vmatpush.msra.mxu0 %v522
    %1240 = vmatmul.f32.gmra.mxu0 %v1009
    %v1241 = vpop.f32.mrf.mxu0
    %v1242 = vadd.f32 0.0, %v1241
    %1243 = vdwg.mxu0
    %1244 = vmatpush.msra.mxu0 %v708
    %1245 = vmatpush.msra.mxu0 %v702
    %1246 = vmatpush.msra.mxu0 %v696
    %1247 = vmatpush.msra.mxu0 %v690
    %1248 = vmatpush.msra.mxu0 %v684
    %1249 = vmatpush.msra.mxu0 %v678
    %1250 = vmatpush.msra.mxu0 %v672
    %1251 = vmatpush.msra.mxu0 %v666
    %1252 = vmatpush.msra.mxu0 %v660
    %1253 = vmatpush.msra.mxu0 %v654
    %1254 = vmatpush.msra.mxu0 %v648
    %1255 = vmatpush.msra.mxu0 %v642
    %1256 = vmatpush.msra.mxu0 %v636
    %1257 = vmatpush.msra.mxu0 %v630
    %1258 = vmatpush.msra.mxu0 %v624
    %1259 = vmatpush.msra.mxu0 %v618
    %1260 = vmatmul.f32.gmra.mxu0 %v1060
    %v1261 = vpop.f32.mrf.mxu0
    %v1262 = vadd.f32 %v1242, %v1261
    %1263 = vdwg.mxu0
    %1264 = vmatpush.msra.mxu0 %v613
    %1265 = vmatpush.msra.mxu0 %v607
    %1266 = vmatpush.msra.mxu0 %v601
    %1267 = vmatpush.msra.mxu0 %v595
    %1268 = vmatpush.msra.mxu0 %v589
    %1269 = vmatpush.msra.mxu0 %v583
    %1270 = vmatpush.msra.mxu0 %v577
    %1271 = vmatpush.msra.mxu0 %v571
    %1272 = vmatpush.msra.mxu0 %v565
    %1273 = vmatpush.msra.mxu0 %v559
    %1274 = vmatpush.msra.mxu0 %v553
    %1275 = vmatpush.msra.mxu0 %v547
    %1276 = vmatpush.msra.mxu0 %v541
    %1277 = vmatpush.msra.mxu0 %v535
    %1278 = vmatpush.msra.mxu0 %v529
    %1279 = vmatpush.msra.mxu0 %v523
    %1280 = vmatmul.f32.gmra.mxu0 %v1009
    %v1281 = vpop.f32.mrf.mxu0
    %v1282 = vadd.f32 0.0, %v1281
    %1283 = vdwg.mxu0
    %1284 = vmatpush.msra.mxu0 %v709
    %1285 = vmatpush.msra.mxu0 %v703
    %1286 = vmatpush.msra.mxu0 %v697
    %1287 = vmatpush.msra.mxu0 %v691
    %1288 = vmatpush.msra.mxu0 %v685
    %1289 = vmatpush.msra.mxu0 %v679
    %1290 = vmatpush.msra.mxu0 %v673
    %1291 = vmatpush.msra.mxu0 %v667
    %1292 = vmatpush.msra.mxu0 %v661
    %1293 = vmatpush.msra.mxu0 %v655
    %1294 = vmatpush.msra.mxu0 %v649
    %1295 = vmatpush.msra.mxu0 %v643
    %1296 = vmatpush.msra.mxu0 %v637
    %1297 = vmatpush.msra.mxu0 %v631
    %1298 = vmatpush.msra.mxu0 %v625
    %1299 = vmatpush.msra.mxu0 %v619
    %1300 = vmatmul.f32.gmra.mxu0 %v1060
    %v1301 = vpop.f32.mrf.mxu0
    %v1302 = vadd.f32 %v1282, %v1301
    %1303 = vdwg.mxu0
    %s1304 = scalar_lea.vmem [#allocation2], 48
    %v1305 = vld [vmem:[%s1304] sm:$0xff]
    %v1306 = vld [vmem:[%s1304 + $0x8] sm:$0xff]
    %v1307 = vld [vmem:[%s1304 + $0x10] sm:$0xff]
    %s1308 = scalar_lea.vmem [#allocation2], 288
    %v1309 = vld [vmem:[%s1308 + $0x18] sm:$0xff]
    %v1310 = vld [vmem:[%s1308 + $0x20] sm:$0xff]
    %v1311 = vld [vmem:[%s1308 + $0x28] sm:$0xff]
    %v1312 = vadd.f32 %v1305, %v1102
    %v1313 = vxor.u32 %v1312, 2147483648
    %v1314 = vmul.f32 %v1313, 1.442695
    %v1315 = vpow.pop %v1314
    %v1316 = vadd.f32 %v1315, 1.0
    %v1317 = vrcp.pop %v1316
    %v1318 = vmul.f32 %v1316, %v1317
    %v1319 = vsub.f32 1.0, %v1318
    %v1320 = vmul.f32 %v1317, %v1319
    %v1321 = vadd.f32 %v1317, %v1320
    %vm1322 = vweird.f32 %v1316
    %vm1323 = vweird.f32 %v1317
    %vm1324 = vmor %vm1322, %vm1323
    %v1325 = vsel %vm1324, %v1317, %v1321
    %v1326 = vand.u32 2147483647, %v1316
    %vm1327 = vcmp.eq.f32.partialorder %v1326, 8.507059e+37
    %v1328 = vand.u32 %v1316, 2147483648
    %v1329 = vor.u32 1.1754944e-38, %v1328
    %v1330 = vsel %vm1327, %v1329, %v1325
    %v1331 = vmul.f32 1.0, %v1330
    %v1332 = vadd.f32 %v1306, %v1142
    %v1333 = vxor.u32 %v1332, 2147483648
    %v1334 = vmul.f32 %v1333, 1.442695
    %v1335 = vpow.pop %v1334
    %v1336 = vadd.f32 %v1335, 1.0
    %v1337 = vrcp.pop %v1336
    %v1338 = vmul.f32 %v1336, %v1337
    %v1339 = vsub.f32 1.0, %v1338
    %v1340 = vmul.f32 %v1337, %v1339
    %v1341 = vadd.f32 %v1337, %v1340
    %vm1342 = vweird.f32 %v1336
    %vm1343 = vweird.f32 %v1337
    %vm1344 = vmor %vm1342, %vm1343
    %v1345 = vsel %vm1344, %v1337, %v1341
    %v1346 = vand.u32 2147483647, %v1336
    %vm1347 = vcmp.eq.f32.partialorder %v1346, 8.507059e+37
    %v1348 = vand.u32 %v1336, 2147483648
    %v1349 = vor.u32 1.1754944e-38, %v1348
    %v1350 = vsel %vm1347, %v1349, %v1345
    %v1351 = vmul.f32 1.0, %v1350
    %v1352 = vadd.f32 %v1182, %v1000
    %v1353 = vmul.f32 %v1331, %v1352
    %v1354 = vadd.f32 %v1307, %v1353
    %v1355 = vtanh.pop %v1354
    %v1356 = vsub.f32 1.0, %v1351
    %v1357 = vmul.f32 %v1356, %v1355
    %v1358 = vmul.f32 %v1351, %v1009
    %v1359 = vadd.f32 %v1357, %v1358
    %v1360 = vadd.f32 %v1309, %v1222
    %v1361 = vxor.u32 %v1360, 2147483648
    %v1362 = vmul.f32 %v1361, 1.442695
    %v1363 = vpow.pop %v1362
    %v1364 = vadd.f32 %v1363, 1.0
    %v1365 = vrcp.pop %v1364
    %v1366 = vmul.f32 %v1364, %v1365
    %v1367 = vsub.f32 1.0, %v1366
    %v1368 = vmul.f32 %v1365, %v1367
    %v1369 = vadd.f32 %v1365, %v1368
    %vm1370 = vweird.f32 %v1364
    %vm1371 = vweird.f32 %v1365
    %vm1372 = vmor %vm1370, %vm1371
    %v1373 = vsel %vm1372, %v1365, %v1369
    %v1374 = vand.u32 2147483647, %v1364
    %vm1375 = vcmp.eq.f32.partialorder %v1374, 8.507059e+37
    %v1376 = vand.u32 %v1364, 2147483648
    %v1377 = vor.u32 1.1754944e-38, %v1376
    %v1378 = vsel %vm1375, %v1377, %v1373
    %v1379 = vmul.f32 1.0, %v1378
    %v1380 = vadd.f32 %v1310, %v1262
    %v1381 = vxor.u32 %v1380, 2147483648
    %v1382 = vmul.f32 %v1381, 1.442695
    %v1383 = vpow.pop %v1382
    %v1384 = vadd.f32 %v1383, 1.0
    %v1385 = vrcp.pop %v1384
    %v1386 = vmul.f32 %v1384, %v1385
    %v1387 = vsub.f32 1.0, %v1386
    %v1388 = vmul.f32 %v1385, %v1387
    %v1389 = vadd.f32 %v1385, %v1388
    %vm1390 = vweird.f32 %v1384
    %vm1391 = vweird.f32 %v1385
    %vm1392 = vmor %vm1390, %vm1391
    %v1393 = vsel %vm1392, %v1385, %v1389
    %v1394 = vand.u32 2147483647, %v1384
    %vm1395 = vcmp.eq.f32.partialorder %v1394, 8.507059e+37
    %v1396 = vand.u32 %v1384, 2147483648
    %v1397 = vor.u32 1.1754944e-38, %v1396
    %v1398 = vsel %vm1395, %v1397, %v1393
    %v1399 = vmul.f32 1.0, %v1398
    %v1400 = vadd.f32 %v1302, %v1051
    %v1401 = vmul.f32 %v1379, %v1400
    %v1402 = vadd.f32 %v1311, %v1401
    %v1403 = vtanh.pop %v1402
    %v1404 = vsub.f32 1.0, %v1399
    %v1405 = vmul.f32 %v1404, %v1403
    %v1406 = vmul.f32 %v1399, %v1060
    %v1407 = vadd.f32 %v1405, %v1406
    %s1408 = scalar_lea.vmem [#allocation3], 16
    %1409 = vst [vmem:[%s1408] sm:$0xff] %v1359
    %s1410 = scalar_lea.vmem [#allocation3], 96
    %1411 = vst [vmem:[%s1410 + $0x8] sm:$0xff] %v1407
    %1412 = vmatpush.msra.mxu0 %v608
    %1413 = vmatpush.msra.mxu0 %v602
    %1414 = vmatpush.msra.mxu0 %v596
    %1415 = vmatpush.msra.mxu0 %v590
    %1416 = vmatpush.msra.mxu0 %v584
    %1417 = vmatpush.msra.mxu0 %v578
    %1418 = vmatpush.msra.mxu0 %v572
    %1419 = vmatpush.msra.mxu0 %v566
    %1420 = vmatpush.msra.mxu0 %v560
    %1421 = vmatpush.msra.mxu0 %v554
    %1422 = vmatpush.msra.mxu0 %v548
    %1423 = vmatpush.msra.mxu0 %v542
    %1424 = vmatpush.msra.mxu0 %v536
    %1425 = vmatpush.msra.mxu0 %v530
    %1426 = vmatpush.msra.mxu0 %v524
    %1427 = vmatpush.msra.mxu0 %v518
    %1428 = vmatmul.f32.gmra.mxu0 %v1359
    %v1429 = vpop.f32.mrf.mxu0
    %v1430 = vadd.f32 0.0, %v1429
    %1431 = vdwg.mxu0
    %1432 = vmatpush.msra.mxu0 %v704
    %1433 = vmatpush.msra.mxu0 %v698
    %1434 = vmatpush.msra.mxu0 %v692
    %1435 = vmatpush.msra.mxu0 %v686
    %1436 = vmatpush.msra.mxu0 %v680
    %1437 = vmatpush.msra.mxu0 %v674
    %1438 = vmatpush.msra.mxu0 %v668
    %1439 = vmatpush.msra.mxu0 %v662
    %1440 = vmatpush.msra.mxu0 %v656
    %1441 = vmatpush.msra.mxu0 %v650
    %1442 = vmatpush.msra.mxu0 %v644
    %1443 = vmatpush.msra.mxu0 %v638
    %1444 = vmatpush.msra.mxu0 %v632
    %1445 = vmatpush.msra.mxu0 %v626
    %1446 = vmatpush.msra.mxu0 %v620
    %1447 = vmatpush.msra.mxu0 %v614
    %1448 = vmatmul.f32.gmra.mxu0 %v1407
    %v1449 = vpop.f32.mrf.mxu0
    %v1450 = vadd.f32 %v1430, %v1449
    %1451 = vdwg.mxu0
    %1452 = vmatpush.msra.mxu0 %v609
    %1453 = vmatpush.msra.mxu0 %v603
    %1454 = vmatpush.msra.mxu0 %v597
    %1455 = vmatpush.msra.mxu0 %v591
    %1456 = vmatpush.msra.mxu0 %v585
    %1457 = vmatpush.msra.mxu0 %v579
    %1458 = vmatpush.msra.mxu0 %v573
    %1459 = vmatpush.msra.mxu0 %v567
    %1460 = vmatpush.msra.mxu0 %v561
    %1461 = vmatpush.msra.mxu0 %v555
    %1462 = vmatpush.msra.mxu0 %v549
    %1463 = vmatpush.msra.mxu0 %v543
    %1464 = vmatpush.msra.mxu0 %v537
    %1465 = vmatpush.msra.mxu0 %v531
    %1466 = vmatpush.msra.mxu0 %v525
    %1467 = vmatpush.msra.mxu0 %v519
    %1468 = vmatmul.f32.gmra.mxu0 %v1359
    %v1469 = vpop.f32.mrf.mxu0
    %v1470 = vadd.f32 0.0, %v1469
    %1471 = vdwg.mxu0
    %1472 = vmatpush.msra.mxu0 %v705
    %1473 = vmatpush.msra.mxu0 %v699
    %1474 = vmatpush.msra.mxu0 %v693
    %1475 = vmatpush.msra.mxu0 %v687
    %1476 = vmatpush.msra.mxu0 %v681
    %1477 = vmatpush.msra.mxu0 %v675
    %1478 = vmatpush.msra.mxu0 %v669
    %1479 = vmatpush.msra.mxu0 %v663
    %1480 = vmatpush.msra.mxu0 %v657
    %1481 = vmatpush.msra.mxu0 %v651
    %1482 = vmatpush.msra.mxu0 %v645
    %1483 = vmatpush.msra.mxu0 %v639
    %1484 = vmatpush.msra.mxu0 %v633
    %1485 = vmatpush.msra.mxu0 %v627
    %1486 = vmatpush.msra.mxu0 %v621
    %1487 = vmatpush.msra.mxu0 %v615
    %1488 = vmatmul.f32.gmra.mxu0 %v1407
    %v1489 = vpop.f32.mrf.mxu0
    %v1490 = vadd.f32 %v1470, %v1489
    %1491 = vdwg.mxu0
    %1492 = vmatpush.msra.mxu0 %v610
    %1493 = vmatpush.msra.mxu0 %v604
    %1494 = vmatpush.msra.mxu0 %v598
    %1495 = vmatpush.msra.mxu0 %v592
    %1496 = vmatpush.msra.mxu0 %v586
    %1497 = vmatpush.msra.mxu0 %v580
    %1498 = vmatpush.msra.mxu0 %v574
    %1499 = vmatpush.msra.mxu0 %v568
    %1500 = vmatpush.msra.mxu0 %v562
    %1501 = vmatpush.msra.mxu0 %v556
    %1502 = vmatpush.msra.mxu0 %v550
    %1503 = vmatpush.msra.mxu0 %v544
    %1504 = vmatpush.msra.mxu0 %v538
    %1505 = vmatpush.msra.mxu0 %v532
    %1506 = vmatpush.msra.mxu0 %v526
    %1507 = vmatpush.msra.mxu0 %v520
    %1508 = vmatmul.f32.gmra.mxu0 %v1359
    %v1509 = vpop.f32.mrf.mxu0
    %v1510 = vadd.f32 0.0, %v1509
    %1511 = vdwg.mxu0
    %1512 = vmatpush.msra.mxu0 %v706
    %1513 = vmatpush.msra.mxu0 %v700
    %1514 = vmatpush.msra.mxu0 %v694
    %1515 = vmatpush.msra.mxu0 %v688
    %1516 = vmatpush.msra.mxu0 %v682
    %1517 = vmatpush.msra.mxu0 %v676
    %1518 = vmatpush.msra.mxu0 %v670
    %1519 = vmatpush.msra.mxu0 %v664
    %1520 = vmatpush.msra.mxu0 %v658
    %1521 = vmatpush.msra.mxu0 %v652
    %1522 = vmatpush.msra.mxu0 %v646
    %1523 = vmatpush.msra.mxu0 %v640
    %1524 = vmatpush.msra.mxu0 %v634
    %1525 = vmatpush.msra.mxu0 %v628
    %1526 = vmatpush.msra.mxu0 %v622
    %1527 = vmatpush.msra.mxu0 %v616
    %1528 = vmatmul.f32.gmra.mxu0 %v1407
    %v1529 = vpop.f32.mrf.mxu0
    %v1530 = vadd.f32 %v1510, %v1529
    %1531 = vdwg.mxu0
    %1532 = vmatpush.msra.mxu0 %v611
    %1533 = vmatpush.msra.mxu0 %v605
    %1534 = vmatpush.msra.mxu0 %v599
    %1535 = vmatpush.msra.mxu0 %v593
    %1536 = vmatpush.msra.mxu0 %v587
    %1537 = vmatpush.msra.mxu0 %v581
    %1538 = vmatpush.msra.mxu0 %v575
    %1539 = vmatpush.msra.mxu0 %v569
    %1540 = vmatpush.msra.mxu0 %v563
    %1541 = vmatpush.msra.mxu0 %v557
    %1542 = vmatpush.msra.mxu0 %v551
    %1543 = vmatpush.msra.mxu0 %v545
    %1544 = vmatpush.msra.mxu0 %v539
    %1545 = vmatpush.msra.mxu0 %v533
    %1546 = vmatpush.msra.mxu0 %v527
    %1547 = vmatpush.msra.mxu0 %v521
    %1548 = vmatmul.f32.gmra.mxu0 %v1359
    %v1549 = vpop.f32.mrf.mxu0
    %v1550 = vadd.f32 0.0, %v1549
    %1551 = vdwg.mxu0
    %1552 = vmatpush.msra.mxu0 %v707
    %1553 = vmatpush.msra.mxu0 %v701
    %1554 = vmatpush.msra.mxu0 %v695
    %1555 = vmatpush.msra.mxu0 %v689
    %1556 = vmatpush.msra.mxu0 %v683
    %1557 = vmatpush.msra.mxu0 %v677
    %1558 = vmatpush.msra.mxu0 %v671
    %1559 = vmatpush.msra.mxu0 %v665
    %1560 = vmatpush.msra.mxu0 %v659
    %1561 = vmatpush.msra.mxu0 %v653
    %1562 = vmatpush.msra.mxu0 %v647
    %1563 = vmatpush.msra.mxu0 %v641
    %1564 = vmatpush.msra.mxu0 %v635
    %1565 = vmatpush.msra.mxu0 %v629
    %1566 = vmatpush.msra.mxu0 %v623
    %1567 = vmatpush.msra.mxu0 %v617
    %1568 = vmatmul.f32.gmra.mxu0 %v1407
    %v1569 = vpop.f32.mrf.mxu0
    %v1570 = vadd.f32 %v1550, %v1569
    %1571 = vdwg.mxu0
    %1572 = vmatpush.msra.mxu0 %v612
    %1573 = vmatpush.msra.mxu0 %v606
    %1574 = vmatpush.msra.mxu0 %v600
    %1575 = vmatpush.msra.mxu0 %v594
    %1576 = vmatpush.msra.mxu0 %v588
    %1577 = vmatpush.msra.mxu0 %v582
    %1578 = vmatpush.msra.mxu0 %v576
    %1579 = vmatpush.msra.mxu0 %v570
    %1580 = vmatpush.msra.mxu0 %v564
    %1581 = vmatpush.msra.mxu0 %v558
    %1582 = vmatpush.msra.mxu0 %v552
    %1583 = vmatpush.msra.mxu0 %v546
    %1584 = vmatpush.msra.mxu0 %v540
    %1585 = vmatpush.msra.mxu0 %v534
    %1586 = vmatpush.msra.mxu0 %v528
    %1587 = vmatpush.msra.mxu0 %v522
    %1588 = vmatmul.f32.gmra.mxu0 %v1359
    %v1589 = vpop.f32.mrf.mxu0
    %v1590 = vadd.f32 0.0, %v1589
    %1591 = vdwg.mxu0
    %1592 = vmatpush.msra.mxu0 %v708
    %1593 = vmatpush.msra.mxu0 %v702
    %1594 = vmatpush.msra.mxu0 %v696
    %1595 = vmatpush.msra.mxu0 %v690
    %1596 = vmatpush.msra.mxu0 %v684
    %1597 = vmatpush.msra.mxu0 %v678
    %1598 = vmatpush.msra.mxu0 %v672
    %1599 = vmatpush.msra.mxu0 %v666
    %1600 = vmatpush.msra.mxu0 %v660
    %1601 = vmatpush.msra.mxu0 %v654
    %1602 = vmatpush.msra.mxu0 %v648
    %1603 = vmatpush.msra.mxu0 %v642
    %1604 = vmatpush.msra.mxu0 %v636
    %1605 = vmatpush.msra.mxu0 %v630
    %1606 = vmatpush.msra.mxu0 %v624
    %1607 = vmatpush.msra.mxu0 %v618
    %1608 = vmatmul.f32.gmra.mxu0 %v1407
    %v1609 = vpop.f32.mrf.mxu0
    %v1610 = vadd.f32 %v1590, %v1609
    %1611 = vdwg.mxu0
    %1612 = vmatpush.msra.mxu0 %v613
    %1613 = vmatpush.msra.mxu0 %v607
    %1614 = vmatpush.msra.mxu0 %v601
    %1615 = vmatpush.msra.mxu0 %v595
    %1616 = vmatpush.msra.mxu0 %v589
    %1617 = vmatpush.msra.mxu0 %v583
    %1618 = vmatpush.msra.mxu0 %v577
    %1619 = vmatpush.msra.mxu0 %v571
    %1620 = vmatpush.msra.mxu0 %v565
    %1621 = vmatpush.msra.mxu0 %v559
    %1622 = vmatpush.msra.mxu0 %v553
    %1623 = vmatpush.msra.mxu0 %v547
    %1624 = vmatpush.msra.mxu0 %v541
    %1625 = vmatpush.msra.mxu0 %v535
    %1626 = vmatpush.msra.mxu0 %v529
    %1627 = vmatpush.msra.mxu0 %v523
    %1628 = vmatmul.f32.gmra.mxu0 %v1359
    %v1629 = vpop.f32.mrf.mxu0
    %v1630 = vadd.f32 0.0, %v1629
    %1631 = vdwg.mxu0
    %1632 = vmatpush.msra.mxu0 %v709
    %1633 = vmatpush.msra.mxu0 %v703
    %1634 = vmatpush.msra.mxu0 %v697
    %1635 = vmatpush.msra.mxu0 %v691
    %1636 = vmatpush.msra.mxu0 %v685
    %1637 = vmatpush.msra.mxu0 %v679
    %1638 = vmatpush.msra.mxu0 %v673
    %1639 = vmatpush.msra.mxu0 %v667
    %1640 = vmatpush.msra.mxu0 %v661
    %1641 = vmatpush.msra.mxu0 %v655
    %1642 = vmatpush.msra.mxu0 %v649
    %1643 = vmatpush.msra.mxu0 %v643
    %1644 = vmatpush.msra.mxu0 %v637
    %1645 = vmatpush.msra.mxu0 %v631
    %1646 = vmatpush.msra.mxu0 %v625
    %1647 = vmatpush.msra.mxu0 %v619
    %1648 = vmatmul.f32.gmra.mxu0 %v1407
    %v1649 = vpop.f32.mrf.mxu0
    %v1650 = vadd.f32 %v1630, %v1649
    %1651 = vdwg.mxu0
    %s1652 = scalar_lea.vmem [#allocation2], 96
    %v1653 = vld [vmem:[%s1652] sm:$0xff]
    %v1654 = vld [vmem:[%s1652 + $0x8] sm:$0xff]
    %v1655 = vld [vmem:[%s1652 + $0x10] sm:$0xff]
    %s1656 = scalar_lea.vmem [#allocation2], 240
    %v1657 = vld [vmem:[%s1656 + $0x18] sm:$0xff]
    %v1658 = vld [vmem:[%s1656 + $0x20] sm:$0xff]
    %v1659 = vld [vmem:[%s1656 + $0x28] sm:$0xff]
    %v1660 = vadd.f32 %v1653, %v1450
    %v1661 = vxor.u32 %v1660, 2147483648
    %v1662 = vmul.f32 %v1661, 1.442695
    %v1663 = vpow.pop %v1662
    %v1664 = vadd.f32 %v1663, 1.0
    %v1665 = vrcp.pop %v1664
    %v1666 = vmul.f32 %v1664, %v1665
    %v1667 = vsub.f32 1.0, %v1666
    %v1668 = vmul.f32 %v1665, %v1667
    %v1669 = vadd.f32 %v1665, %v1668
    %vm1670 = vweird.f32 %v1664
    %vm1671 = vweird.f32 %v1665
    %vm1672 = vmor %vm1670, %vm1671
    %v1673 = vsel %vm1672, %v1665, %v1669
    %v1674 = vand.u32 2147483647, %v1664
    %vm1675 = vcmp.eq.f32.partialorder %v1674, 8.507059e+37
    %v1676 = vand.u32 %v1664, 2147483648
    %v1677 = vor.u32 1.1754944e-38, %v1676
    %v1678 = vsel %vm1675, %v1677, %v1673
    %v1679 = vmul.f32 1.0, %v1678
    %v1680 = vadd.f32 %v1654, %v1490
    %v1681 = vxor.u32 %v1680, 2147483648
    %v1682 = vmul.f32 %v1681, 1.442695
    %v1683 = vpow.pop %v1682
    %v1684 = vadd.f32 %v1683, 1.0
    %v1685 = vrcp.pop %v1684
    %v1686 = vmul.f32 %v1684, %v1685
    %v1687 = vsub.f32 1.0, %v1686
    %v1688 = vmul.f32 %v1685, %v1687
    %v1689 = vadd.f32 %v1685, %v1688
    %vm1690 = vweird.f32 %v1684
    %vm1691 = vweird.f32 %v1685
    %vm1692 = vmor %vm1690, %vm1691
    %v1693 = vsel %vm1692, %v1685, %v1689
    %v1694 = vand.u32 2147483647, %v1684
    %vm1695 = vcmp.eq.f32.partialorder %v1694, 8.507059e+37
    %v1696 = vand.u32 %v1684, 2147483648
    %v1697 = vor.u32 1.1754944e-38, %v1696
    %v1698 = vsel %vm1695, %v1697, %v1693
    %v1699 = vmul.f32 1.0, %v1698
    %v1700 = vadd.f32 %v1530, %v1000
    %v1701 = vmul.f32 %v1679, %v1700
    %v1702 = vadd.f32 %v1655, %v1701
    %v1703 = vtanh.pop %v1702
    %v1704 = vsub.f32 1.0, %v1699
    %v1705 = vmul.f32 %v1704, %v1703
    %v1706 = vmul.f32 %v1699, %v1359
    %v1707 = vadd.f32 %v1705, %v1706
    %v1708 = vadd.f32 %v1657, %v1570
    %v1709 = vxor.u32 %v1708, 2147483648
    %v1710 = vmul.f32 %v1709, 1.442695
    %v1711 = vpow.pop %v1710
    %v1712 = vadd.f32 %v1711, 1.0
    %v1713 = vrcp.pop %v1712
    %v1714 = vmul.f32 %v1712, %v1713
    %v1715 = vsub.f32 1.0, %v1714
    %v1716 = vmul.f32 %v1713, %v1715
    %v1717 = vadd.f32 %v1713, %v1716
    %vm1718 = vweird.f32 %v1712
    %vm1719 = vweird.f32 %v1713
    %vm1720 = vmor %vm1718, %vm1719
    %v1721 = vsel %vm1720, %v1713, %v1717
    %v1722 = vand.u32 2147483647, %v1712
    %vm1723 = vcmp.eq.f32.partialorder %v1722, 8.507059e+37
    %v1724 = vand.u32 %v1712, 2147483648
    %v1725 = vor.u32 1.1754944e-38, %v1724
    %v1726 = vsel %vm1723, %v1725, %v1721
    %v1727 = vmul.f32 1.0, %v1726
    %v1728 = vadd.f32 %v1658, %v1610
    %v1729 = vxor.u32 %v1728, 2147483648
    %v1730 = vmul.f32 %v1729, 1.442695
    %v1731 = vpow.pop %v1730
    %v1732 = vadd.f32 %v1731, 1.0
    %v1733 = vrcp.pop %v1732
    %v1734 = vmul.f32 %v1732, %v1733
    %v1735 = vsub.f32 1.0, %v1734
    %v1736 = vmul.f32 %v1733, %v1735
    %v1737 = vadd.f32 %v1733, %v1736
    %vm1738 = vweird.f32 %v1732
    %vm1739 = vweird.f32 %v1733
    %vm1740 = vmor %vm1738, %vm1739
    %v1741 = vsel %vm1740, %v1733, %v1737
    %v1742 = vand.u32 2147483647, %v1732
    %vm1743 = vcmp.eq.f32.partialorder %v1742, 8.507059e+37
    %v1744 = vand.u32 %v1732, 2147483648
    %v1745 = vor.u32 1.1754944e-38, %v1744
    %v1746 = vsel %vm1743, %v1745, %v1741
    %v1747 = vmul.f32 1.0, %v1746
    %v1748 = vadd.f32 %v1650, %v1051
    %v1749 = vmul.f32 %v1727, %v1748
    %v1750 = vadd.f32 %v1659, %v1749
    %v1751 = vtanh.pop %v1750
    %v1752 = vsub.f32 1.0, %v1747
    %v1753 = vmul.f32 %v1752, %v1751
    %v1754 = vmul.f32 %v1747, %v1407
    %v1755 = vadd.f32 %v1753, %v1754
    %s1756 = scalar_lea.vmem [#allocation3], 32
    %1757 = vst [vmem:[%s1756] sm:$0xff] %v1707
    %s1758 = scalar_lea.vmem [#allocation3], 80
    %1759 = vst [vmem:[%s1758 + $0x8] sm:$0xff] %v1755
    %1760 = vmatpush.msra.mxu0 %v608
    %1761 = vmatpush.msra.mxu0 %v602
    %1762 = vmatpush.msra.mxu0 %v596
    %1763 = vmatpush.msra.mxu0 %v590
    %1764 = vmatpush.msra.mxu0 %v584
    %1765 = vmatpush.msra.mxu0 %v578
    %1766 = vmatpush.msra.mxu0 %v572
    %1767 = vmatpush.msra.mxu0 %v566
    %1768 = vmatpush.msra.mxu0 %v560
    %1769 = vmatpush.msra.mxu0 %v554
    %1770 = vmatpush.msra.mxu0 %v548
    %1771 = vmatpush.msra.mxu0 %v542
    %1772 = vmatpush.msra.mxu0 %v536
    %1773 = vmatpush.msra.mxu0 %v530
    %1774 = vmatpush.msra.mxu0 %v524
    %1775 = vmatpush.msra.mxu0 %v518
    %1776 = vmatmul.f32.gmra.mxu0 %v1707
    %v1777 = vpop.f32.mrf.mxu0
    %v1778 = vadd.f32 0.0, %v1777
    %1779 = vdwg.mxu0
    %1780 = vmatpush.msra.mxu0 %v704
    %1781 = vmatpush.msra.mxu0 %v698
    %1782 = vmatpush.msra.mxu0 %v692
    %1783 = vmatpush.msra.mxu0 %v686
    %1784 = vmatpush.msra.mxu0 %v680
    %1785 = vmatpush.msra.mxu0 %v674
    %1786 = vmatpush.msra.mxu0 %v668
    %1787 = vmatpush.msra.mxu0 %v662
    %1788 = vmatpush.msra.mxu0 %v656
    %1789 = vmatpush.msra.mxu0 %v650
    %1790 = vmatpush.msra.mxu0 %v644
    %1791 = vmatpush.msra.mxu0 %v638
    %1792 = vmatpush.msra.mxu0 %v632
    %1793 = vmatpush.msra.mxu0 %v626
    %1794 = vmatpush.msra.mxu0 %v620
    %1795 = vmatpush.msra.mxu0 %v614
    %1796 = vmatmul.f32.gmra.mxu0 %v1755
    %v1797 = vpop.f32.mrf.mxu0
    %v1798 = vadd.f32 %v1778, %v1797
    %1799 = vdwg.mxu0
    %1800 = vmatpush.msra.mxu0 %v609
    %1801 = vmatpush.msra.mxu0 %v603
    %1802 = vmatpush.msra.mxu0 %v597
    %1803 = vmatpush.msra.mxu0 %v591
    %1804 = vmatpush.msra.mxu0 %v585
    %1805 = vmatpush.msra.mxu0 %v579
    %1806 = vmatpush.msra.mxu0 %v573
    %1807 = vmatpush.msra.mxu0 %v567
    %1808 = vmatpush.msra.mxu0 %v561
    %1809 = vmatpush.msra.mxu0 %v555
    %1810 = vmatpush.msra.mxu0 %v549
    %1811 = vmatpush.msra.mxu0 %v543
    %1812 = vmatpush.msra.mxu0 %v537
    %1813 = vmatpush.msra.mxu0 %v531
    %1814 = vmatpush.msra.mxu0 %v525
    %1815 = vmatpush.msra.mxu0 %v519
    %1816 = vmatmul.f32.gmra.mxu0 %v1707
    %v1817 = vpop.f32.mrf.mxu0
    %v1818 = vadd.f32 0.0, %v1817
    %1819 = vdwg.mxu0
    %1820 = vmatpush.msra.mxu0 %v705
    %1821 = vmatpush.msra.mxu0 %v699
    %1822 = vmatpush.msra.mxu0 %v693
    %1823 = vmatpush.msra.mxu0 %v687
    %1824 = vmatpush.msra.mxu0 %v681
    %1825 = vmatpush.msra.mxu0 %v675
    %1826 = vmatpush.msra.mxu0 %v669
    %1827 = vmatpush.msra.mxu0 %v663
    %1828 = vmatpush.msra.mxu0 %v657
    %1829 = vmatpush.msra.mxu0 %v651
    %1830 = vmatpush.msra.mxu0 %v645
    %1831 = vmatpush.msra.mxu0 %v639
    %1832 = vmatpush.msra.mxu0 %v633
    %1833 = vmatpush.msra.mxu0 %v627
    %1834 = vmatpush.msra.mxu0 %v621
    %1835 = vmatpush.msra.mxu0 %v615
    %1836 = vmatmul.f32.gmra.mxu0 %v1755
    %v1837 = vpop.f32.mrf.mxu0
    %v1838 = vadd.f32 %v1818, %v1837
    %1839 = vdwg.mxu0
    %1840 = vmatpush.msra.mxu0 %v610
    %1841 = vmatpush.msra.mxu0 %v604
    %1842 = vmatpush.msra.mxu0 %v598
    %1843 = vmatpush.msra.mxu0 %v592
    %1844 = vmatpush.msra.mxu0 %v586
    %1845 = vmatpush.msra.mxu0 %v580
    %1846 = vmatpush.msra.mxu0 %v574
    %1847 = vmatpush.msra.mxu0 %v568
    %1848 = vmatpush.msra.mxu0 %v562
    %1849 = vmatpush.msra.mxu0 %v556
    %1850 = vmatpush.msra.mxu0 %v550
    %1851 = vmatpush.msra.mxu0 %v544
    %1852 = vmatpush.msra.mxu0 %v538
    %1853 = vmatpush.msra.mxu0 %v532
    %1854 = vmatpush.msra.mxu0 %v526
    %1855 = vmatpush.msra.mxu0 %v520
    %1856 = vmatmul.f32.gmra.mxu0 %v1707
    %v1857 = vpop.f32.mrf.mxu0
    %v1858 = vadd.f32 0.0, %v1857
    %1859 = vdwg.mxu0
    %1860 = vmatpush.msra.mxu0 %v706
    %1861 = vmatpush.msra.mxu0 %v700
    %1862 = vmatpush.msra.mxu0 %v694
    %1863 = vmatpush.msra.mxu0 %v688
    %1864 = vmatpush.msra.mxu0 %v682
    %1865 = vmatpush.msra.mxu0 %v676
    %1866 = vmatpush.msra.mxu0 %v670
    %1867 = vmatpush.msra.mxu0 %v664
    %1868 = vmatpush.msra.mxu0 %v658
    %1869 = vmatpush.msra.mxu0 %v652
    %1870 = vmatpush.msra.mxu0 %v646
    %1871 = vmatpush.msra.mxu0 %v640
    %1872 = vmatpush.msra.mxu0 %v634
    %1873 = vmatpush.msra.mxu0 %v628
    %1874 = vmatpush.msra.mxu0 %v622
    %1875 = vmatpush.msra.mxu0 %v616
    %1876 = vmatmul.f32.gmra.mxu0 %v1755
    %v1877 = vpop.f32.mrf.mxu0
    %v1878 = vadd.f32 %v1858, %v1877
    %1879 = vdwg.mxu0
    %1880 = vmatpush.msra.mxu0 %v611
    %1881 = vmatpush.msra.mxu0 %v605
    %1882 = vmatpush.msra.mxu0 %v599
    %1883 = vmatpush.msra.mxu0 %v593
    %1884 = vmatpush.msra.mxu0 %v587
    %1885 = vmatpush.msra.mxu0 %v581
    %1886 = vmatpush.msra.mxu0 %v575
    %1887 = vmatpush.msra.mxu0 %v569
    %1888 = vmatpush.msra.mxu0 %v563
    %1889 = vmatpush.msra.mxu0 %v557
    %1890 = vmatpush.msra.mxu0 %v551
    %1891 = vmatpush.msra.mxu0 %v545
    %1892 = vmatpush.msra.mxu0 %v539
    %1893 = vmatpush.msra.mxu0 %v533
    %1894 = vmatpush.msra.mxu0 %v527
    %1895 = vmatpush.msra.mxu0 %v521
    %1896 = vmatmul.f32.gmra.mxu0 %v1707
    %v1897 = vpop.f32.mrf.mxu0
    %v1898 = vadd.f32 0.0, %v1897
    %1899 = vdwg.mxu0
    %1900 = vmatpush.msra.mxu0 %v707
    %1901 = vmatpush.msra.mxu0 %v701
    %1902 = vmatpush.msra.mxu0 %v695
    %1903 = vmatpush.msra.mxu0 %v689
    %1904 = vmatpush.msra.mxu0 %v683
    %1905 = vmatpush.msra.mxu0 %v677
    %1906 = vmatpush.msra.mxu0 %v671
    %1907 = vmatpush.msra.mxu0 %v665
    %1908 = vmatpush.msra.mxu0 %v659
    %1909 = vmatpush.msra.mxu0 %v653
    %1910 = vmatpush.msra.mxu0 %v647
    %1911 = vmatpush.msra.mxu0 %v641
    %1912 = vmatpush.msra.mxu0 %v635
    %1913 = vmatpush.msra.mxu0 %v629
    %1914 = vmatpush.msra.mxu0 %v623
    %1915 = vmatpush.msra.mxu0 %v617
    %1916 = vmatmul.f32.gmra.mxu0 %v1755
    %v1917 = vpop.f32.mrf.mxu0
    %v1918 = vadd.f32 %v1898, %v1917
    %1919 = vdwg.mxu0
    %1920 = vmatpush.msra.mxu0 %v612
    %1921 = vmatpush.msra.mxu0 %v606
    %1922 = vmatpush.msra.mxu0 %v600
    %1923 = vmatpush.msra.mxu0 %v594
    %1924 = vmatpush.msra.mxu0 %v588
    %1925 = vmatpush.msra.mxu0 %v582
    %1926 = vmatpush.msra.mxu0 %v576
    %1927 = vmatpush.msra.mxu0 %v570
    %1928 = vmatpush.msra.mxu0 %v564
    %1929 = vmatpush.msra.mxu0 %v558
    %1930 = vmatpush.msra.mxu0 %v552
    %1931 = vmatpush.msra.mxu0 %v546
    %1932 = vmatpush.msra.mxu0 %v540
    %1933 = vmatpush.msra.mxu0 %v534
    %1934 = vmatpush.msra.mxu0 %v528
    %1935 = vmatpush.msra.mxu0 %v522
    %1936 = vmatmul.f32.gmra.mxu0 %v1707
    %v1937 = vpop.f32.mrf.mxu0
    %v1938 = vadd.f32 0.0, %v1937
    %1939 = vdwg.mxu0
    %1940 = vmatpush.msra.mxu0 %v708
    %1941 = vmatpush.msra.mxu0 %v702
    %1942 = vmatpush.msra.mxu0 %v696
    %1943 = vmatpush.msra.mxu0 %v690
    %1944 = vmatpush.msra.mxu0 %v684
    %1945 = vmatpush.msra.mxu0 %v678
    %1946 = vmatpush.msra.mxu0 %v672
    %1947 = vmatpush.msra.mxu0 %v666
    %1948 = vmatpush.msra.mxu0 %v660
    %1949 = vmatpush.msra.mxu0 %v654
    %1950 = vmatpush.msra.mxu0 %v648
    %1951 = vmatpush.msra.mxu0 %v642
    %1952 = vmatpush.msra.mxu0 %v636
    %1953 = vmatpush.msra.mxu0 %v630
    %1954 = vmatpush.msra.mxu0 %v624
    %1955 = vmatpush.msra.mxu0 %v618
    %1956 = vmatmul.f32.gmra.mxu0 %v1755
    %v1957 = vpop.f32.mrf.mxu0
    %v1958 = vadd.f32 %v1938, %v1957
    %1959 = vdwg.mxu0
    %1960 = vmatpush.msra.mxu0 %v613
    %1961 = vmatpush.msra.mxu0 %v607
    %1962 = vmatpush.msra.mxu0 %v601
    %1963 = vmatpush.msra.mxu0 %v595
    %1964 = vmatpush.msra.mxu0 %v589
    %1965 = vmatpush.msra.mxu0 %v583
    %1966 = vmatpush.msra.mxu0 %v577
    %1967 = vmatpush.msra.mxu0 %v571
    %1968 = vmatpush.msra.mxu0 %v565
    %1969 = vmatpush.msra.mxu0 %v559
    %1970 = vmatpush.msra.mxu0 %v553
    %1971 = vmatpush.msra.mxu0 %v547
    %1972 = vmatpush.msra.mxu0 %v541
    %1973 = vmatpush.msra.mxu0 %v535
    %1974 = vmatpush.msra.mxu0 %v529
    %1975 = vmatpush.msra.mxu0 %v523
    %1976 = vmatmul.f32.gmra.mxu0 %v1707
    %v1977 = vpop.f32.mrf.mxu0
    %v1978 = vadd.f32 0.0, %v1977
    %1979 = vdwg.mxu0
    %1980 = vmatpush.msra.mxu0 %v709
    %1981 = vmatpush.msra.mxu0 %v703
    %1982 = vmatpush.msra.mxu0 %v697
    %1983 = vmatpush.msra.mxu0 %v691
    %1984 = vmatpush.msra.mxu0 %v685
    %1985 = vmatpush.msra.mxu0 %v679
    %1986 = vmatpush.msra.mxu0 %v673
    %1987 = vmatpush.msra.mxu0 %v667
    %1988 = vmatpush.msra.mxu0 %v661
    %1989 = vmatpush.msra.mxu0 %v655
    %1990 = vmatpush.msra.mxu0 %v649
    %1991 = vmatpush.msra.mxu0 %v643
    %1992 = vmatpush.msra.mxu0 %v637
    %1993 = vmatpush.msra.mxu0 %v631
    %1994 = vmatpush.msra.mxu0 %v625
    %1995 = vmatpush.msra.mxu0 %v619
    %1996 = vmatmul.f32.gmra.mxu0 %v1755
    %v1997 = vpop.f32.mrf.mxu0
    %v1998 = vadd.f32 %v1978, %v1997
    %1999 = vdwg.mxu0
    %s2000 = scalar_lea.vmem [#allocation2], 144
    %v2001 = vld [vmem:[%s2000] sm:$0xff]
    %v2002 = vld [vmem:[%s2000 + $0x8] sm:$0xff]
    %v2003 = vld [vmem:[%s2000 + $0x10] sm:$0xff]
    %s2004 = scalar_lea.vmem [#allocation2], 192
    %v2005 = vld [vmem:[%s2004 + $0x18] sm:$0xff]
    %v2006 = vld [vmem:[%s2004 + $0x20] sm:$0xff]
    %v2007 = vld [vmem:[%s2004 + $0x28] sm:$0xff]
    %v2008 = vadd.f32 %v2001, %v1798
    %v2009 = vxor.u32 %v2008, 2147483648
    %v2010 = vmul.f32 %v2009, 1.442695
    %v2011 = vpow.pop %v2010
    %v2012 = vadd.f32 %v2011, 1.0
    %v2013 = vrcp.pop %v2012
    %v2014 = vmul.f32 %v2012, %v2013
    %v2015 = vsub.f32 1.0, %v2014
    %v2016 = vmul.f32 %v2013, %v2015
    %v2017 = vadd.f32 %v2013, %v2016
    %vm2018 = vweird.f32 %v2012
    %vm2019 = vweird.f32 %v2013
    %vm2020 = vmor %vm2018, %vm2019
    %v2021 = vsel %vm2020, %v2013, %v2017
    %v2022 = vand.u32 2147483647, %v2012
    %vm2023 = vcmp.eq.f32.partialorder %v2022, 8.507059e+37
    %v2024 = vand.u32 %v2012, 2147483648
    %v2025 = vor.u32 1.1754944e-38, %v2024
    %v2026 = vsel %vm2023, %v2025, %v2021
    %v2027 = vmul.f32 1.0, %v2026
    %v2028 = vadd.f32 %v2002, %v1838
    %v2029 = vxor.u32 %v2028, 2147483648
    %v2030 = vmul.f32 %v2029, 1.442695
    %v2031 = vpow.pop %v2030
    %v2032 = vadd.f32 %v2031, 1.0
    %v2033 = vrcp.pop %v2032
    %v2034 = vmul.f32 %v2032, %v2033
    %v2035 = vsub.f32 1.0, %v2034
    %v2036 = vmul.f32 %v2033, %v2035
    %v2037 = vadd.f32 %v2033, %v2036
    %vm2038 = vweird.f32 %v2032
    %vm2039 = vweird.f32 %v2033
    %vm2040 = vmor %vm2038, %vm2039
    %v2041 = vsel %vm2040, %v2033, %v2037
    %v2042 = vand.u32 2147483647, %v2032
    %vm2043 = vcmp.eq.f32.partialorder %v2042, 8.507059e+37
    %v2044 = vand.u32 %v2032, 2147483648
    %v2045 = vor.u32 1.1754944e-38, %v2044
    %v2046 = vsel %vm2043, %v2045, %v2041
    %v2047 = vmul.f32 1.0, %v2046
    %v2048 = vadd.f32 %v1878, %v1000
    %v2049 = vmul.f32 %v2027, %v2048
    %v2050 = vadd.f32 %v2003, %v2049
    %v2051 = vtanh.pop %v2050
    %v2052 = vsub.f32 1.0, %v2047
    %v2053 = vmul.f32 %v2052, %v2051
    %v2054 = vmul.f32 %v2047, %v1707
    %v2055 = vadd.f32 %v2053, %v2054
    %v2056 = vadd.f32 %v2005, %v1918
    %v2057 = vxor.u32 %v2056, 2147483648
    %v2058 = vmul.f32 %v2057, 1.442695
    %v2059 = vpow.pop %v2058
    %v2060 = vadd.f32 %v2059, 1.0
    %v2061 = vrcp.pop %v2060
    %v2062 = vmul.f32 %v2060, %v2061
    %v2063 = vsub.f32 1.0, %v2062
    %v2064 = vmul.f32 %v2061, %v2063
    %v2065 = vadd.f32 %v2061, %v2064
    %vm2066 = vweird.f32 %v2060
    %vm2067 = vweird.f32 %v2061
    %vm2068 = vmor %vm2066, %vm2067
    %v2069 = vsel %vm2068, %v2061, %v2065
    %v2070 = vand.u32 2147483647, %v2060
    %vm2071 = vcmp.eq.f32.partialorder %v2070, 8.507059e+37
    %v2072 = vand.u32 %v2060, 2147483648
    %v2073 = vor.u32 1.1754944e-38, %v2072
    %v2074 = vsel %vm2071, %v2073, %v2069
    %v2075 = vmul.f32 1.0, %v2074
    %v2076 = vadd.f32 %v2006, %v1958
    %v2077 = vxor.u32 %v2076, 2147483648
    %v2078 = vmul.f32 %v2077, 1.442695
    %v2079 = vpow.pop %v2078
    %v2080 = vadd.f32 %v2079, 1.0
    %v2081 = vrcp.pop %v2080
    %v2082 = vmul.f32 %v2080, %v2081
    %v2083 = vsub.f32 1.0, %v2082
    %v2084 = vmul.f32 %v2081, %v2083
    %v2085 = vadd.f32 %v2081, %v2084
    %vm2086 = vweird.f32 %v2080
    %vm2087 = vweird.f32 %v2081
    %vm2088 = vmor %vm2086, %vm2087
    %v2089 = vsel %vm2088, %v2081, %v2085
    %v2090 = vand.u32 2147483647, %v2080
    %vm2091 = vcmp.eq.f32.partialorder %v2090, 8.507059e+37
    %v2092 = vand.u32 %v2080, 2147483648
    %v2093 = vor.u32 1.1754944e-38, %v2092
    %v2094 = vsel %vm2091, %v2093, %v2089
    %v2095 = vmul.f32 1.0, %v2094
    %v2096 = vadd.f32 %v1998, %v1051
    %v2097 = vmul.f32 %v2075, %v2096
    %v2098 = vadd.f32 %v2007, %v2097
    %v2099 = vtanh.pop %v2098
    %v2100 = vsub.f32 1.0, %v2095
    %v2101 = vmul.f32 %v2100, %v2099
    %v2102 = vmul.f32 %v2095, %v1755
    %v2103 = vadd.f32 %v2101, %v2102
    %s2104 = scalar_lea.vmem [#allocation3], 48
    %2105 = vst [vmem:[%s2104] sm:$0xff] %v2055
    %s2106 = scalar_lea.vmem [#allocation3], 64
    %2107 = vst [vmem:[%s2106 + $0x8] sm:$0xff] %v2103
    %2108 = vmatpush.msra.mxu0 %v608
    %2109 = vmatpush.msra.mxu0 %v602
    %2110 = vmatpush.msra.mxu0 %v596
    %2111 = vmatpush.msra.mxu0 %v590
    %2112 = vmatpush.msra.mxu0 %v584
    %2113 = vmatpush.msra.mxu0 %v578
    %2114 = vmatpush.msra.mxu0 %v572
    %2115 = vmatpush.msra.mxu0 %v566
    %2116 = vmatpush.msra.mxu0 %v560
    %2117 = vmatpush.msra.mxu0 %v554
    %2118 = vmatpush.msra.mxu0 %v548
    %2119 = vmatpush.msra.mxu0 %v542
    %2120 = vmatpush.msra.mxu0 %v536
    %2121 = vmatpush.msra.mxu0 %v530
    %2122 = vmatpush.msra.mxu0 %v524
    %2123 = vmatpush.msra.mxu0 %v518
    %2124 = vmatmul.f32.gmra.mxu0 %v2055
    %v2125 = vpop.f32.mrf.mxu0
    %v2126 = vadd.f32 0.0, %v2125
    %2127 = vdwg.mxu0
    %2128 = vmatpush.msra.mxu0 %v704
    %2129 = vmatpush.msra.mxu0 %v698
    %2130 = vmatpush.msra.mxu0 %v692
    %2131 = vmatpush.msra.mxu0 %v686
    %2132 = vmatpush.msra.mxu0 %v680
    %2133 = vmatpush.msra.mxu0 %v674
    %2134 = vmatpush.msra.mxu0 %v668
    %2135 = vmatpush.msra.mxu0 %v662
    %2136 = vmatpush.msra.mxu0 %v656
    %2137 = vmatpush.msra.mxu0 %v650
    %2138 = vmatpush.msra.mxu0 %v644
    %2139 = vmatpush.msra.mxu0 %v638
    %2140 = vmatpush.msra.mxu0 %v632
    %2141 = vmatpush.msra.mxu0 %v626
    %2142 = vmatpush.msra.mxu0 %v620
    %2143 = vmatpush.msra.mxu0 %v614
    %2144 = vmatmul.f32.gmra.mxu0 %v2103
    %v2145 = vpop.f32.mrf.mxu0
    %v2146 = vadd.f32 %v2126, %v2145
    %2147 = vdwg.mxu0
    %2148 = vmatpush.msra.mxu0 %v609
    %2149 = vmatpush.msra.mxu0 %v603
    %2150 = vmatpush.msra.mxu0 %v597
    %2151 = vmatpush.msra.mxu0 %v591
    %2152 = vmatpush.msra.mxu0 %v585
    %2153 = vmatpush.msra.mxu0 %v579
    %2154 = vmatpush.msra.mxu0 %v573
    %2155 = vmatpush.msra.mxu0 %v567
    %2156 = vmatpush.msra.mxu0 %v561
    %2157 = vmatpush.msra.mxu0 %v555
    %2158 = vmatpush.msra.mxu0 %v549
    %2159 = vmatpush.msra.mxu0 %v543
    %2160 = vmatpush.msra.mxu0 %v537
    %2161 = vmatpush.msra.mxu0 %v531
    %2162 = vmatpush.msra.mxu0 %v525
    %2163 = vmatpush.msra.mxu0 %v519
    %2164 = vmatmul.f32.gmra.mxu0 %v2055
    %v2165 = vpop.f32.mrf.mxu0
    %v2166 = vadd.f32 0.0, %v2165
    %2167 = vdwg.mxu0
    %2168 = vmatpush.msra.mxu0 %v705
    %2169 = vmatpush.msra.mxu0 %v699
    %2170 = vmatpush.msra.mxu0 %v693
    %2171 = vmatpush.msra.mxu0 %v687
    %2172 = vmatpush.msra.mxu0 %v681
    %2173 = vmatpush.msra.mxu0 %v675
    %2174 = vmatpush.msra.mxu0 %v669
    %2175 = vmatpush.msra.mxu0 %v663
    %2176 = vmatpush.msra.mxu0 %v657
    %2177 = vmatpush.msra.mxu0 %v651
    %2178 = vmatpush.msra.mxu0 %v645
    %2179 = vmatpush.msra.mxu0 %v639
    %2180 = vmatpush.msra.mxu0 %v633
    %2181 = vmatpush.msra.mxu0 %v627
    %2182 = vmatpush.msra.mxu0 %v621
    %2183 = vmatpush.msra.mxu0 %v615
    %2184 = vmatmul.f32.gmra.mxu0 %v2103
    %v2185 = vpop.f32.mrf.mxu0
    %v2186 = vadd.f32 %v2166, %v2185
    %2187 = vdwg.mxu0
    %2188 = vmatpush.msra.mxu0 %v610
    %2189 = vmatpush.msra.mxu0 %v604
    %2190 = vmatpush.msra.mxu0 %v598
    %2191 = vmatpush.msra.mxu0 %v592
    %2192 = vmatpush.msra.mxu0 %v586
    %2193 = vmatpush.msra.mxu0 %v580
    %2194 = vmatpush.msra.mxu0 %v574
    %2195 = vmatpush.msra.mxu0 %v568
    %2196 = vmatpush.msra.mxu0 %v562
    %2197 = vmatpush.msra.mxu0 %v556
    %2198 = vmatpush.msra.mxu0 %v550
    %2199 = vmatpush.msra.mxu0 %v544
    %2200 = vmatpush.msra.mxu0 %v538
    %2201 = vmatpush.msra.mxu0 %v532
    %2202 = vmatpush.msra.mxu0 %v526
    %2203 = vmatpush.msra.mxu0 %v520
    %2204 = vmatmul.f32.gmra.mxu0 %v2055
    %v2205 = vpop.f32.mrf.mxu0
    %v2206 = vadd.f32 0.0, %v2205
    %2207 = vdwg.mxu0
    %2208 = vmatpush.msra.mxu0 %v706
    %2209 = vmatpush.msra.mxu0 %v700
    %2210 = vmatpush.msra.mxu0 %v694
    %2211 = vmatpush.msra.mxu0 %v688
    %2212 = vmatpush.msra.mxu0 %v682
    %2213 = vmatpush.msra.mxu0 %v676
    %2214 = vmatpush.msra.mxu0 %v670
    %2215 = vmatpush.msra.mxu0 %v664
    %2216 = vmatpush.msra.mxu0 %v658
    %2217 = vmatpush.msra.mxu0 %v652
    %2218 = vmatpush.msra.mxu0 %v646
    %2219 = vmatpush.msra.mxu0 %v640
    %2220 = vmatpush.msra.mxu0 %v634
    %2221 = vmatpush.msra.mxu0 %v628
    %2222 = vmatpush.msra.mxu0 %v622
    %2223 = vmatpush.msra.mxu0 %v616
    %2224 = vmatmul.f32.gmra.mxu0 %v2103
    %v2225 = vpop.f32.mrf.mxu0
    %v2226 = vadd.f32 %v2206, %v2225
    %2227 = vdwg.mxu0
    %2228 = vmatpush.msra.mxu0 %v611
    %2229 = vmatpush.msra.mxu0 %v605
    %2230 = vmatpush.msra.mxu0 %v599
    %2231 = vmatpush.msra.mxu0 %v593
    %2232 = vmatpush.msra.mxu0 %v587
    %2233 = vmatpush.msra.mxu0 %v581
    %2234 = vmatpush.msra.mxu0 %v575
    %2235 = vmatpush.msra.mxu0 %v569
    %2236 = vmatpush.msra.mxu0 %v563
    %2237 = vmatpush.msra.mxu0 %v557
    %2238 = vmatpush.msra.mxu0 %v551
    %2239 = vmatpush.msra.mxu0 %v545
    %2240 = vmatpush.msra.mxu0 %v539
    %2241 = vmatpush.msra.mxu0 %v533
    %2242 = vmatpush.msra.mxu0 %v527
    %2243 = vmatpush.msra.mxu0 %v521
    %2244 = vmatmul.f32.gmra.mxu0 %v2055
    %v2245 = vpop.f32.mrf.mxu0
    %v2246 = vadd.f32 0.0, %v2245
    %2247 = vdwg.mxu0
    %2248 = vmatpush.msra.mxu0 %v707
    %2249 = vmatpush.msra.mxu0 %v701
    %2250 = vmatpush.msra.mxu0 %v695
    %2251 = vmatpush.msra.mxu0 %v689
    %2252 = vmatpush.msra.mxu0 %v683
    %2253 = vmatpush.msra.mxu0 %v677
    %2254 = vmatpush.msra.mxu0 %v671
    %2255 = vmatpush.msra.mxu0 %v665
    %2256 = vmatpush.msra.mxu0 %v659
    %2257 = vmatpush.msra.mxu0 %v653
    %2258 = vmatpush.msra.mxu0 %v647
    %2259 = vmatpush.msra.mxu0 %v641
    %2260 = vmatpush.msra.mxu0 %v635
    %2261 = vmatpush.msra.mxu0 %v629
    %2262 = vmatpush.msra.mxu0 %v623
    %2263 = vmatpush.msra.mxu0 %v617
    %2264 = vmatmul.f32.gmra.mxu0 %v2103
    %v2265 = vpop.f32.mrf.mxu0
    %v2266 = vadd.f32 %v2246, %v2265
    %2267 = vdwg.mxu0
    %2268 = vmatpush.msra.mxu0 %v612
    %2269 = vmatpush.msra.mxu0 %v606
    %2270 = vmatpush.msra.mxu0 %v600
    %2271 = vmatpush.msra.mxu0 %v594
    %2272 = vmatpush.msra.mxu0 %v588
    %2273 = vmatpush.msra.mxu0 %v582
    %2274 = vmatpush.msra.mxu0 %v576
    %2275 = vmatpush.msra.mxu0 %v570
    %2276 = vmatpush.msra.mxu0 %v564
    %2277 = vmatpush.msra.mxu0 %v558
    %2278 = vmatpush.msra.mxu0 %v552
    %2279 = vmatpush.msra.mxu0 %v546
    %2280 = vmatpush.msra.mxu0 %v540
    %2281 = vmatpush.msra.mxu0 %v534
    %2282 = vmatpush.msra.mxu0 %v528
    %2283 = vmatpush.msra.mxu0 %v522
    %2284 = vmatmul.f32.gmra.mxu0 %v2055
    %v2285 = vpop.f32.mrf.mxu0
    %v2286 = vadd.f32 0.0, %v2285
    %2287 = vdwg.mxu0
    %2288 = vmatpush.msra.mxu0 %v708
    %2289 = vmatpush.msra.mxu0 %v702
    %2290 = vmatpush.msra.mxu0 %v696
    %2291 = vmatpush.msra.mxu0 %v690
    %2292 = vmatpush.msra.mxu0 %v684
    %2293 = vmatpush.msra.mxu0 %v678
    %2294 = vmatpush.msra.mxu0 %v672
    %2295 = vmatpush.msra.mxu0 %v666
    %2296 = vmatpush.msra.mxu0 %v660
    %2297 = vmatpush.msra.mxu0 %v654
    %2298 = vmatpush.msra.mxu0 %v648
    %2299 = vmatpush.msra.mxu0 %v642
    %2300 = vmatpush.msra.mxu0 %v636
    %2301 = vmatpush.msra.mxu0 %v630
    %2302 = vmatpush.msra.mxu0 %v624
    %2303 = vmatpush.msra.mxu0 %v618
    %2304 = vmatmul.f32.gmra.mxu0 %v2103
    %v2305 = vpop.f32.mrf.mxu0
    %v2306 = vadd.f32 %v2286, %v2305
    %2307 = vdwg.mxu0
    %2308 = vmatpush.msra.mxu0 %v613
    %2309 = vmatpush.msra.mxu0 %v607
    %2310 = vmatpush.msra.mxu0 %v601
    %2311 = vmatpush.msra.mxu0 %v595
    %2312 = vmatpush.msra.mxu0 %v589
    %2313 = vmatpush.msra.mxu0 %v583
    %2314 = vmatpush.msra.mxu0 %v577
    %2315 = vmatpush.msra.mxu0 %v571
    %2316 = vmatpush.msra.mxu0 %v565
    %2317 = vmatpush.msra.mxu0 %v559
    %2318 = vmatpush.msra.mxu0 %v553
    %2319 = vmatpush.msra.mxu0 %v547
    %2320 = vmatpush.msra.mxu0 %v541
    %2321 = vmatpush.msra.mxu0 %v535
    %2322 = vmatpush.msra.mxu0 %v529
    %2323 = vmatpush.msra.mxu0 %v523
    %2324 = vmatmul.f32.gmra.mxu0 %v2055
    %v2325 = vpop.f32.mrf.mxu0
    %v2326 = vadd.f32 0.0, %v2325
    %2327 = vdwg.mxu0
    %2328 = vmatpush.msra.mxu0 %v709
    %2329 = vmatpush.msra.mxu0 %v703
    %2330 = vmatpush.msra.mxu0 %v697
    %2331 = vmatpush.msra.mxu0 %v691
    %2332 = vmatpush.msra.mxu0 %v685
    %2333 = vmatpush.msra.mxu0 %v679
    %2334 = vmatpush.msra.mxu0 %v673
    %2335 = vmatpush.msra.mxu0 %v667
    %2336 = vmatpush.msra.mxu0 %v661
    %2337 = vmatpush.msra.mxu0 %v655
    %2338 = vmatpush.msra.mxu0 %v649
    %2339 = vmatpush.msra.mxu0 %v643
    %2340 = vmatpush.msra.mxu0 %v637
    %2341 = vmatpush.msra.mxu0 %v631
    %2342 = vmatpush.msra.mxu0 %v625
    %2343 = vmatpush.msra.mxu0 %v619
    %2344 = vmatmul.f32.gmra.mxu0 %v2103
    %v2345 = vpop.f32.mrf.mxu0
    %v2346 = vadd.f32 %v2326, %v2345
    %2347 = vdwg.mxu0
    %v2348 = vld [vmem:[%s2004] sm:$0xff]
    %v2349 = vld [vmem:[%s2004 + $0x8] sm:$0xff]
    %v2350 = vld [vmem:[%s2004 + $0x10] sm:$0xff]
    %v2351 = vld [vmem:[%s2000 + $0x18] sm:$0xff]
    %v2352 = vld [vmem:[%s2000 + $0x20] sm:$0xff]
    %v2353 = vld [vmem:[%s2000 + $0x28] sm:$0xff]
    %v2354 = vadd.f32 %v2348, %v2146
    %v2355 = vxor.u32 %v2354, 2147483648
    %v2356 = vmul.f32 %v2355, 1.442695
    %v2357 = vpow.pop %v2356
    %v2358 = vadd.f32 %v2357, 1.0
    %v2359 = vrcp.pop %v2358
    %v2360 = vmul.f32 %v2358, %v2359
    %v2361 = vsub.f32 1.0, %v2360
    %v2362 = vmul.f32 %v2359, %v2361
    %v2363 = vadd.f32 %v2359, %v2362
    %vm2364 = vweird.f32 %v2358
    %vm2365 = vweird.f32 %v2359
    %vm2366 = vmor %vm2364, %vm2365
    %v2367 = vsel %vm2366, %v2359, %v2363
    %v2368 = vand.u32 2147483647, %v2358
    %vm2369 = vcmp.eq.f32.partialorder %v2368, 8.507059e+37
    %v2370 = vand.u32 %v2358, 2147483648
    %v2371 = vor.u32 1.1754944e-38, %v2370
    %v2372 = vsel %vm2369, %v2371, %v2367
    %v2373 = vmul.f32 1.0, %v2372
    %v2374 = vadd.f32 %v2349, %v2186
    %v2375 = vxor.u32 %v2374, 2147483648
    %v2376 = vmul.f32 %v2375, 1.442695
    %v2377 = vpow.pop %v2376
    %v2378 = vadd.f32 %v2377, 1.0
    %v2379 = vrcp.pop %v2378
    %v2380 = vmul.f32 %v2378, %v2379
    %v2381 = vsub.f32 1.0, %v2380
    %v2382 = vmul.f32 %v2379, %v2381
    %v2383 = vadd.f32 %v2379, %v2382
    %vm2384 = vweird.f32 %v2378
    %vm2385 = vweird.f32 %v2379
    %vm2386 = vmor %vm2384, %vm2385
    %v2387 = vsel %vm2386, %v2379, %v2383
    %v2388 = vand.u32 2147483647, %v2378
    %vm2389 = vcmp.eq.f32.partialorder %v2388, 8.507059e+37
    %v2390 = vand.u32 %v2378, 2147483648
    %v2391 = vor.u32 1.1754944e-38, %v2390
    %v2392 = vsel %vm2389, %v2391, %v2387
    %v2393 = vmul.f32 1.0, %v2392
    %v2394 = vadd.f32 %v2226, %v1000
    %v2395 = vmul.f32 %v2373, %v2394
    %v2396 = vadd.f32 %v2350, %v2395
    %v2397 = vtanh.pop %v2396
    %v2398 = vsub.f32 1.0, %v2393
    %v2399 = vmul.f32 %v2398, %v2397
    %v2400 = vmul.f32 %v2393, %v2055
    %v2401 = vadd.f32 %v2399, %v2400
    %v2402 = vadd.f32 %v2351, %v2266
    %v2403 = vxor.u32 %v2402, 2147483648
    %v2404 = vmul.f32 %v2403, 1.442695
    %v2405 = vpow.pop %v2404
    %v2406 = vadd.f32 %v2405, 1.0
    %v2407 = vrcp.pop %v2406
    %v2408 = vmul.f32 %v2406, %v2407
    %v2409 = vsub.f32 1.0, %v2408
    %v2410 = vmul.f32 %v2407, %v2409
    %v2411 = vadd.f32 %v2407, %v2410
    %vm2412 = vweird.f32 %v2406
    %vm2413 = vweird.f32 %v2407
    %vm2414 = vmor %vm2412, %vm2413
    %v2415 = vsel %vm2414, %v2407, %v2411
    %v2416 = vand.u32 2147483647, %v2406
    %vm2417 = vcmp.eq.f32.partialorder %v2416, 8.507059e+37
    %v2418 = vand.u32 %v2406, 2147483648
    %v2419 = vor.u32 1.1754944e-38, %v2418
    %v2420 = vsel %vm2417, %v2419, %v2415
    %v2421 = vmul.f32 1.0, %v2420
    %v2422 = vadd.f32 %v2352, %v2306
    %v2423 = vxor.u32 %v2422, 2147483648
    %v2424 = vmul.f32 %v2423, 1.442695
    %v2425 = vpow.pop %v2424
    %v2426 = vadd.f32 %v2425, 1.0
    %v2427 = vrcp.pop %v2426
    %v2428 = vmul.f32 %v2426, %v2427
    %v2429 = vsub.f32 1.0, %v2428
    %v2430 = vmul.f32 %v2427, %v2429
    %v2431 = vadd.f32 %v2427, %v2430
    %vm2432 = vweird.f32 %v2426
    %vm2433 = vweird.f32 %v2427
    %vm2434 = vmor %vm2432, %vm2433
    %v2435 = vsel %vm2434, %v2427, %v2431
    %v2436 = vand.u32 2147483647, %v2426
    %vm2437 = vcmp.eq.f32.partialorder %v2436, 8.507059e+37
    %v2438 = vand.u32 %v2426, 2147483648
    %v2439 = vor.u32 1.1754944e-38, %v2438
    %v2440 = vsel %vm2437, %v2439, %v2435
    %v2441 = vmul.f32 1.0, %v2440
    %v2442 = vadd.f32 %v2346, %v1051
    %v2443 = vmul.f32 %v2421, %v2442
    %v2444 = vadd.f32 %v2353, %v2443
    %v2445 = vtanh.pop %v2444
    %v2446 = vsub.f32 1.0, %v2441
    %v2447 = vmul.f32 %v2446, %v2445
    %v2448 = vmul.f32 %v2441, %v2103
    %v2449 = vadd.f32 %v2447, %v2448
    %2450 = vst [vmem:[%s2106] sm:$0xff] %v2401
    %2451 = vst [vmem:[%s2104 + $0x8] sm:$0xff] %v2449
    %2452 = vmatpush.msra.mxu0 %v608
    %2453 = vmatpush.msra.mxu0 %v602
    %2454 = vmatpush.msra.mxu0 %v596
    %2455 = vmatpush.msra.mxu0 %v590
    %2456 = vmatpush.msra.mxu0 %v584
    %2457 = vmatpush.msra.mxu0 %v578
    %2458 = vmatpush.msra.mxu0 %v572
    %2459 = vmatpush.msra.mxu0 %v566
    %2460 = vmatpush.msra.mxu0 %v560
    %2461 = vmatpush.msra.mxu0 %v554
    %2462 = vmatpush.msra.mxu0 %v548
    %2463 = vmatpush.msra.mxu0 %v542
    %2464 = vmatpush.msra.mxu0 %v536
    %2465 = vmatpush.msra.mxu0 %v530
    %2466 = vmatpush.msra.mxu0 %v524
    %2467 = vmatpush.msra.mxu0 %v518
    %2468 = vmatmul.f32.gmra.mxu0 %v2401
    %v2469 = vpop.f32.mrf.mxu0
    %v2470 = vadd.f32 0.0, %v2469
    %2471 = vdwg.mxu0
    %2472 = vmatpush.msra.mxu0 %v704
    %2473 = vmatpush.msra.mxu0 %v698
    %2474 = vmatpush.msra.mxu0 %v692
    %2475 = vmatpush.msra.mxu0 %v686
    %2476 = vmatpush.msra.mxu0 %v680
    %2477 = vmatpush.msra.mxu0 %v674
    %2478 = vmatpush.msra.mxu0 %v668
    %2479 = vmatpush.msra.mxu0 %v662
    %2480 = vmatpush.msra.mxu0 %v656
    %2481 = vmatpush.msra.mxu0 %v650
    %2482 = vmatpush.msra.mxu0 %v644
    %2483 = vmatpush.msra.mxu0 %v638
    %2484 = vmatpush.msra.mxu0 %v632
    %2485 = vmatpush.msra.mxu0 %v626
    %2486 = vmatpush.msra.mxu0 %v620
    %2487 = vmatpush.msra.mxu0 %v614
    %2488 = vmatmul.f32.gmra.mxu0 %v2449
    %v2489 = vpop.f32.mrf.mxu0
    %v2490 = vadd.f32 %v2470, %v2489
    %2491 = vdwg.mxu0
    %2492 = vmatpush.msra.mxu0 %v609
    %2493 = vmatpush.msra.mxu0 %v603
    %2494 = vmatpush.msra.mxu0 %v597
    %2495 = vmatpush.msra.mxu0 %v591
    %2496 = vmatpush.msra.mxu0 %v585
    %2497 = vmatpush.msra.mxu0 %v579
    %2498 = vmatpush.msra.mxu0 %v573
    %2499 = vmatpush.msra.mxu0 %v567
    %2500 = vmatpush.msra.mxu0 %v561
    %2501 = vmatpush.msra.mxu0 %v555
    %2502 = vmatpush.msra.mxu0 %v549
    %2503 = vmatpush.msra.mxu0 %v543
    %2504 = vmatpush.msra.mxu0 %v537
    %2505 = vmatpush.msra.mxu0 %v531
    %2506 = vmatpush.msra.mxu0 %v525
    %2507 = vmatpush.msra.mxu0 %v519
    %2508 = vmatmul.f32.gmra.mxu0 %v2401
    %v2509 = vpop.f32.mrf.mxu0
    %v2510 = vadd.f32 0.0, %v2509
    %2511 = vdwg.mxu0
    %2512 = vmatpush.msra.mxu0 %v705
    %2513 = vmatpush.msra.mxu0 %v699
    %2514 = vmatpush.msra.mxu0 %v693
    %2515 = vmatpush.msra.mxu0 %v687
    %2516 = vmatpush.msra.mxu0 %v681
    %2517 = vmatpush.msra.mxu0 %v675
    %2518 = vmatpush.msra.mxu0 %v669
    %2519 = vmatpush.msra.mxu0 %v663
    %2520 = vmatpush.msra.mxu0 %v657
    %2521 = vmatpush.msra.mxu0 %v651
    %2522 = vmatpush.msra.mxu0 %v645
    %2523 = vmatpush.msra.mxu0 %v639
    %2524 = vmatpush.msra.mxu0 %v633
    %2525 = vmatpush.msra.mxu0 %v627
    %2526 = vmatpush.msra.mxu0 %v621
    %2527 = vmatpush.msra.mxu0 %v615
    %2528 = vmatmul.f32.gmra.mxu0 %v2449
    %v2529 = vpop.f32.mrf.mxu0
    %v2530 = vadd.f32 %v2510, %v2529
    %2531 = vdwg.mxu0
    %2532 = vmatpush.msra.mxu0 %v610
    %2533 = vmatpush.msra.mxu0 %v604
    %2534 = vmatpush.msra.mxu0 %v598
    %2535 = vmatpush.msra.mxu0 %v592
    %2536 = vmatpush.msra.mxu0 %v586
    %2537 = vmatpush.msra.mxu0 %v580
    %2538 = vmatpush.msra.mxu0 %v574
    %2539 = vmatpush.msra.mxu0 %v568
    %2540 = vmatpush.msra.mxu0 %v562
    %2541 = vmatpush.msra.mxu0 %v556
    %2542 = vmatpush.msra.mxu0 %v550
    %2543 = vmatpush.msra.mxu0 %v544
    %2544 = vmatpush.msra.mxu0 %v538
    %2545 = vmatpush.msra.mxu0 %v532
    %2546 = vmatpush.msra.mxu0 %v526
    %2547 = vmatpush.msra.mxu0 %v520
    %2548 = vmatmul.f32.gmra.mxu0 %v2401
    %v2549 = vpop.f32.mrf.mxu0
    %v2550 = vadd.f32 0.0, %v2549
    %2551 = vdwg.mxu0
    %2552 = vmatpush.msra.mxu0 %v706
    %2553 = vmatpush.msra.mxu0 %v700
    %2554 = vmatpush.msra.mxu0 %v694
    %2555 = vmatpush.msra.mxu0 %v688
    %2556 = vmatpush.msra.mxu0 %v682
    %2557 = vmatpush.msra.mxu0 %v676
    %2558 = vmatpush.msra.mxu0 %v670
    %2559 = vmatpush.msra.mxu0 %v664
    %2560 = vmatpush.msra.mxu0 %v658
    %2561 = vmatpush.msra.mxu0 %v652
    %2562 = vmatpush.msra.mxu0 %v646
    %2563 = vmatpush.msra.mxu0 %v640
    %2564 = vmatpush.msra.mxu0 %v634
    %2565 = vmatpush.msra.mxu0 %v628
    %2566 = vmatpush.msra.mxu0 %v622
    %2567 = vmatpush.msra.mxu0 %v616
    %2568 = vmatmul.f32.gmra.mxu0 %v2449
    %v2569 = vpop.f32.mrf.mxu0
    %v2570 = vadd.f32 %v2550, %v2569
    %2571 = vdwg.mxu0
    %2572 = vmatpush.msra.mxu0 %v611
    %2573 = vmatpush.msra.mxu0 %v605
    %2574 = vmatpush.msra.mxu0 %v599
    %2575 = vmatpush.msra.mxu0 %v593
    %2576 = vmatpush.msra.mxu0 %v587
    %2577 = vmatpush.msra.mxu0 %v581
    %2578 = vmatpush.msra.mxu0 %v575
    %2579 = vmatpush.msra.mxu0 %v569
    %2580 = vmatpush.msra.mxu0 %v563
    %2581 = vmatpush.msra.mxu0 %v557
    %2582 = vmatpush.msra.mxu0 %v551
    %2583 = vmatpush.msra.mxu0 %v545
    %2584 = vmatpush.msra.mxu0 %v539
    %2585 = vmatpush.msra.mxu0 %v533
    %2586 = vmatpush.msra.mxu0 %v527
    %2587 = vmatpush.msra.mxu0 %v521
    %2588 = vmatmul.f32.gmra.mxu0 %v2401
    %v2589 = vpop.f32.mrf.mxu0
    %v2590 = vadd.f32 0.0, %v2589
    %2591 = vdwg.mxu0
    %2592 = vmatpush.msra.mxu0 %v707
    %2593 = vmatpush.msra.mxu0 %v701
    %2594 = vmatpush.msra.mxu0 %v695
    %2595 = vmatpush.msra.mxu0 %v689
    %2596 = vmatpush.msra.mxu0 %v683
    %2597 = vmatpush.msra.mxu0 %v677
    %2598 = vmatpush.msra.mxu0 %v671
    %2599 = vmatpush.msra.mxu0 %v665
    %2600 = vmatpush.msra.mxu0 %v659
    %2601 = vmatpush.msra.mxu0 %v653
    %2602 = vmatpush.msra.mxu0 %v647
    %2603 = vmatpush.msra.mxu0 %v641
    %2604 = vmatpush.msra.mxu0 %v635
    %2605 = vmatpush.msra.mxu0 %v629
    %2606 = vmatpush.msra.mxu0 %v623
    %2607 = vmatpush.msra.mxu0 %v617
    %2608 = vmatmul.f32.gmra.mxu0 %v2449
    %v2609 = vpop.f32.mrf.mxu0
    %v2610 = vadd.f32 %v2590, %v2609
    %2611 = vdwg.mxu0
    %2612 = vmatpush.msra.mxu0 %v612
    %2613 = vmatpush.msra.mxu0 %v606
    %2614 = vmatpush.msra.mxu0 %v600
    %2615 = vmatpush.msra.mxu0 %v594
    %2616 = vmatpush.msra.mxu0 %v588
    %2617 = vmatpush.msra.mxu0 %v582
    %2618 = vmatpush.msra.mxu0 %v576
    %2619 = vmatpush.msra.mxu0 %v570
    %2620 = vmatpush.msra.mxu0 %v564
    %2621 = vmatpush.msra.mxu0 %v558
    %2622 = vmatpush.msra.mxu0 %v552
    %2623 = vmatpush.msra.mxu0 %v546
    %2624 = vmatpush.msra.mxu0 %v540
    %2625 = vmatpush.msra.mxu0 %v534
    %2626 = vmatpush.msra.mxu0 %v528
    %2627 = vmatpush.msra.mxu0 %v522
    %2628 = vmatmul.f32.gmra.mxu0 %v2401
    %v2629 = vpop.f32.mrf.mxu0
    %v2630 = vadd.f32 0.0, %v2629
    %2631 = vdwg.mxu0
    %2632 = vmatpush.msra.mxu0 %v708
    %2633 = vmatpush.msra.mxu0 %v702
    %2634 = vmatpush.msra.mxu0 %v696
    %2635 = vmatpush.msra.mxu0 %v690
    %2636 = vmatpush.msra.mxu0 %v684
    %2637 = vmatpush.msra.mxu0 %v678
    %2638 = vmatpush.msra.mxu0 %v672
    %2639 = vmatpush.msra.mxu0 %v666
    %2640 = vmatpush.msra.mxu0 %v660
    %2641 = vmatpush.msra.mxu0 %v654
    %2642 = vmatpush.msra.mxu0 %v648
    %2643 = vmatpush.msra.mxu0 %v642
    %2644 = vmatpush.msra.mxu0 %v636
    %2645 = vmatpush.msra.mxu0 %v630
    %2646 = vmatpush.msra.mxu0 %v624
    %2647 = vmatpush.msra.mxu0 %v618
    %2648 = vmatmul.f32.gmra.mxu0 %v2449
    %v2649 = vpop.f32.mrf.mxu0
    %v2650 = vadd.f32 %v2630, %v2649
    %2651 = vdwg.mxu0
    %2652 = vmatpush.msra.mxu0 %v613
    %2653 = vmatpush.msra.mxu0 %v607
    %2654 = vmatpush.msra.mxu0 %v601
    %2655 = vmatpush.msra.mxu0 %v595
    %2656 = vmatpush.msra.mxu0 %v589
    %2657 = vmatpush.msra.mxu0 %v583
    %2658 = vmatpush.msra.mxu0 %v577
    %2659 = vmatpush.msra.mxu0 %v571
    %2660 = vmatpush.msra.mxu0 %v565
    %2661 = vmatpush.msra.mxu0 %v559
    %2662 = vmatpush.msra.mxu0 %v553
    %2663 = vmatpush.msra.mxu0 %v547
    %2664 = vmatpush.msra.mxu0 %v541
    %2665 = vmatpush.msra.mxu0 %v535
    %2666 = vmatpush.msra.mxu0 %v529
    %2667 = vmatpush.msra.mxu0 %v523
    %2668 = vmatmul.f32.gmra.mxu0 %v2401
    %v2669 = vpop.f32.mrf.mxu0
    %v2670 = vadd.f32 0.0, %v2669
    %2671 = vdwg.mxu0
    %2672 = vmatpush.msra.mxu0 %v709
    %2673 = vmatpush.msra.mxu0 %v703
    %2674 = vmatpush.msra.mxu0 %v697
    %2675 = vmatpush.msra.mxu0 %v691
    %2676 = vmatpush.msra.mxu0 %v685
    %2677 = vmatpush.msra.mxu0 %v679
    %2678 = vmatpush.msra.mxu0 %v673
    %2679 = vmatpush.msra.mxu0 %v667
    %2680 = vmatpush.msra.mxu0 %v661
    %2681 = vmatpush.msra.mxu0 %v655
    %2682 = vmatpush.msra.mxu0 %v649
    %2683 = vmatpush.msra.mxu0 %v643
    %2684 = vmatpush.msra.mxu0 %v637
    %2685 = vmatpush.msra.mxu0 %v631
    %2686 = vmatpush.msra.mxu0 %v625
    %2687 = vmatpush.msra.mxu0 %v619
    %2688 = vmatmul.f32.gmra.mxu0 %v2449
    %v2689 = vpop.f32.mrf.mxu0
    %v2690 = vadd.f32 %v2670, %v2689
    %2691 = vdwg.mxu0
    %v2692 = vld [vmem:[%s1656] sm:$0xff]
    %v2693 = vld [vmem:[%s1656 + $0x8] sm:$0xff]
    %v2694 = vld [vmem:[%s1656 + $0x10] sm:$0xff]
    %v2695 = vld [vmem:[%s1652 + $0x18] sm:$0xff]
    %v2696 = vld [vmem:[%s1652 + $0x20] sm:$0xff]
    %v2697 = vld [vmem:[%s1652 + $0x28] sm:$0xff]
    %v2698 = vadd.f32 %v2692, %v2490
    %v2699 = vxor.u32 %v2698, 2147483648
    %v2700 = vmul.f32 %v2699, 1.442695
    %v2701 = vpow.pop %v2700
    %v2702 = vadd.f32 %v2701, 1.0
    %v2703 = vrcp.pop %v2702
    %v2704 = vmul.f32 %v2702, %v2703
    %v2705 = vsub.f32 1.0, %v2704
    %v2706 = vmul.f32 %v2703, %v2705
    %v2707 = vadd.f32 %v2703, %v2706
    %vm2708 = vweird.f32 %v2702
    %vm2709 = vweird.f32 %v2703
    %vm2710 = vmor %vm2708, %vm2709
    %v2711 = vsel %vm2710, %v2703, %v2707
    %v2712 = vand.u32 2147483647, %v2702
    %vm2713 = vcmp.eq.f32.partialorder %v2712, 8.507059e+37
    %v2714 = vand.u32 %v2702, 2147483648
    %v2715 = vor.u32 1.1754944e-38, %v2714
    %v2716 = vsel %vm2713, %v2715, %v2711
    %v2717 = vmul.f32 1.0, %v2716
    %v2718 = vadd.f32 %v2693, %v2530
    %v2719 = vxor.u32 %v2718, 2147483648
    %v2720 = vmul.f32 %v2719, 1.442695
    %v2721 = vpow.pop %v2720
    %v2722 = vadd.f32 %v2721, 1.0
    %v2723 = vrcp.pop %v2722
    %v2724 = vmul.f32 %v2722, %v2723
    %v2725 = vsub.f32 1.0, %v2724
    %v2726 = vmul.f32 %v2723, %v2725
    %v2727 = vadd.f32 %v2723, %v2726
    %vm2728 = vweird.f32 %v2722
    %vm2729 = vweird.f32 %v2723
    %vm2730 = vmor %vm2728, %vm2729
    %v2731 = vsel %vm2730, %v2723, %v2727
    %v2732 = vand.u32 2147483647, %v2722
    %vm2733 = vcmp.eq.f32.partialorder %v2732, 8.507059e+37
    %v2734 = vand.u32 %v2722, 2147483648
    %v2735 = vor.u32 1.1754944e-38, %v2734
    %v2736 = vsel %vm2733, %v2735, %v2731
    %v2737 = vmul.f32 1.0, %v2736
    %v2738 = vadd.f32 %v2570, %v1000
    %v2739 = vmul.f32 %v2717, %v2738
    %v2740 = vadd.f32 %v2694, %v2739
    %v2741 = vtanh.pop %v2740
    %v2742 = vsub.f32 1.0, %v2737
    %v2743 = vmul.f32 %v2742, %v2741
    %v2744 = vmul.f32 %v2737, %v2401
    %v2745 = vadd.f32 %v2743, %v2744
    %v2746 = vadd.f32 %v2695, %v2610
    %v2747 = vxor.u32 %v2746, 2147483648
    %v2748 = vmul.f32 %v2747, 1.442695
    %v2749 = vpow.pop %v2748
    %v2750 = vadd.f32 %v2749, 1.0
    %v2751 = vrcp.pop %v2750
    %v2752 = vmul.f32 %v2750, %v2751
    %v2753 = vsub.f32 1.0, %v2752
    %v2754 = vmul.f32 %v2751, %v2753
    %v2755 = vadd.f32 %v2751, %v2754
    %vm2756 = vweird.f32 %v2750
    %vm2757 = vweird.f32 %v2751
    %vm2758 = vmor %vm2756, %vm2757
    %v2759 = vsel %vm2758, %v2751, %v2755
    %v2760 = vand.u32 2147483647, %v2750
    %vm2761 = vcmp.eq.f32.partialorder %v2760, 8.507059e+37
    %v2762 = vand.u32 %v2750, 2147483648
    %v2763 = vor.u32 1.1754944e-38, %v2762
    %v2764 = vsel %vm2761, %v2763, %v2759
    %v2765 = vmul.f32 1.0, %v2764
    %v2766 = vadd.f32 %v2696, %v2650
    %v2767 = vxor.u32 %v2766, 2147483648
    %v2768 = vmul.f32 %v2767, 1.442695
    %v2769 = vpow.pop %v2768
    %v2770 = vadd.f32 %v2769, 1.0
    %v2771 = vrcp.pop %v2770
    %v2772 = vmul.f32 %v2770, %v2771
    %v2773 = vsub.f32 1.0, %v2772
    %v2774 = vmul.f32 %v2771, %v2773
    %v2775 = vadd.f32 %v2771, %v2774
    %vm2776 = vweird.f32 %v2770
    %vm2777 = vweird.f32 %v2771
    %vm2778 = vmor %vm2776, %vm2777
    %v2779 = vsel %vm2778, %v2771, %v2775
    %v2780 = vand.u32 2147483647, %v2770
    %vm2781 = vcmp.eq.f32.partialorder %v2780, 8.507059e+37
    %v2782 = vand.u32 %v2770, 2147483648
    %v2783 = vor.u32 1.1754944e-38, %v2782
    %v2784 = vsel %vm2781, %v2783, %v2779
    %v2785 = vmul.f32 1.0, %v2784
    %v2786 = vadd.f32 %v2690, %v1051
    %v2787 = vmul.f32 %v2765, %v2786
    %v2788 = vadd.f32 %v2697, %v2787
    %v2789 = vtanh.pop %v2788
    %v2790 = vsub.f32 1.0, %v2785
    %v2791 = vmul.f32 %v2790, %v2789
    %v2792 = vmul.f32 %v2785, %v2449
    %v2793 = vadd.f32 %v2791, %v2792
    %2794 = vst [vmem:[%s1758] sm:$0xff] %v2745
    %2795 = vst [vmem:[%s1756 + $0x8] sm:$0xff] %v2793
    %2796 = vmatpush.msra.mxu0 %v608
    %2797 = vmatpush.msra.mxu0 %v602
    %2798 = vmatpush.msra.mxu0 %v596
    %2799 = vmatpush.msra.mxu0 %v590
    %2800 = vmatpush.msra.mxu0 %v584
    %2801 = vmatpush.msra.mxu0 %v578
    %2802 = vmatpush.msra.mxu0 %v572
    %2803 = vmatpush.msra.mxu0 %v566
    %2804 = vmatpush.msra.mxu0 %v560
    %2805 = vmatpush.msra.mxu0 %v554
    %2806 = vmatpush.msra.mxu0 %v548
    %2807 = vmatpush.msra.mxu0 %v542
    %2808 = vmatpush.msra.mxu0 %v536
    %2809 = vmatpush.msra.mxu0 %v530
    %2810 = vmatpush.msra.mxu0 %v524
    %2811 = vmatpush.msra.mxu0 %v518
    %2812 = vmatmul.f32.gmra.mxu0 %v2745
    %v2813 = vpop.f32.mrf.mxu0
    %v2814 = vadd.f32 0.0, %v2813
    %2815 = vdwg.mxu0
    %2816 = vmatpush.msra.mxu0 %v704
    %2817 = vmatpush.msra.mxu0 %v698
    %2818 = vmatpush.msra.mxu0 %v692
    %2819 = vmatpush.msra.mxu0 %v686
    %2820 = vmatpush.msra.mxu0 %v680
    %2821 = vmatpush.msra.mxu0 %v674
    %2822 = vmatpush.msra.mxu0 %v668
    %2823 = vmatpush.msra.mxu0 %v662
    %2824 = vmatpush.msra.mxu0 %v656
    %2825 = vmatpush.msra.mxu0 %v650
    %2826 = vmatpush.msra.mxu0 %v644
    %2827 = vmatpush.msra.mxu0 %v638
    %2828 = vmatpush.msra.mxu0 %v632
    %2829 = vmatpush.msra.mxu0 %v626
    %2830 = vmatpush.msra.mxu0 %v620
    %2831 = vmatpush.msra.mxu0 %v614
    %2832 = vmatmul.f32.gmra.mxu0 %v2793
    %v2833 = vpop.f32.mrf.mxu0
    %v2834 = vadd.f32 %v2814, %v2833
    %2835 = vdwg.mxu0
    %2836 = vmatpush.msra.mxu0 %v609
    %2837 = vmatpush.msra.mxu0 %v603
    %2838 = vmatpush.msra.mxu0 %v597
    %2839 = vmatpush.msra.mxu0 %v591
    %2840 = vmatpush.msra.mxu0 %v585
    %2841 = vmatpush.msra.mxu0 %v579
    %2842 = vmatpush.msra.mxu0 %v573
    %2843 = vmatpush.msra.mxu0 %v567
    %2844 = vmatpush.msra.mxu0 %v561
    %2845 = vmatpush.msra.mxu0 %v555
    %2846 = vmatpush.msra.mxu0 %v549
    %2847 = vmatpush.msra.mxu0 %v543
    %2848 = vmatpush.msra.mxu0 %v537
    %2849 = vmatpush.msra.mxu0 %v531
    %2850 = vmatpush.msra.mxu0 %v525
    %2851 = vmatpush.msra.mxu0 %v519
    %2852 = vmatmul.f32.gmra.mxu0 %v2745
    %v2853 = vpop.f32.mrf.mxu0
    %v2854 = vadd.f32 0.0, %v2853
    %2855 = vdwg.mxu0
    %2856 = vmatpush.msra.mxu0 %v705
    %2857 = vmatpush.msra.mxu0 %v699
    %2858 = vmatpush.msra.mxu0 %v693
    %2859 = vmatpush.msra.mxu0 %v687
    %2860 = vmatpush.msra.mxu0 %v681
    %2861 = vmatpush.msra.mxu0 %v675
    %2862 = vmatpush.msra.mxu0 %v669
    %2863 = vmatpush.msra.mxu0 %v663
    %2864 = vmatpush.msra.mxu0 %v657
    %2865 = vmatpush.msra.mxu0 %v651
    %2866 = vmatpush.msra.mxu0 %v645
    %2867 = vmatpush.msra.mxu0 %v639
    %2868 = vmatpush.msra.mxu0 %v633
    %2869 = vmatpush.msra.mxu0 %v627
    %2870 = vmatpush.msra.mxu0 %v621
    %2871 = vmatpush.msra.mxu0 %v615
    %2872 = vmatmul.f32.gmra.mxu0 %v2793
    %v2873 = vpop.f32.mrf.mxu0
    %v2874 = vadd.f32 %v2854, %v2873
    %2875 = vdwg.mxu0
    %2876 = vmatpush.msra.mxu0 %v610
    %2877 = vmatpush.msra.mxu0 %v604
    %2878 = vmatpush.msra.mxu0 %v598
    %2879 = vmatpush.msra.mxu0 %v592
    %2880 = vmatpush.msra.mxu0 %v586
    %2881 = vmatpush.msra.mxu0 %v580
    %2882 = vmatpush.msra.mxu0 %v574
    %2883 = vmatpush.msra.mxu0 %v568
    %2884 = vmatpush.msra.mxu0 %v562
    %2885 = vmatpush.msra.mxu0 %v556
    %2886 = vmatpush.msra.mxu0 %v550
    %2887 = vmatpush.msra.mxu0 %v544
    %2888 = vmatpush.msra.mxu0 %v538
    %2889 = vmatpush.msra.mxu0 %v532
    %2890 = vmatpush.msra.mxu0 %v526
    %2891 = vmatpush.msra.mxu0 %v520
    %2892 = vmatmul.f32.gmra.mxu0 %v2745
    %v2893 = vpop.f32.mrf.mxu0
    %v2894 = vadd.f32 0.0, %v2893
    %2895 = vdwg.mxu0
    %2896 = vmatpush.msra.mxu0 %v706
    %2897 = vmatpush.msra.mxu0 %v700
    %2898 = vmatpush.msra.mxu0 %v694
    %2899 = vmatpush.msra.mxu0 %v688
    %2900 = vmatpush.msra.mxu0 %v682
    %2901 = vmatpush.msra.mxu0 %v676
    %2902 = vmatpush.msra.mxu0 %v670
    %2903 = vmatpush.msra.mxu0 %v664
    %2904 = vmatpush.msra.mxu0 %v658
    %2905 = vmatpush.msra.mxu0 %v652
    %2906 = vmatpush.msra.mxu0 %v646
    %2907 = vmatpush.msra.mxu0 %v640
    %2908 = vmatpush.msra.mxu0 %v634
    %2909 = vmatpush.msra.mxu0 %v628
    %2910 = vmatpush.msra.mxu0 %v622
    %2911 = vmatpush.msra.mxu0 %v616
    %2912 = vmatmul.f32.gmra.mxu0 %v2793
    %v2913 = vpop.f32.mrf.mxu0
    %v2914 = vadd.f32 %v2894, %v2913
    %2915 = vdwg.mxu0
    %2916 = vmatpush.msra.mxu0 %v611
    %2917 = vmatpush.msra.mxu0 %v605
    %2918 = vmatpush.msra.mxu0 %v599
    %2919 = vmatpush.msra.mxu0 %v593
    %2920 = vmatpush.msra.mxu0 %v587
    %2921 = vmatpush.msra.mxu0 %v581
    %2922 = vmatpush.msra.mxu0 %v575
    %2923 = vmatpush.msra.mxu0 %v569
    %2924 = vmatpush.msra.mxu0 %v563
    %2925 = vmatpush.msra.mxu0 %v557
    %2926 = vmatpush.msra.mxu0 %v551
    %2927 = vmatpush.msra.mxu0 %v545
    %2928 = vmatpush.msra.mxu0 %v539
    %2929 = vmatpush.msra.mxu0 %v533
    %2930 = vmatpush.msra.mxu0 %v527
    %2931 = vmatpush.msra.mxu0 %v521
    %2932 = vmatmul.f32.gmra.mxu0 %v2745
    %v2933 = vpop.f32.mrf.mxu0
    %v2934 = vadd.f32 0.0, %v2933
    %2935 = vdwg.mxu0
    %2936 = vmatpush.msra.mxu0 %v707
    %2937 = vmatpush.msra.mxu0 %v701
    %2938 = vmatpush.msra.mxu0 %v695
    %2939 = vmatpush.msra.mxu0 %v689
    %2940 = vmatpush.msra.mxu0 %v683
    %2941 = vmatpush.msra.mxu0 %v677
    %2942 = vmatpush.msra.mxu0 %v671
    %2943 = vmatpush.msra.mxu0 %v665
    %2944 = vmatpush.msra.mxu0 %v659
    %2945 = vmatpush.msra.mxu0 %v653
    %2946 = vmatpush.msra.mxu0 %v647
    %2947 = vmatpush.msra.mxu0 %v641
    %2948 = vmatpush.msra.mxu0 %v635
    %2949 = vmatpush.msra.mxu0 %v629
    %2950 = vmatpush.msra.mxu0 %v623
    %2951 = vmatpush.msra.mxu0 %v617
    %2952 = vmatmul.f32.gmra.mxu0 %v2793
    %v2953 = vpop.f32.mrf.mxu0
    %v2954 = vadd.f32 %v2934, %v2953
    %2955 = vdwg.mxu0
    %2956 = vmatpush.msra.mxu0 %v612
    %2957 = vmatpush.msra.mxu0 %v606
    %2958 = vmatpush.msra.mxu0 %v600
    %2959 = vmatpush.msra.mxu0 %v594
    %2960 = vmatpush.msra.mxu0 %v588
    %2961 = vmatpush.msra.mxu0 %v582
    %2962 = vmatpush.msra.mxu0 %v576
    %2963 = vmatpush.msra.mxu0 %v570
    %2964 = vmatpush.msra.mxu0 %v564
    %2965 = vmatpush.msra.mxu0 %v558
    %2966 = vmatpush.msra.mxu0 %v552
    %2967 = vmatpush.msra.mxu0 %v546
    %2968 = vmatpush.msra.mxu0 %v540
    %2969 = vmatpush.msra.mxu0 %v534
    %2970 = vmatpush.msra.mxu0 %v528
    %2971 = vmatpush.msra.mxu0 %v522
    %2972 = vmatmul.f32.gmra.mxu0 %v2745
    %v2973 = vpop.f32.mrf.mxu0
    %v2974 = vadd.f32 0.0, %v2973
    %2975 = vdwg.mxu0
    %2976 = vmatpush.msra.mxu0 %v708
    %2977 = vmatpush.msra.mxu0 %v702
    %2978 = vmatpush.msra.mxu0 %v696
    %2979 = vmatpush.msra.mxu0 %v690
    %2980 = vmatpush.msra.mxu0 %v684
    %2981 = vmatpush.msra.mxu0 %v678
    %2982 = vmatpush.msra.mxu0 %v672
    %2983 = vmatpush.msra.mxu0 %v666
    %2984 = vmatpush.msra.mxu0 %v660
    %2985 = vmatpush.msra.mxu0 %v654
    %2986 = vmatpush.msra.mxu0 %v648
    %2987 = vmatpush.msra.mxu0 %v642
    %2988 = vmatpush.msra.mxu0 %v636
    %2989 = vmatpush.msra.mxu0 %v630
    %2990 = vmatpush.msra.mxu0 %v624
    %2991 = vmatpush.msra.mxu0 %v618
    %2992 = vmatmul.f32.gmra.mxu0 %v2793
    %v2993 = vpop.f32.mrf.mxu0
    %v2994 = vadd.f32 %v2974, %v2993
    %2995 = vdwg.mxu0
    %2996 = vmatpush.msra.mxu0 %v613
    %2997 = vmatpush.msra.mxu0 %v607
    %2998 = vmatpush.msra.mxu0 %v601
    %2999 = vmatpush.msra.mxu0 %v595
    %3000 = vmatpush.msra.mxu0 %v589
    %3001 = vmatpush.msra.mxu0 %v583
    %3002 = vmatpush.msra.mxu0 %v577
    %3003 = vmatpush.msra.mxu0 %v571
    %3004 = vmatpush.msra.mxu0 %v565
    %3005 = vmatpush.msra.mxu0 %v559
    %3006 = vmatpush.msra.mxu0 %v553
    %3007 = vmatpush.msra.mxu0 %v547
    %3008 = vmatpush.msra.mxu0 %v541
    %3009 = vmatpush.msra.mxu0 %v535
    %3010 = vmatpush.msra.mxu0 %v529
    %3011 = vmatpush.msra.mxu0 %v523
    %3012 = vmatmul.f32.gmra.mxu0 %v2745
    %v3013 = vpop.f32.mrf.mxu0
    %v3014 = vadd.f32 0.0, %v3013
    %3015 = vdwg.mxu0
    %3016 = vmatpush.msra.mxu0 %v709
    %3017 = vmatpush.msra.mxu0 %v703
    %3018 = vmatpush.msra.mxu0 %v697
    %3019 = vmatpush.msra.mxu0 %v691
    %3020 = vmatpush.msra.mxu0 %v685
    %3021 = vmatpush.msra.mxu0 %v679
    %3022 = vmatpush.msra.mxu0 %v673
    %3023 = vmatpush.msra.mxu0 %v667
    %3024 = vmatpush.msra.mxu0 %v661
    %3025 = vmatpush.msra.mxu0 %v655
    %3026 = vmatpush.msra.mxu0 %v649
    %3027 = vmatpush.msra.mxu0 %v643
    %3028 = vmatpush.msra.mxu0 %v637
    %3029 = vmatpush.msra.mxu0 %v631
    %3030 = vmatpush.msra.mxu0 %v625
    %3031 = vmatpush.msra.mxu0 %v619
    %3032 = vmatmul.f32.gmra.mxu0 %v2793
    %v3033 = vpop.f32.mrf.mxu0
    %v3034 = vadd.f32 %v3014, %v3033
    %3035 = vdwg.mxu0
    %v3036 = vld [vmem:[%s1308] sm:$0xff]
    %v3037 = vld [vmem:[%s1308 + $0x8] sm:$0xff]
    %v3038 = vld [vmem:[%s1308 + $0x10] sm:$0xff]
    %v3039 = vld [vmem:[%s1304 + $0x18] sm:$0xff]
    %v3040 = vld [vmem:[%s1304 + $0x20] sm:$0xff]
    %v3041 = vld [vmem:[%s1304 + $0x28] sm:$0xff]
    %v3042 = vadd.f32 %v3036, %v2834
    %v3043 = vxor.u32 %v3042, 2147483648
    %v3044 = vmul.f32 %v3043, 1.442695
    %v3045 = vpow.pop %v3044
    %v3046 = vadd.f32 %v3045, 1.0
    %v3047 = vrcp.pop %v3046
    %v3048 = vmul.f32 %v3046, %v3047
    %v3049 = vsub.f32 1.0, %v3048
    %v3050 = vmul.f32 %v3047, %v3049
    %v3051 = vadd.f32 %v3047, %v3050
    %vm3052 = vweird.f32 %v3046
    %vm3053 = vweird.f32 %v3047
    %vm3054 = vmor %vm3052, %vm3053
    %v3055 = vsel %vm3054, %v3047, %v3051
    %v3056 = vand.u32 2147483647, %v3046
    %vm3057 = vcmp.eq.f32.partialorder %v3056, 8.507059e+37
    %v3058 = vand.u32 %v3046, 2147483648
    %v3059 = vor.u32 1.1754944e-38, %v3058
    %v3060 = vsel %vm3057, %v3059, %v3055
    %v3061 = vmul.f32 1.0, %v3060
    %v3062 = vadd.f32 %v3037, %v2874
    %v3063 = vxor.u32 %v3062, 2147483648
    %v3064 = vmul.f32 %v3063, 1.442695
    %v3065 = vpow.pop %v3064
    %v3066 = vadd.f32 %v3065, 1.0
    %v3067 = vrcp.pop %v3066
    %v3068 = vmul.f32 %v3066, %v3067
    %v3069 = vsub.f32 1.0, %v3068
    %v3070 = vmul.f32 %v3067, %v3069
    %v3071 = vadd.f32 %v3067, %v3070
    %vm3072 = vweird.f32 %v3066
    %vm3073 = vweird.f32 %v3067
    %vm3074 = vmor %vm3072, %vm3073
    %v3075 = vsel %vm3074, %v3067, %v3071
    %v3076 = vand.u32 2147483647, %v3066
    %vm3077 = vcmp.eq.f32.partialorder %v3076, 8.507059e+37
    %v3078 = vand.u32 %v3066, 2147483648
    %v3079 = vor.u32 1.1754944e-38, %v3078
    %v3080 = vsel %vm3077, %v3079, %v3075
    %v3081 = vmul.f32 1.0, %v3080
    %v3082 = vadd.f32 %v2914, %v1000
    %v3083 = vmul.f32 %v3061, %v3082
    %v3084 = vadd.f32 %v3038, %v3083
    %v3085 = vtanh.pop %v3084
    %v3086 = vsub.f32 1.0, %v3081
    %v3087 = vmul.f32 %v3086, %v3085
    %v3088 = vmul.f32 %v3081, %v2745
    %v3089 = vadd.f32 %v3087, %v3088
    %v3090 = vadd.f32 %v3039, %v2954
    %v3091 = vxor.u32 %v3090, 2147483648
    %v3092 = vmul.f32 %v3091, 1.442695
    %v3093 = vpow.pop %v3092
    %v3094 = vadd.f32 %v3093, 1.0
    %v3095 = vrcp.pop %v3094
    %v3096 = vmul.f32 %v3094, %v3095
    %v3097 = vsub.f32 1.0, %v3096
    %v3098 = vmul.f32 %v3095, %v3097
    %v3099 = vadd.f32 %v3095, %v3098
    %vm3100 = vweird.f32 %v3094
    %vm3101 = vweird.f32 %v3095
    %vm3102 = vmor %vm3100, %vm3101
    %v3103 = vsel %vm3102, %v3095, %v3099
    %v3104 = vand.u32 2147483647, %v3094
    %vm3105 = vcmp.eq.f32.partialorder %v3104, 8.507059e+37
    %v3106 = vand.u32 %v3094, 2147483648
    %v3107 = vor.u32 1.1754944e-38, %v3106
    %v3108 = vsel %vm3105, %v3107, %v3103
    %v3109 = vmul.f32 1.0, %v3108
    %v3110 = vadd.f32 %v3040, %v2994
    %v3111 = vxor.u32 %v3110, 2147483648
    %v3112 = vmul.f32 %v3111, 1.442695
    %v3113 = vpow.pop %v3112
    %v3114 = vadd.f32 %v3113, 1.0
    %v3115 = vrcp.pop %v3114
    %v3116 = vmul.f32 %v3114, %v3115
    %v3117 = vsub.f32 1.0, %v3116
    %v3118 = vmul.f32 %v3115, %v3117
    %v3119 = vadd.f32 %v3115, %v3118
    %vm3120 = vweird.f32 %v3114
    %vm3121 = vweird.f32 %v3115
    %vm3122 = vmor %vm3120, %vm3121
    %v3123 = vsel %vm3122, %v3115, %v3119
    %v3124 = vand.u32 2147483647, %v3114
    %vm3125 = vcmp.eq.f32.partialorder %v3124, 8.507059e+37
    %v3126 = vand.u32 %v3114, 2147483648
    %v3127 = vor.u32 1.1754944e-38, %v3126
    %v3128 = vsel %vm3125, %v3127, %v3123
    %v3129 = vmul.f32 1.0, %v3128
    %v3130 = vadd.f32 %v3034, %v1051
    %v3131 = vmul.f32 %v3109, %v3130
    %v3132 = vadd.f32 %v3041, %v3131
    %v3133 = vtanh.pop %v3132
    %v3134 = vsub.f32 1.0, %v3129
    %v3135 = vmul.f32 %v3134, %v3133
    %v3136 = vmul.f32 %v3129, %v2793
    %v3137 = vadd.f32 %v3135, %v3136
    %3138 = vst [vmem:[%s1410] sm:$0xff] %v3089
    %3139 = vst [vmem:[%s1408 + $0x8] sm:$0xff] %v3137
    %3140 = vmatpush.msra.mxu0 %v608
    %3141 = vmatpush.msra.mxu0 %v602
    %3142 = vmatpush.msra.mxu0 %v596
    %3143 = vmatpush.msra.mxu0 %v590
    %3144 = vmatpush.msra.mxu0 %v584
    %3145 = vmatpush.msra.mxu0 %v578
    %3146 = vmatpush.msra.mxu0 %v572
    %3147 = vmatpush.msra.mxu0 %v566
    %3148 = vmatpush.msra.mxu0 %v560
    %3149 = vmatpush.msra.mxu0 %v554
    %3150 = vmatpush.msra.mxu0 %v548
    %3151 = vmatpush.msra.mxu0 %v542
    %3152 = vmatpush.msra.mxu0 %v536
    %3153 = vmatpush.msra.mxu0 %v530
    %3154 = vmatpush.msra.mxu0 %v524
    %3155 = vmatpush.msra.mxu0 %v518
    %3156 = vmatmul.f32.gmra.mxu0 %v3089
    %v3157 = vpop.f32.mrf.mxu0
    %v3158 = vadd.f32 0.0, %v3157
    %3159 = vdwg.mxu0
    %3160 = vmatpush.msra.mxu0 %v704
    %3161 = vmatpush.msra.mxu0 %v698
    %3162 = vmatpush.msra.mxu0 %v692
    %3163 = vmatpush.msra.mxu0 %v686
    %3164 = vmatpush.msra.mxu0 %v680
    %3165 = vmatpush.msra.mxu0 %v674
    %3166 = vmatpush.msra.mxu0 %v668
    %3167 = vmatpush.msra.mxu0 %v662
    %3168 = vmatpush.msra.mxu0 %v656
    %3169 = vmatpush.msra.mxu0 %v650
    %3170 = vmatpush.msra.mxu0 %v644
    %3171 = vmatpush.msra.mxu0 %v638
    %3172 = vmatpush.msra.mxu0 %v632
    %3173 = vmatpush.msra.mxu0 %v626
    %3174 = vmatpush.msra.mxu0 %v620
    %3175 = vmatpush.msra.mxu0 %v614
    %3176 = vmatmul.f32.gmra.mxu0 %v3137
    %v3177 = vpop.f32.mrf.mxu0
    %v3178 = vadd.f32 %v3158, %v3177
    %3179 = vdwg.mxu0
    %3180 = vmatpush.msra.mxu0 %v609
    %3181 = vmatpush.msra.mxu0 %v603
    %3182 = vmatpush.msra.mxu0 %v597
    %3183 = vmatpush.msra.mxu0 %v591
    %3184 = vmatpush.msra.mxu0 %v585
    %3185 = vmatpush.msra.mxu0 %v579
    %3186 = vmatpush.msra.mxu0 %v573
    %3187 = vmatpush.msra.mxu0 %v567
    %3188 = vmatpush.msra.mxu0 %v561
    %3189 = vmatpush.msra.mxu0 %v555
    %3190 = vmatpush.msra.mxu0 %v549
    %3191 = vmatpush.msra.mxu0 %v543
    %3192 = vmatpush.msra.mxu0 %v537
    %3193 = vmatpush.msra.mxu0 %v531
    %3194 = vmatpush.msra.mxu0 %v525
    %3195 = vmatpush.msra.mxu0 %v519
    %3196 = vmatmul.f32.gmra.mxu0 %v3089
    %v3197 = vpop.f32.mrf.mxu0
    %v3198 = vadd.f32 0.0, %v3197
    %3199 = vdwg.mxu0
    %3200 = vmatpush.msra.mxu0 %v705
    %3201 = vmatpush.msra.mxu0 %v699
    %3202 = vmatpush.msra.mxu0 %v693
    %3203 = vmatpush.msra.mxu0 %v687
    %3204 = vmatpush.msra.mxu0 %v681
    %3205 = vmatpush.msra.mxu0 %v675
    %3206 = vmatpush.msra.mxu0 %v669
    %3207 = vmatpush.msra.mxu0 %v663
    %3208 = vmatpush.msra.mxu0 %v657
    %3209 = vmatpush.msra.mxu0 %v651
    %3210 = vmatpush.msra.mxu0 %v645
    %3211 = vmatpush.msra.mxu0 %v639
    %3212 = vmatpush.msra.mxu0 %v633
    %3213 = vmatpush.msra.mxu0 %v627
    %3214 = vmatpush.msra.mxu0 %v621
    %3215 = vmatpush.msra.mxu0 %v615
    %3216 = vmatmul.f32.gmra.mxu0 %v3137
    %v3217 = vpop.f32.mrf.mxu0
    %v3218 = vadd.f32 %v3198, %v3217
    %3219 = vdwg.mxu0
    %3220 = vmatpush.msra.mxu0 %v610
    %3221 = vmatpush.msra.mxu0 %v604
    %3222 = vmatpush.msra.mxu0 %v598
    %3223 = vmatpush.msra.mxu0 %v592
    %3224 = vmatpush.msra.mxu0 %v586
    %3225 = vmatpush.msra.mxu0 %v580
    %3226 = vmatpush.msra.mxu0 %v574
    %3227 = vmatpush.msra.mxu0 %v568
    %3228 = vmatpush.msra.mxu0 %v562
    %3229 = vmatpush.msra.mxu0 %v556
    %3230 = vmatpush.msra.mxu0 %v550
    %3231 = vmatpush.msra.mxu0 %v544
    %3232 = vmatpush.msra.mxu0 %v538
    %3233 = vmatpush.msra.mxu0 %v532
    %3234 = vmatpush.msra.mxu0 %v526
    %3235 = vmatpush.msra.mxu0 %v520
    %3236 = vmatmul.f32.gmra.mxu0 %v3089
    %v3237 = vpop.f32.mrf.mxu0
    %v3238 = vadd.f32 0.0, %v3237
    %3239 = vdwg.mxu0
    %3240 = vmatpush.msra.mxu0 %v706
    %3241 = vmatpush.msra.mxu0 %v700
    %3242 = vmatpush.msra.mxu0 %v694
    %3243 = vmatpush.msra.mxu0 %v688
    %3244 = vmatpush.msra.mxu0 %v682
    %3245 = vmatpush.msra.mxu0 %v676
    %3246 = vmatpush.msra.mxu0 %v670
    %3247 = vmatpush.msra.mxu0 %v664
    %3248 = vmatpush.msra.mxu0 %v658
    %3249 = vmatpush.msra.mxu0 %v652
    %3250 = vmatpush.msra.mxu0 %v646
    %3251 = vmatpush.msra.mxu0 %v640
    %3252 = vmatpush.msra.mxu0 %v634
    %3253 = vmatpush.msra.mxu0 %v628
    %3254 = vmatpush.msra.mxu0 %v622
    %3255 = vmatpush.msra.mxu0 %v616
    %3256 = vmatmul.f32.gmra.mxu0 %v3137
    %v3257 = vpop.f32.mrf.mxu0
    %v3258 = vadd.f32 %v3238, %v3257
    %3259 = vdwg.mxu0
    %3260 = vmatpush.msra.mxu0 %v611
    %3261 = vmatpush.msra.mxu0 %v605
    %3262 = vmatpush.msra.mxu0 %v599
    %3263 = vmatpush.msra.mxu0 %v593
    %3264 = vmatpush.msra.mxu0 %v587
    %3265 = vmatpush.msra.mxu0 %v581
    %3266 = vmatpush.msra.mxu0 %v575
    %3267 = vmatpush.msra.mxu0 %v569
    %3268 = vmatpush.msra.mxu0 %v563
    %3269 = vmatpush.msra.mxu0 %v557
    %3270 = vmatpush.msra.mxu0 %v551
    %3271 = vmatpush.msra.mxu0 %v545
    %3272 = vmatpush.msra.mxu0 %v539
    %3273 = vmatpush.msra.mxu0 %v533
    %3274 = vmatpush.msra.mxu0 %v527
    %3275 = vmatpush.msra.mxu0 %v521
    %3276 = vmatmul.f32.gmra.mxu0 %v3089
    %v3277 = vpop.f32.mrf.mxu0
    %v3278 = vadd.f32 0.0, %v3277
    %3279 = vdwg.mxu0
    %3280 = vmatpush.msra.mxu0 %v707
    %3281 = vmatpush.msra.mxu0 %v701
    %3282 = vmatpush.msra.mxu0 %v695
    %3283 = vmatpush.msra.mxu0 %v689
    %3284 = vmatpush.msra.mxu0 %v683
    %3285 = vmatpush.msra.mxu0 %v677
    %3286 = vmatpush.msra.mxu0 %v671
    %3287 = vmatpush.msra.mxu0 %v665
    %3288 = vmatpush.msra.mxu0 %v659
    %3289 = vmatpush.msra.mxu0 %v653
    %3290 = vmatpush.msra.mxu0 %v647
    %3291 = vmatpush.msra.mxu0 %v641
    %3292 = vmatpush.msra.mxu0 %v635
    %3293 = vmatpush.msra.mxu0 %v629
    %3294 = vmatpush.msra.mxu0 %v623
    %3295 = vmatpush.msra.mxu0 %v617
    %3296 = vmatmul.f32.gmra.mxu0 %v3137
    %v3297 = vpop.f32.mrf.mxu0
    %v3298 = vadd.f32 %v3278, %v3297
    %3299 = vdwg.mxu0
    %3300 = vmatpush.msra.mxu0 %v612
    %3301 = vmatpush.msra.mxu0 %v606
    %3302 = vmatpush.msra.mxu0 %v600
    %3303 = vmatpush.msra.mxu0 %v594
    %3304 = vmatpush.msra.mxu0 %v588
    %3305 = vmatpush.msra.mxu0 %v582
    %3306 = vmatpush.msra.mxu0 %v576
    %3307 = vmatpush.msra.mxu0 %v570
    %3308 = vmatpush.msra.mxu0 %v564
    %3309 = vmatpush.msra.mxu0 %v558
    %3310 = vmatpush.msra.mxu0 %v552
    %3311 = vmatpush.msra.mxu0 %v546
    %3312 = vmatpush.msra.mxu0 %v540
    %3313 = vmatpush.msra.mxu0 %v534
    %3314 = vmatpush.msra.mxu0 %v528
    %3315 = vmatpush.msra.mxu0 %v522
    %3316 = vmatmul.f32.gmra.mxu0 %v3089
    %v3317 = vpop.f32.mrf.mxu0
    %v3318 = vadd.f32 0.0, %v3317
    %3319 = vdwg.mxu0
    %3320 = vmatpush.msra.mxu0 %v708
    %3321 = vmatpush.msra.mxu0 %v702
    %3322 = vmatpush.msra.mxu0 %v696
    %3323 = vmatpush.msra.mxu0 %v690
    %3324 = vmatpush.msra.mxu0 %v684
    %3325 = vmatpush.msra.mxu0 %v678
    %3326 = vmatpush.msra.mxu0 %v672
    %3327 = vmatpush.msra.mxu0 %v666
    %3328 = vmatpush.msra.mxu0 %v660
    %3329 = vmatpush.msra.mxu0 %v654
    %3330 = vmatpush.msra.mxu0 %v648
    %3331 = vmatpush.msra.mxu0 %v642
    %3332 = vmatpush.msra.mxu0 %v636
    %3333 = vmatpush.msra.mxu0 %v630
    %3334 = vmatpush.msra.mxu0 %v624
    %3335 = vmatpush.msra.mxu0 %v618
    %3336 = vmatmul.f32.gmra.mxu0 %v3137
    %v3337 = vpop.f32.mrf.mxu0
    %v3338 = vadd.f32 %v3318, %v3337
    %3339 = vdwg.mxu0
    %3340 = vmatpush.msra.mxu0 %v613
    %3341 = vmatpush.msra.mxu0 %v607
    %3342 = vmatpush.msra.mxu0 %v601
    %3343 = vmatpush.msra.mxu0 %v595
    %3344 = vmatpush.msra.mxu0 %v589
    %3345 = vmatpush.msra.mxu0 %v583
    %3346 = vmatpush.msra.mxu0 %v577
    %3347 = vmatpush.msra.mxu0 %v571
    %3348 = vmatpush.msra.mxu0 %v565
    %3349 = vmatpush.msra.mxu0 %v559
    %3350 = vmatpush.msra.mxu0 %v553
    %3351 = vmatpush.msra.mxu0 %v547
    %3352 = vmatpush.msra.mxu0 %v541
    %3353 = vmatpush.msra.mxu0 %v535
    %3354 = vmatpush.msra.mxu0 %v529
    %3355 = vmatpush.msra.mxu0 %v523
    %3356 = vmatmul.f32.gmra.mxu0 %v3089
    %v3357 = vpop.f32.mrf.mxu0
    %v3358 = vadd.f32 0.0, %v3357
    %3359 = vdwg.mxu0
    %3360 = vmatpush.msra.mxu0 %v709
    %3361 = vmatpush.msra.mxu0 %v703
    %3362 = vmatpush.msra.mxu0 %v697
    %3363 = vmatpush.msra.mxu0 %v691
    %3364 = vmatpush.msra.mxu0 %v685
    %3365 = vmatpush.msra.mxu0 %v679
    %3366 = vmatpush.msra.mxu0 %v673
    %3367 = vmatpush.msra.mxu0 %v667
    %3368 = vmatpush.msra.mxu0 %v661
    %3369 = vmatpush.msra.mxu0 %v655
    %3370 = vmatpush.msra.mxu0 %v649
    %3371 = vmatpush.msra.mxu0 %v643
    %3372 = vmatpush.msra.mxu0 %v637
    %3373 = vmatpush.msra.mxu0 %v631
    %3374 = vmatpush.msra.mxu0 %v625
    %3375 = vmatpush.msra.mxu0 %v619
    %3376 = vmatmul.f32.gmra.mxu0 %v3137
    %v3377 = vpop.f32.mrf.mxu0
    %v3378 = vadd.f32 %v3358, %v3377
    %3379 = vdwg.mxu0
    %v3380 = vld [vmem:[%s955] sm:$0xff]
    %v3381 = vld [vmem:[%s955 + $0x8] sm:$0xff]
    %v3382 = vld [vmem:[%s955 + $0x10] sm:$0xff]
    %v3383 = vld [vmem:[#allocation2 + $0x18] sm:$0xff]
    %v3384 = vld [vmem:[#allocation2 + $0x20] sm:$0xff]
    %v3385 = vld [vmem:[#allocation2 + $0x28] sm:$0xff]
    %v3386 = vadd.f32 %v3380, %v3178
    %v3387 = vxor.u32 %v3386, 2147483648
    %v3388 = vmul.f32 %v3387, 1.442695
    %v3389 = vpow.pop %v3388
    %v3390 = vadd.f32 %v3389, 1.0
    %v3391 = vrcp.pop %v3390
    %v3392 = vmul.f32 %v3390, %v3391
    %v3393 = vsub.f32 1.0, %v3392
    %v3394 = vmul.f32 %v3391, %v3393
    %v3395 = vadd.f32 %v3391, %v3394
    %vm3396 = vweird.f32 %v3390
    %vm3397 = vweird.f32 %v3391
    %vm3398 = vmor %vm3396, %vm3397
    %v3399 = vsel %vm3398, %v3391, %v3395
    %v3400 = vand.u32 2147483647, %v3390
    %vm3401 = vcmp.eq.f32.partialorder %v3400, 8.507059e+37
    %v3402 = vand.u32 %v3390, 2147483648
    %v3403 = vor.u32 1.1754944e-38, %v3402
    %v3404 = vsel %vm3401, %v3403, %v3399
    %v3405 = vmul.f32 1.0, %v3404
    %v3406 = vadd.f32 %v3381, %v3218
    %v3407 = vxor.u32 %v3406, 2147483648
    %v3408 = vmul.f32 %v3407, 1.442695
    %v3409 = vpow.pop %v3408
    %v3410 = vadd.f32 %v3409, 1.0
    %v3411 = vrcp.pop %v3410
    %v3412 = vmul.f32 %v3410, %v3411
    %v3413 = vsub.f32 1.0, %v3412
    %v3414 = vmul.f32 %v3411, %v3413
    %v3415 = vadd.f32 %v3411, %v3414
    %vm3416 = vweird.f32 %v3410
    %vm3417 = vweird.f32 %v3411
    %vm3418 = vmor %vm3416, %vm3417
    %v3419 = vsel %vm3418, %v3411, %v3415
    %v3420 = vand.u32 2147483647, %v3410
    %vm3421 = vcmp.eq.f32.partialorder %v3420, 8.507059e+37
    %v3422 = vand.u32 %v3410, 2147483648
    %v3423 = vor.u32 1.1754944e-38, %v3422
    %v3424 = vsel %vm3421, %v3423, %v3419
    %v3425 = vmul.f32 1.0, %v3424
    %v3426 = vadd.f32 %v3258, %v1000
    %v3427 = vmul.f32 %v3405, %v3426
    %v3428 = vadd.f32 %v3382, %v3427
    %v3429 = vtanh.pop %v3428
    %v3430 = vsub.f32 1.0, %v3425
    %v3431 = vmul.f32 %v3430, %v3429
    %v3432 = vmul.f32 %v3425, %v3089
    %v3433 = vadd.f32 %v3431, %v3432
    %v3434 = vadd.f32 %v3383, %v3298
    %v3435 = vxor.u32 %v3434, 2147483648
    %v3436 = vmul.f32 %v3435, 1.442695
    %v3437 = vpow.pop %v3436
    %v3438 = vadd.f32 %v3437, 1.0
    %v3439 = vrcp.pop %v3438
    %v3440 = vmul.f32 %v3438, %v3439
    %v3441 = vsub.f32 1.0, %v3440
    %v3442 = vmul.f32 %v3439, %v3441
    %v3443 = vadd.f32 %v3439, %v3442
    %vm3444 = vweird.f32 %v3438
    %vm3445 = vweird.f32 %v3439
    %vm3446 = vmor %vm3444, %vm3445
    %v3447 = vsel %vm3446, %v3439, %v3443
    %v3448 = vand.u32 2147483647, %v3438
    %vm3449 = vcmp.eq.f32.partialorder %v3448, 8.507059e+37
    %v3450 = vand.u32 %v3438, 2147483648
    %v3451 = vor.u32 1.1754944e-38, %v3450
    %v3452 = vsel %vm3449, %v3451, %v3447
    %v3453 = vmul.f32 1.0, %v3452
    %v3454 = vadd.f32 %v3384, %v3338
    %v3455 = vxor.u32 %v3454, 2147483648
    %v3456 = vmul.f32 %v3455, 1.442695
    %v3457 = vpow.pop %v3456
    %v3458 = vadd.f32 %v3457, 1.0
    %v3459 = vrcp.pop %v3458
    %v3460 = vmul.f32 %v3458, %v3459
    %v3461 = vsub.f32 1.0, %v3460
    %v3462 = vmul.f32 %v3459, %v3461
    %v3463 = vadd.f32 %v3459, %v3462
    %vm3464 = vweird.f32 %v3458
    %vm3465 = vweird.f32 %v3459
    %vm3466 = vmor %vm3464, %vm3465
    %v3467 = vsel %vm3466, %v3459, %v3463
    %v3468 = vand.u32 2147483647, %v3458
    %vm3469 = vcmp.eq.f32.partialorder %v3468, 8.507059e+37
    %v3470 = vand.u32 %v3458, 2147483648
    %v3471 = vor.u32 1.1754944e-38, %v3470
    %v3472 = vsel %vm3469, %v3471, %v3467
    %v3473 = vmul.f32 1.0, %v3472
    %v3474 = vadd.f32 %v3378, %v1051
    %v3475 = vmul.f32 %v3453, %v3474
    %v3476 = vadd.f32 %v3385, %v3475
    %v3477 = vtanh.pop %v3476
    %v3478 = vsub.f32 1.0, %v3473
    %v3479 = vmul.f32 %v3478, %v3477
    %v3480 = vmul.f32 %v3473, %v3137
    %v3481 = vadd.f32 %v3479, %v3480
    %3482 = vst [vmem:[%s1062] sm:$0xff] %v3433
    %3483 = vst [vmem:[#allocation3 + $0x8] sm:$0xff] %v3481
    %v3484 = vld [vmem:[#allocation3] sm:$0xff]
    %v3485 = vld [vmem:[#allocation3 + $0x8] sm:$0xff]
    %v3486 = vld [vmem:[#allocation3 + $0x10] sm:$0xff]
    %v3487 = vld [vmem:[#allocation3 + $0x18] sm:$0xff]
    %v3488 = vld [vmem:[#allocation3 + $0x20] sm:$0xff]
    %v3489 = vld [vmem:[#allocation3 + $0x28] sm:$0xff]
    %v3490 = vld [vmem:[#allocation3 + $0x30] sm:$0xff]
    %v3491 = vld [vmem:[#allocation3 + $0x38] sm:$0xff]
    %v3492 = vld [vmem:[#allocation3 + $0x40] sm:$0xff]
    %v3493 = vld [vmem:[#allocation3 + $0x48] sm:$0xff]
    %v3494 = vld [vmem:[#allocation3 + $0x50] sm:$0xff]
    %v3495 = vld [vmem:[#allocation3 + $0x58] sm:$0xff]
    %v3496 = vld [vmem:[#allocation3 + $0x60] sm:$0xff]
    %v3497 = vld [vmem:[#allocation3 + $0x68] sm:$0xff]
    %v3498 = vld [vmem:[#allocation3 + $0x70] sm:$0xff]
    %v3499 = vld [vmem:[#allocation3 + $0x78] sm:$0xff]
    %v3500 = vmul.f32 %v3484, 0.01
    %v3501 = vmul.f32 %v3485, 0.01
    %v3502 = vmul.f32 %v3486, 0.01
    %v3503 = vmul.f32 %v3487, 0.01
    %v3504 = vmul.f32 %v3488, 0.01
    %v3505 = vmul.f32 %v3489, 0.01
    %v3506 = vmul.f32 %v3490, 0.01
    %v3507 = vmul.f32 %v3491, 0.01
    %v3508 = vmul.f32 %v3492, 0.01
    %v3509 = vmul.f32 %v3493, 0.01
    %v3510 = vmul.f32 %v3494, 0.01
    %v3511 = vmul.f32 %v3495, 0.01
    %v3512 = vmul.f32 %v3496, 0.01
    %v3513 = vmul.f32 %v3497, 0.01
    %v3514 = vmul.f32 %v3498, 0.01
    %v3515 = vmul.f32 %v3499, 0.01
    %v3516 = vmax.f32 %v3484, %v3500
    %v3517 = vmax.f32 %v3485, %v3501
    %v3518 = vmax.f32 %v3486, %v3502
    %v3519 = vmax.f32 %v3487, %v3503
    %v3520 = vmax.f32 %v3488, %v3504
    %v3521 = vmax.f32 %v3489, %v3505
    %v3522 = vmax.f32 %v3490, %v3506
    %v3523 = vmax.f32 %v3491, %v3507
    %v3524 = vmax.f32 %v3492, %v3508
    %v3525 = vmax.f32 %v3493, %v3509
    %v3526 = vmax.f32 %v3494, %v3510
    %v3527 = vmax.f32 %v3495, %v3511
    %v3528 = vmax.f32 %v3496, %v3512
    %v3529 = vmax.f32 %v3497, %v3513
    %v3530 = vmax.f32 %v3498, %v3514
    %v3531 = vmax.f32 %v3499, %v3515
    %v3532 = vld [vmem:[#allocation12] sm:$0xff]
    %v3533 = vld [vmem:[#allocation12 + $0x8] sm:$0xff]
    %v3534 = vld [vmem:[#allocation12 + $0x10] sm:$0xff]
    %v3535 = vld [vmem:[#allocation12 + $0x18] sm:$0xff]
    %v3536 = vld [vmem:[#allocation12 + $0x20] sm:$0xff]
    %v3537 = vld [vmem:[#allocation12 + $0x28] sm:$0xff]
    %v3538 = vld [vmem:[#allocation12 + $0x30] sm:$0xff]
    %v3539 = vld [vmem:[#allocation12 + $0x38] sm:$0xff]
    %v3540 = vld [vmem:[#allocation12 + $0x40] sm:$0xff]
    %v3541 = vld [vmem:[#allocation12 + $0x48] sm:$0xff]
    %v3542 = vld [vmem:[#allocation12 + $0x50] sm:$0xff]
    %v3543 = vld [vmem:[#allocation12 + $0x58] sm:$0xff]
    %v3544 = vld [vmem:[#allocation12 + $0x60] sm:$0xff]
    %v3545 = vld [vmem:[#allocation12 + $0x68] sm:$0xff]
    %v3546 = vld [vmem:[#allocation12 + $0x70] sm:$0xff]
    %v3547 = vld [vmem:[#allocation12 + $0x78] sm:$0xff]
    %v3548 = vld [vmem:[#allocation12 + $0x80] sm:$0xff]
    %v3549 = vld [vmem:[#allocation12 + $0x88] sm:$0xff]
    %v3550 = vld [vmem:[#allocation12 + $0x90] sm:$0xff]
    %v3551 = vld [vmem:[#allocation12 + $0x98] sm:$0xff]
    %v3552 = vld [vmem:[#allocation12 + $0xa0] sm:$0xff]
    %v3553 = vld [vmem:[#allocation12 + $0xa8] sm:$0xff]
    %v3554 = vld [vmem:[#allocation12 + $0xb0] sm:$0xff]
    %v3555 = vld [vmem:[#allocation12 + $0xb8] sm:$0xff]
    %v3556 = vld [vmem:[#allocation12 + $0xc0] sm:$0xff]
    %v3557 = vld [vmem:[#allocation12 + $0xc8] sm:$0xff]
    %v3558 = vld [vmem:[#allocation12 + $0xd0] sm:$0xff]
    %v3559 = vld [vmem:[#allocation12 + $0xd8] sm:$0xff]
    %v3560 = vld [vmem:[#allocation12 + $0xe0] sm:$0xff]
    %v3561 = vld [vmem:[#allocation12 + $0xe8] sm:$0xff]
    %v3562 = vld [vmem:[#allocation12 + $0xf0] sm:$0xff]
    %v3563 = vld [vmem:[#allocation12 + $0xf8] sm:$0xff]
    %v3564 = vld [vmem:[%s7] sm:$0x1]
    %v3566 = vperm.slane %v3564, 0
    %3568 = vmatpush.msra.mxu0 %v3547
    %3569 = vmatpush.msra.mxu0 %v3546
    %3570 = vmatpush.msra.mxu0 %v3545
    %3571 = vmatpush.msra.mxu0 %v3544
    %3572 = vmatpush.msra.mxu0 %v3543
    %3573 = vmatpush.msra.mxu0 %v3542
    %3574 = vmatpush.msra.mxu0 %v3541
    %3575 = vmatpush.msra.mxu0 %v3540
    %3576 = vmatpush.msra.mxu0 %v3539
    %3577 = vmatpush.msra.mxu0 %v3538
    %3578 = vmatpush.msra.mxu0 %v3537
    %3579 = vmatpush.msra.mxu0 %v3536
    %3580 = vmatpush.msra.mxu0 %v3535
    %3581 = vmatpush.msra.mxu0 %v3534
    %3582 = vmatpush.msra.mxu0 %v3533
    %3583 = vmatpush.msra.mxu0 %v3532
    %3584 = vmatmul.f32.gmra.mxu0 %v3516
    %v3585 = vpop.f32.mrf.mxu0
    %v3586 = vadd.f32 %v3566, %v3585
    %3587 = vmatmul.f32.gmra.mxu0 %v3518
    %v3588 = vpop.f32.mrf.mxu0
    %v3589 = vadd.f32 %v3566, %v3588
    %3590 = vmatmul.f32.gmra.mxu0 %v3520
    %v3591 = vpop.f32.mrf.mxu0
    %v3592 = vadd.f32 %v3566, %v3591
    %3593 = vmatmul.f32.gmra.mxu0 %v3522
    %v3594 = vpop.f32.mrf.mxu0
    %v3595 = vadd.f32 %v3566, %v3594
    %3596 = vmatmul.f32.gmra.mxu0 %v3524
    %v3597 = vpop.f32.mrf.mxu0
    %v3598 = vadd.f32 %v3566, %v3597
    %3599 = vmatmul.f32.gmra.mxu0 %v3526
    %v3600 = vpop.f32.mrf.mxu0
    %v3601 = vadd.f32 %v3566, %v3600
    %3602 = vmatmul.f32.gmra.mxu0 %v3528
    %v3603 = vpop.f32.mrf.mxu0
    %v3604 = vadd.f32 %v3566, %v3603
    %3605 = vmatmul.f32.gmra.mxu0 %v3530
    %v3606 = vpop.f32.mrf.mxu0
    %v3607 = vadd.f32 %v3566, %v3606
    %3608 = vdwg.mxu0
    %3609 = vmatpush.msra.mxu0 %v3563
    %3610 = vmatpush.msra.mxu0 %v3562
    %3611 = vmatpush.msra.mxu0 %v3561
    %3612 = vmatpush.msra.mxu0 %v3560
    %3613 = vmatpush.msra.mxu0 %v3559
    %3614 = vmatpush.msra.mxu0 %v3558
    %3615 = vmatpush.msra.mxu0 %v3557
    %3616 = vmatpush.msra.mxu0 %v3556
    %3617 = vmatpush.msra.mxu0 %v3555
    %3618 = vmatpush.msra.mxu0 %v3554
    %3619 = vmatpush.msra.mxu0 %v3553
    %3620 = vmatpush.msra.mxu0 %v3552
    %3621 = vmatpush.msra.mxu0 %v3551
    %3622 = vmatpush.msra.mxu0 %v3550
    %3623 = vmatpush.msra.mxu0 %v3549
    %3624 = vmatpush.msra.mxu0 %v3548
    %3625 = vmatmul.f32.gmra.mxu0 %v3517
    %v3626 = vpop.f32.mrf.mxu0
    %v3627 = vadd.f32 %v3586, %v3626
    %3628 = vmatmul.f32.gmra.mxu0 %v3519
    %v3629 = vpop.f32.mrf.mxu0
    %v3630 = vadd.f32 %v3589, %v3629
    %3631 = vmatmul.f32.gmra.mxu0 %v3521
    %v3632 = vpop.f32.mrf.mxu0
    %v3633 = vadd.f32 %v3592, %v3632
    %3634 = vmatmul.f32.gmra.mxu0 %v3523
    %v3635 = vpop.f32.mrf.mxu0
    %v3636 = vadd.f32 %v3595, %v3635
    %3637 = vmatmul.f32.gmra.mxu0 %v3525
    %v3638 = vpop.f32.mrf.mxu0
    %v3639 = vadd.f32 %v3598, %v3638
    %3640 = vmatmul.f32.gmra.mxu0 %v3527
    %v3641 = vpop.f32.mrf.mxu0
    %v3642 = vadd.f32 %v3601, %v3641
    %3643 = vmatmul.f32.gmra.mxu0 %v3529
    %v3644 = vpop.f32.mrf.mxu0
    %v3645 = vadd.f32 %v3604, %v3644
    %3646 = vmatmul.f32.gmra.mxu0 %v3531
    %v3647 = vpop.f32.mrf.mxu0
    %v3648 = vadd.f32 %v3607, %v3647
    %3649 = vdwg.mxu0
    %3650 = vst [vmem:[#allocation13] sm:$0xff] %v3627
    %3651 = vst [vmem:[#allocation13 + $0x8] sm:$0xff] %v3630
    %3652 = vst [vmem:[#allocation13 + $0x10] sm:$0xff] %v3633
    %3653 = vst [vmem:[#allocation13 + $0x18] sm:$0xff] %v3636
    %3654 = vst [vmem:[#allocation13 + $0x20] sm:$0xff] %v3639
    %3655 = vst [vmem:[#allocation13 + $0x28] sm:$0xff] %v3642
    %3656 = vst [vmem:[#allocation13 + $0x30] sm:$0xff] %v3645
    %3657 = vst [vmem:[#allocation13 + $0x38] sm:$0xff] %v3648
    // Predicated region
    $region54: #{tpu_custom_call.1} parent=1 // pred_check
      _
    $region55: #{tpu_custom_call.1} parent=1 // pred_check_branch
      %3659 = sbr.rel (0) target = $region57
    $region56: #{tpu_custom_call.1} parent=1 // pred_region
      %3661 = vsyncadd [#allocation6], 0
      %s3662 = sshll.u32 [#allocation13], 4
      %s3663 = int_to_ptr.vmem [resolvable:$true] %s3662
      %s3664 = sshll.u32 %s8, 4
      %s3665 = int_to_ptr.hbm [resolvable:$true] %s3664
      %3670 = dma.vmem_to_hbm [thread:$0]  %s3663, 1024, %s3665, [#allocation6], 128, 128, 8
    $region57: #{tpu_custom_call.1} parent=1 // pred_fallthru
      _
    // Predicated region
    $region58: #{tpu_custom_call.1} parent=1 // pred_check
      _
    $region59: #{tpu_custom_call.1} parent=1 // pred_check_branch
      %3672 = sbr.rel (0) target = $region61
    $region60: #{tpu_custom_call.1} parent=1 // pred_region
      %3674 = dma.done [#allocation6], 1024
    $region61: #{tpu_custom_call.1} parent=1 // pred_fallthru
      _
    %3675 = vsyncpa [#allocation5], 1
    %3676 = vsyncpa [#allocation8], 1
    %3677 = vsyncpa [#allocation11], 1
    %3678 = vsyncpa [#allocation6], 1

</llo_original>
